<compile_context>
chip_gen: v7x
topology: tpu7x:2x2x1
jax: 0.10.0
libtpu: 0.0.40
codegen_flags: <defaults>
</compile_context>

<pallas_src>
import functools

import jax
import jax.numpy as jnp
from jax.experimental import pallas as pl
from jax.experimental.pallas import tpu as pltpu

LN_EPS = 1e-5          # torch.nn.LayerNorm default
MASK_VALUE = -1e9      # large-but-finite additive mask (no -inf / NaN risk)


def _layernorm(x, g, b):
    mu = jnp.mean(x, axis=-1, keepdims=True)
    var = jnp.mean(jnp.square(x - mu), axis=-1, keepdims=True)
    return (x - mu) * jax.lax.rsqrt(var + LN_EPS) * g + b


# ---------------------------------------------------------------------------
# Kernel 1: attention LayerNorm + fused QKV projection
#   grid = (row tiles, qkv-col tiles); LN computed once per row tile into a
#   bf16 scratch, weight tile streamed per column step.
# ---------------------------------------------------------------------------
def ln_proj_kernel(x_ref, g_ref, b_ref, w_ref, bias_ref, o_ref, h_scratch):
    j = pl.program_id(1)

    @pl.when(j == 0)
    def _():
        h_scratch[...] = _layernorm(
            x_ref[...], g_ref[...], b_ref[...]).astype(jnp.bfloat16)

    o_ref[...] = (jnp.dot(h_scratch[...], w_ref[...],
                          preferred_element_type=jnp.float32)
                  + bias_ref[...]).astype(o_ref.dtype)


# ---------------------------------------------------------------------------
# Kernel 2: attention, one (batch, head, Q-row-tile) per grid step.
#   Q tile (TQ, hd) x resident K/V (S, hd); mask built per tile on the VPU
#   from per-batch valid lengths (SMEM scalar prefetch).
# ---------------------------------------------------------------------------
def attn_kernel(lens_ref, q_ref, k_ref, v_ref, o_ref):
    b = pl.program_id(0)
    qi = pl.program_id(2)

    q = q_ref[0, 0]                                  # (TQ, hd) bf16
    k = k_ref[0, 0]                                  # (S,  hd) bf16
    v = v_ref[0, 0]                                  # (S,  hd) bf16
    TQ = q.shape[0]
    S = k.shape[0]

    # q @ k^T via dot_general contracting last dims -- no transpose op.
    scores = jax.lax.dot_general(
        q, k, (((1,), (1,)), ((), ())),
        preferred_element_type=jnp.float32)          # (TQ, S) f32

    L = lens_ref[b]
    row = qi * TQ + jax.lax.broadcasted_iota(jnp.int32, (TQ, S), 0)
    col = jax.lax.broadcasted_iota(jnp.int32, (TQ, S), 1)
    valid = (col <= row) & (col < L)
    scores = jnp.where(valid, scores, MASK_VALUE)

    m = jnp.max(scores, axis=-1, keepdims=True)
    p = jnp.exp(scores - m)
    denom = jnp.sum(p, axis=-1, keepdims=True)
    attn = (p * pl.reciprocal(denom)).astype(jnp.bfloat16)   # exact recip

    o_ref[0, 0] = jnp.dot(attn, v,
                          preferred_element_type=jnp.float32
                          ).astype(o_ref.dtype)


# ---------------------------------------------------------------------------
# Kernel 3: output projection + residual add, tiled over (rows, out cols).
# ---------------------------------------------------------------------------
def out_proj_kernel(res_ref, ctx_ref, w_ref, b_ref, o_ref):
    o_ref[...] = (res_ref[...]
                  + jnp.dot(ctx_ref[...], w_ref[...],
                            preferred_element_type=jnp.float32)
                  + b_ref[...])


# ---------------------------------------------------------------------------
# Kernel 4: final LayerNorm + FFN (fc1 -> relu -> fc2) + residual add.
#   grid = (row tiles, ffn-dim tiles); fc2 accumulated in f32 VMEM scratch.
# ---------------------------------------------------------------------------
def ffn_kernel(x_ref, g_ref, b_ref, w1_ref, b1_ref, w2_ref, b2_ref,
               o_ref, h_scratch, acc_ref):
    j = pl.program_id(1)

    @pl.when(j == 0)
    def _():
        h_scratch[...] = _layernorm(
            x_ref[...], g_ref[...], b_ref[...]).astype(jnp.bfloat16)
        acc_ref[...] = jnp.zeros_like(acc_ref)

    t = jnp.dot(h_scratch[...], w1_ref[...],
                preferred_element_type=jnp.float32) + b1_ref[...]
    t = jnp.maximum(t, 0.0)                          # relu (OPT default act)
    acc_ref[...] += jnp.dot(t.astype(jnp.bfloat16), w2_ref[...],
                            preferred_element_type=jnp.float32)

    @pl.when(j == pl.num_programs(1) - 1)
    def _():
        # residual add + fc2 bias (once); dropout is identity in eval mode.
        o_ref[...] = x_ref[...] + acc_ref[...] + b2_ref[...]


# ---------------------------------------------------------------------------
# Tiling / device configuration helpers
# ---------------------------------------------------------------------------
def _fit_tile(total, target, quantum):
    """Largest tile <= target that divides `total` and is a multiple of
    `quantum`; falls back to the full extent."""
    if total <= target:
        return total
    t = (min(target, total) // quantum) * quantum
    while t >= quantum:
        if total % t == 0:
            return t
        t -= quantum
    return total


def _device_config():
    """Per-generation tile targets.  Conservative (v7x-style) fallback if the
    hardware query is unavailable."""
    vmem_bytes = 64 << 20
    try:
        info = pltpu.get_tpu_info()
        vmem_bytes = int(getattr(info, "vmem_capacity_bytes", vmem_bytes))
    except Exception:
        pass
    if vmem_bytes <= (64 << 20):          # v7x-class: 64 MiB VMEM per TC
        return dict(q_tile=256, qkv_col_tile=512, out_col_tile=512,
                    ffn_row_tile=512, ffn_col_tile=256,
                    vmem_limit=48 << 20)
    # v5e / v6e: 128 MiB physical VMEM -> bigger tiles, fewer grid steps.
    return dict(q_tile=512, qkv_col_tile=1024, out_col_tile=1024,
                ffn_row_tile=1024, ffn_col_tile=512,
                vmem_limit=100 << 20)


# ---------------------------------------------------------------------------
# Parameter preparation (pre-transpose to [in, out], fuse QKV, fold q-scale,
# cast matmul weights to bf16; biases / LN params stay f32).
# ---------------------------------------------------------------------------
def prepare_params(raw, num_heads):
    D = raw["q_w"].shape[0]
    head_dim = D // num_heads
    scale = head_dim ** -0.5
    wqkv = jnp.concatenate(
        [(raw["q_w"] * scale).T, raw["k_w"].T, raw["v_w"].T], axis=1)
    bqkv = jnp.concatenate(
        [raw["q_b"] * scale, raw["k_b"], raw["v_b"]], axis=1)
    return {
        "attn_ln_g": raw["attn_ln_g"].astype(jnp.float32),
        "attn_ln_b": raw["attn_ln_b"].astype(jnp.float32),
        "wqkv": wqkv.astype(jnp.bfloat16),             # (D, 3D)
        "bqkv": bqkv.astype(jnp.float32),              # (1, 3D)
        "wo": raw["o_w"].T.astype(jnp.bfloat16),       # (D, D)
        "bo": raw["o_b"].astype(jnp.float32),          # (1, D)
        "final_ln_g": raw["final_ln_g"].astype(jnp.float32),
        "final_ln_b": raw["final_ln_b"].astype(jnp.float32),
        "w1": raw["fc1_w"].T.astype(jnp.bfloat16),     # (D, F)
        "b1": raw["fc1_b"].astype(jnp.float32),        # (1, F)
        "w2": raw["fc2_w"].T.astype(jnp.bfloat16),     # (F, D)
        "b2": raw["fc2_b"].astype(jnp.float32),        # (1, D)
    }


# ---------------------------------------------------------------------------
# Layer implementation
# ---------------------------------------------------------------------------
@functools.partial(
    jax.jit,
    static_argnames=("num_heads", "q_tile", "qkv_col_tile", "out_col_tile",
                     "ffn_row_tile", "ffn_col_tile", "vmem_limit"))
def _layer_impl(hidden_states, seq_lens, params, *, num_heads, q_tile,
                qkv_col_tile, out_col_tile, ffn_row_tile, ffn_col_tile,
                vmem_limit):
    B, S, D = hidden_states.shape
    hd = D // num_heads
    F = params["w1"].shape[1]
    N = B * S

    x = hidden_states.reshape(N, D).astype(jnp.float32)

    TM = _fit_tile(N, ffn_row_tile, 16)          # row tile (shared)
    TQK = _fit_tile(3 * D, qkv_col_tile, 128)    # qkv output-col tile
    TQ = _fit_tile(S, q_tile, 16)                # attention Q-row tile
    TO = _fit_tile(D, out_col_tile, 128)         # out-proj col tile
    TF = _fit_tile(F, ffn_col_tile, 128)         # ffn hidden-col tile

    def cp(sem):
        return pltpu.CompilerParams(dimension_semantics=sem,
                                    vmem_limit_bytes=vmem_limit)

    # ---- 1) attention LayerNorm + fused QKV projection -------------------
    qkv = pl.pallas_call(
        ln_proj_kernel,
        out_shape=jax.ShapeDtypeStruct((N, 3 * D), jnp.bfloat16),
        grid=(N // TM, (3 * D) // TQK),
        in_specs=[
            pl.BlockSpec((TM, D), lambda i, j: (i, 0)),     # x (residual rows)
            pl.BlockSpec((1, D), lambda i, j: (0, 0)),      # LN gamma
            pl.BlockSpec((1, D), lambda i, j: (0, 0)),      # LN beta
            pl.BlockSpec((D, TQK), lambda i, j: (0, j)),    # Wqkv col tile
            pl.BlockSpec((1, TQK), lambda i, j: (0, j)),    # bqkv col tile
        ],
        out_specs=pl.BlockSpec((TM, TQK), lambda i, j: (i, j)),
        scratch_shapes=[pltpu.VMEM((TM, D), jnp.bfloat16)],  # LN(x) bf16
        compiler_params=cp(("parallel", "arbitrary")),
    )(x, params["attn_ln_g"], params["attn_ln_b"],
      params["wqkv"], params["bqkv"])

    # (N, 3D) -> per-head lane-aligned (B, H, S, hd) layouts (one-time XLA
    # relayout of the bf16 qkv slab).
    qkv = qkv.reshape(B, S, 3, num_heads, hd)
    q = qkv[:, :, 0].transpose(0, 2, 1, 3)
    k = qkv[:, :, 1].transpose(0, 2, 1, 3)
    v = qkv[:, :, 2].transpose(0, 2, 1, 3)

    # ---- 2) per-(batch, head, Q-tile) attention ---------------------------
    ctx = pl.pallas_call(
        attn_kernel,
        out_shape=jax.ShapeDtypeStruct((B, num_heads, S, hd), jnp.bfloat16),
        grid_spec=pltpu.PrefetchScalarGridSpec(
            num_scalar_prefetch=1,                     # seq_lens -> SMEM
            grid=(B, num_heads, S // TQ),
            in_specs=[
                pl.BlockSpec((1, 1, TQ, hd),
                             lambda b, h, i, lens: (b, h, i, 0)),   # Q tile
                pl.BlockSpec((1, 1, S, hd),
                             lambda b, h, i, lens: (b, h, 0, 0)),   # K (resident)
                pl.BlockSpec((1, 1, S, hd),
                             lambda b, h, i, lens: (b, h, 0, 0)),   # V (resident)
            ],
            out_specs=pl.BlockSpec((1, 1, TQ, hd),
                                   lambda b, h, i, lens: (b, h, i, 0)),
        ),
        compiler_params=cp(("parallel", "parallel", "parallel")),
    )(seq_lens, q, k, v)

    ctx = ctx.transpose(0, 2, 1, 3).reshape(N, D)      # combine heads (bf16)

    # ---- 3) output projection + residual add ------------------------------
    attn_out = pl.pallas_call(
        out_proj_kernel,
        out_shape=jax.ShapeDtypeStruct((N, D), jnp.float32),
        grid=(N // TM, D // TO),
        in_specs=[
            pl.BlockSpec((TM, TO), lambda i, j: (i, j)),   # residual tile
            pl.BlockSpec((TM, D), lambda i, j: (i, 0)),    # ctx rows (bf16)
            pl.BlockSpec((D, TO), lambda i, j: (0, j)),    # Wo col tile
            pl.BlockSpec((1, TO), lambda i, j: (0, j)),    # bo col tile
        ],
        out_specs=pl.BlockSpec((TM, TO), lambda i, j: (i, j)),
        compiler_params=cp(("parallel", "parallel")),
    )(x, ctx, params["wo"], params["bo"])

    # ---- 4) final LayerNorm + FFN + residual ------------------------------
    out = pl.pallas_call(
        ffn_kernel,
        out_shape=jax.ShapeDtypeStruct((N, D), jnp.float32),
        grid=(N // TM, F // TF),
        in_specs=[
            pl.BlockSpec((TM, D), lambda i, j: (i, 0)),   # rows (residual)
            pl.BlockSpec((1, D), lambda i, j: (0, 0)),    # final LN gamma
            pl.BlockSpec((1, D), lambda i, j: (0, 0)),    # final LN beta
            pl.BlockSpec((D, TF), lambda i, j: (0, j)),   # fc1 weight tile
            pl.BlockSpec((1, TF), lambda i, j: (0, j)),   # fc1 bias tile
            pl.BlockSpec((TF, D), lambda i, j: (j, 0)),   # fc2 weight tile
            pl.BlockSpec((1, D), lambda i, j: (0, 0)),    # fc2 bias
        ],
        out_specs=pl.BlockSpec((TM, D), lambda i, j: (i, 0)),
        scratch_shapes=[pltpu.VMEM((TM, D), jnp.bfloat16),   # LN(x) in bf16
                        pltpu.VMEM((TM, D), jnp.float32)],   # fc2 accumulator
        input_output_aliases={0: 0},       # residual stream reuses attn_out
        compiler_params=cp(("parallel", "arbitrary")),
    )(attn_out, params["final_ln_g"], params["final_ln_b"],
      params["w1"], params["b1"], params["w2"], params["b2"])

    return out.reshape(B, S, D)


def gaudi_opt_decoder_layer(hidden_states, seq_lens, params, num_heads,
                            q_tile=None, qkv_col_tile=None, out_col_tile=None,
                            ffn_row_tile=None, ffn_col_tile=None):
    cfg = _device_config()
    return _layer_impl(
        hidden_states, seq_lens.astype(jnp.int32), params,
        num_heads=num_heads,
        q_tile=cfg["q_tile"] if q_tile is None else q_tile,
        qkv_col_tile=cfg["qkv_col_tile"] if qkv_col_tile is None else qkv_col_tile,
        out_col_tile=cfg["out_col_tile"] if out_col_tile is None else out_col_tile,
        ffn_row_tile=cfg["ffn_row_tile"] if ffn_row_tile is None else ffn_row_tile,
        ffn_col_tile=cfg["ffn_col_tile"] if ffn_col_tile is None else ffn_col_tile,
        vmem_limit=cfg["vmem_limit"])


# ---------------------------------------------------------------------------
# Pure-JAX reference (same prepared params & bf16 matmul inputs / f32 accum,
# so it reflects the kernel's numerics)
# ---------------------------------------------------------------------------
def reference_layer(hidden_states, seq_lens, params, num_heads):
    B, S, D = hidden_states.shape
    hd = D // num_heads
    bf16, f32 = jnp.bfloat16, jnp.float32

    def ln(v, g, b):
        mu = jnp.mean(v, -1, keepdims=True)
        var = jnp.mean((v - mu) ** 2, -1, keepdims=True)
        return (v - mu) * jax.lax.rsqrt(var + LN_EPS) * g + b

    causal = jnp.arange(S)[:, None] >= jnp.arange(S)[None, :]       # (S,S)
    keyvalid = jnp.arange(S)[None, :] < seq_lens[:, None]           # (B,S)
    valid = causal[None, None, :, :] & keyvalid[:, None, None, :]   # (B,1,S,S)

    residual = hidden_states.astype(f32)
    h = ln(residual, params["attn_ln_g"], params["attn_ln_b"]).astype(bf16)
    qkv = (jnp.dot(h, params["wqkv"], preferred_element_type=f32)
           + params["bqkv"]).astype(bf16)
    qkv = qkv.reshape(B, S, 3, num_heads, hd)
    q = qkv[:, :, 0].transpose(0, 2, 1, 3)
    k = qkv[:, :, 1].transpose(0, 2, 1, 3)
    v = qkv[:, :, 2].transpose(0, 2, 1, 3)

    scores = jnp.einsum("bhqd,bhkd->bhqk", q, k, preferred_element_type=f32)
    scores = jnp.where(valid, scores, MASK_VALUE)
    attn = jax.nn.softmax(scores, axis=-1).astype(bf16)
    ctx = jnp.einsum("bhqk,bhkd->bhqd", attn, v,
                     preferred_element_type=f32).astype(bf16)
    ctx = ctx.transpose(0, 2, 1, 3).reshape(B * S, D)

    res2 = residual.reshape(B * S, D)
    h = res2 + jnp.dot(ctx, params["wo"],
                       preferred_element_type=f32) + params["bo"]

    g2 = ln(h, params["final_ln_g"], params["final_ln_b"]).astype(bf16)
    t = jnp.dot(g2, params["w1"], preferred_element_type=f32) + params["b1"]
    t = jnp.maximum(t, 0.0).astype(bf16)
    t = jnp.dot(t, params["w2"], preferred_element_type=f32) + params["b2"]
    return (h + t).reshape(B, S, D)


# ---------------------------------------------------------------------------
if __name__ == "__main__":
    B, S, D = 2, 64, 128
    NUM_HEADS = 4
    FFN = 512

    key = jax.random.PRNGKey(0)
    keys = jax.random.split(key, 20)

    def w(k, shape, scale=0.02):
        return (scale * jax.random.normal(k, shape)).astype(jnp.float32)

    raw = {
        "attn_ln_g": 1.0 + w(keys[13], (1, D), 0.1),
        "attn_ln_b": w(keys[14], (1, D), 0.1),
        "q_w": w(keys[0], (D, D)), "q_b": w(keys[1], (1, D)),
        "k_w": w(keys[2], (D, D)), "k_b": w(keys[3], (1, D)),
        "v_w": w(keys[4], (D, D)), "v_b": w(keys[5], (1, D)),
        "o_w": w(keys[6], (D, D)), "o_b": w(keys[7], (1, D)),
        "final_ln_g": 1.0 + w(keys[15], (1, D), 0.1),
        "final_ln_b": w(keys[16], (1, D), 0.1),
        "fc1_w": w(keys[8], (FFN, D)), "fc1_b": w(keys[9], (1, FFN)),
        "fc2_w": w(keys[10], (D, FFN)), "fc2_b": w(keys[11], (1, D)),
    }
    params = prepare_params(raw, NUM_HEADS)

    hidden_states = jax.random.normal(keys[12], (B, S, D), jnp.float32)
    # per-batch valid lengths (second sequence right-padded by 5 tokens)
    seq_lens = jnp.array([S, S - 5], dtype=jnp.int32)

    # Small tile overrides so the demo shapes exercise every grid axis.
    out = gaudi_opt_decoder_layer(hidden_states, seq_lens, params,
                                  num_heads=NUM_HEADS,
                                  q_tile=32, qkv_col_tile=128,
                                  out_col_tile=128,
                                  ffn_row_tile=64, ffn_col_tile=256)
    out = jax.block_until_ready(out)

    ref = reference_layer(hidden_states, seq_lens, params, NUM_HEADS)
    assert out.shape == (B, S, D)
    assert jnp.allclose(out, ref, atol=1e-2, rtol=1e-2), "mismatch vs reference"

    print("KERNEL_OK")
</pallas_src>

<mosaic_0001>
module attributes {stable_mosaic.version = 11 : i64} {
  func.func @ln_proj_kernel(%arg0: i32, %arg1: i32, %arg2: memref<64x128xf32, #tpu.memory_space<vmem>>, %arg3: memref<1x128xf32, #tpu.memory_space<vmem>>, %arg4: memref<1x128xf32, #tpu.memory_space<vmem>>, %arg5: memref<128x128xbf16, #tpu.memory_space<vmem>>, %arg6: memref<1x128xf32, #tpu.memory_space<vmem>>, %arg7: memref<64x128xbf16, #tpu.memory_space<vmem>>, %arg8: memref<64x128xbf16, #tpu.memory_space<vmem>>) attributes {dimension_semantics = [#tpu.dimension_semantics<parallel>, #tpu.dimension_semantics<arbitrary>], iteration_bounds = array<i64: 2, 3>, scalar_prefetch = 0 : i64, scratch_operands = 1 : i64, tpu.core_type = #tpu.core_type<tc>, window_params = [{transform_indices = @transform_0, window_bounds = array<i64: 64, 128>}, {pipeline_mode = #tpu.pipeline_mode<synchronous>, transform_indices = @transform_1, window_bounds = array<i64: 1, 128>}, {pipeline_mode = #tpu.pipeline_mode<synchronous>, transform_indices = @transform_2, window_bounds = array<i64: 1, 128>}, {transform_indices = @transform_3, window_bounds = array<i64: 128, 128>}, {transform_indices = @transform_4, window_bounds = array<i64: 1, 128>}, {transform_indices = @transform_5, window_bounds = array<i64: 64, 128>}]} {
    %c0_i32 = arith.constant 0 : i32
    %0 = arith.cmpi eq, %arg1, %c0_i32 : i32
    %1 = arith.extui %0 : i1 to i32
    %c0_i32_0 = arith.constant 0 : i32
    %2 = arith.cmpi ne, %1, %c0_i32_0 : i32
    scf.if %2 {
      %c0_8 = arith.constant 0 : index
      %c0_9 = arith.constant 0 : index
      %11 = vector.load %arg2[%c0_8, %c0_9] : memref<64x128xf32, #tpu.memory_space<vmem>>, vector<64x128xf32>
      %c0_10 = arith.constant 0 : index
      %c0_11 = arith.constant 0 : index
      %12 = vector.load %arg3[%c0_10, %c0_11] : memref<1x128xf32, #tpu.memory_space<vmem>>, vector<1x128xf32>
      %c0_12 = arith.constant 0 : index
      %c0_13 = arith.constant 0 : index
      %13 = vector.load %arg4[%c0_12, %c0_13] : memref<1x128xf32, #tpu.memory_space<vmem>>, vector<1x128xf32>
      %cst_14 = arith.constant dense<0.000000e+00> : vector<64xf32>
      %14 = vector.multi_reduction <add>, %11, %cst_14 [1] : vector<64x128xf32> to vector<64xf32>
      %15 = vector.shape_cast %14 : vector<64xf32> to vector<64x1xf32>
      %cst_15 = arith.constant 1.280000e+02 : f32
      %16 = vector.broadcast %cst_15 : f32 to vector<64x1xf32>
      %17 = arith.divf %15, %16 : vector<64x1xf32>
      %18 = vector.broadcast %17 : vector<64x1xf32> to vector<64x128xf32>
      %19 = arith.subf %11, %18 : vector<64x128xf32>
      %20 = arith.mulf %19, %19 : vector<64x128xf32>
      %cst_16 = arith.constant dense<0.000000e+00> : vector<64xf32>
      %21 = vector.multi_reduction <add>, %20, %cst_16 [1] : vector<64x128xf32> to vector<64xf32>
      %22 = vector.shape_cast %21 : vector<64xf32> to vector<64x1xf32>
      %cst_17 = arith.constant 1.280000e+02 : f32
      %23 = vector.broadcast %cst_17 : f32 to vector<64x1xf32>
      %24 = arith.divf %22, %23 : vector<64x1xf32>
      %25 = vector.broadcast %17 : vector<64x1xf32> to vector<64x128xf32>
      %26 = arith.subf %11, %25 : vector<64x128xf32>
      %cst_18 = arith.constant 9.99999974E-6 : f32
      %27 = vector.broadcast %cst_18 : f32 to vector<64x1xf32>
      %28 = arith.addf %24, %27 : vector<64x1xf32>
      %29 = math.rsqrt %28 : vector<64x1xf32>
      %30 = vector.broadcast %29 : vector<64x1xf32> to vector<64x128xf32>
      %31 = arith.mulf %26, %30 : vector<64x128xf32>
      %32 = vector.broadcast %12 : vector<1x128xf32> to vector<64x128xf32>
      %33 = arith.mulf %31, %32 : vector<64x128xf32>
      %34 = vector.broadcast %13 : vector<1x128xf32> to vector<64x128xf32>
      %35 = arith.addf %33, %34 : vector<64x128xf32>
      %36 = arith.truncf %35 : vector<64x128xf32> to vector<64x128xbf16>
      %c0_19 = arith.constant 0 : index
      %c0_20 = arith.constant 0 : index
      %37 = vector.load %arg8[%c0_19, %c0_20] : memref<64x128xbf16, #tpu.memory_space<vmem>>, vector<64x128xbf16>
      tpu.vector_store %arg8[%c0_19, %c0_20], %36 {strides = array<i32>} : memref<64x128xbf16, #tpu.memory_space<vmem>>, vector<64x128xbf16>,
    } else {
    }
    %c0 = arith.constant 0 : index
    %c0_1 = arith.constant 0 : index
    %3 = vector.load %arg8[%c0, %c0_1] : memref<64x128xbf16, #tpu.memory_space<vmem>>, vector<64x128xbf16>
    %c0_2 = arith.constant 0 : index
    %c0_3 = arith.constant 0 : index
    %4 = vector.load %arg5[%c0_2, %c0_3] : memref<128x128xbf16, #tpu.memory_space<vmem>>, vector<128x128xbf16>
    %cst = arith.constant dense<0.000000e+00> : vector<64x128xf32>
    %5 = tpu.matmul %3, %4, %cst {dimension_numbers = #tpu.dot_dimension_numbers<[1], [0], [0], [1], [0, 0, 1, 1], [], []>} : vector<64x128xbf16>, vector<128x128xbf16>, vector<64x128xf32> -> vector<64x128xf32>
    %c0_4 = arith.constant 0 : index
    %c0_5 = arith.constant 0 : index
    %6 = vector.load %arg6[%c0_4, %c0_5] : memref<1x128xf32, #tpu.memory_space<vmem>>, vector<1x128xf32>
    %7 = vector.broadcast %6 : vector<1x128xf32> to vector<64x128xf32>
    %8 = arith.addf %5, %7 : vector<64x128xf32>
    %9 = arith.truncf %8 : vector<64x128xf32> to vector<64x128xbf16>
    %c0_6 = arith.constant 0 : index
    %c0_7 = arith.constant 0 : index
    %10 = vector.load %arg7[%c0_6, %c0_7] : memref<64x128xbf16, #tpu.memory_space<vmem>>, vector<64x128xbf16>
    tpu.vector_store %arg7[%c0_6, %c0_7], %9 {strides = array<i32>} : memref<64x128xbf16, #tpu.memory_space<vmem>>, vector<64x128xbf16>,
    return
  }
  func.func @transform_0(%arg0: i32, %arg1: i32) -> (i32, i32) {
    %c0_i32 = arith.constant 0 : i32
    %c0_i32_0 = arith.constant 0 : i32
    return %arg0, %c0_i32 : i32, i32
  }
  func.func @transform_1(%arg0: i32, %arg1: i32) -> (i32, i32) {
    %c0_i32 = arith.constant 0 : i32
    %c0_i32_0 = arith.constant 0 : i32
    %c0_i32_1 = arith.constant 0 : i32
    return %c0_i32, %c0_i32_0 : i32, i32
  }
  func.func @transform_2(%arg0: i32, %arg1: i32) -> (i32, i32) {
    %c0_i32 = arith.constant 0 : i32
    %c0_i32_0 = arith.constant 0 : i32
    %c0_i32_1 = arith.constant 0 : i32
    return %c0_i32, %c0_i32_0 : i32, i32
  }
  func.func @transform_3(%arg0: i32, %arg1: i32) -> (i32, i32) {
    %c0_i32 = arith.constant 0 : i32
    %c0_i32_0 = arith.constant 0 : i32
    return %c0_i32, %arg1 : i32, i32
  }
  func.func @transform_4(%arg0: i32, %arg1: i32) -> (i32, i32) {
    %c0_i32 = arith.constant 0 : i32
    %c0_i32_0 = arith.constant 0 : i32
    return %c0_i32, %arg1 : i32, i32
  }
  func.func @transform_5(%arg0: i32, %arg1: i32) -> (i32, i32) {
    %c0_i32 = arith.constant 0 : i32
    return %arg0, %arg1 : i32, i32
  }
}

module attributes {stable_mosaic.version = 11 : i64} {
  func.func @attn_kernel(%arg0: i32, %arg1: i32, %arg2: i32, %arg3: memref<2xi32, #tpu.memory_space<smem>>, %arg4: memref<1x1x32x32xbf16, #tpu.memory_space<vmem>>, %arg5: memref<1x1x64x32xbf16, #tpu.memory_space<vmem>>, %arg6: memref<1x1x64x32xbf16, #tpu.memory_space<vmem>>, %arg7: memref<1x1x32x32xbf16, #tpu.memory_space<vmem>>) attributes {dimension_semantics = [#tpu.dimension_semantics<parallel>, #tpu.dimension_semantics<parallel>, #tpu.dimension_semantics<parallel>], iteration_bounds = array<i64: 2, 4, 2>, scalar_prefetch = 1 : i64, scratch_operands = 0 : i64, tpu.core_type = #tpu.core_type<tc>, window_params = [{transform_indices = @transform_0, window_bounds = array<i64: 1, 1, 32, 32>}, {transform_indices = @transform_1, window_bounds = array<i64: 1, 1, 64, 32>}, {transform_indices = @transform_2, window_bounds = array<i64: 1, 1, 64, 32>}, {transform_indices = @transform_3, window_bounds = array<i64: 1, 1, 32, 32>}]} {
    %c0 = arith.constant 0 : index
    %c0_0 = arith.constant 0 : index
    %c0_1 = arith.constant 0 : index
    %c0_2 = arith.constant 0 : index
    %0 = vector.load %arg4[%c0, %c0_0, %c0_1, %c0_2] : memref<1x1x32x32xbf16, #tpu.memory_space<vmem>>, vector<1x1x32x32xbf16>
    %1 = vector.shape_cast %0 : vector<1x1x32x32xbf16> to vector<32x32xbf16>
    %c0_3 = arith.constant 0 : index
    %c0_4 = arith.constant 0 : index
    %c0_5 = arith.constant 0 : index
    %c0_6 = arith.constant 0 : index
    %2 = vector.load %arg5[%c0_3, %c0_4, %c0_5, %c0_6] : memref<1x1x64x32xbf16, #tpu.memory_space<vmem>>, vector<1x1x64x32xbf16>
    %3 = vector.shape_cast %2 : vector<1x1x64x32xbf16> to vector<64x32xbf16>
    %c0_7 = arith.constant 0 : index
    %c0_8 = arith.constant 0 : index
    %c0_9 = arith.constant 0 : index
    %c0_10 = arith.constant 0 : index
    %4 = vector.load %arg6[%c0_7, %c0_8, %c0_9, %c0_10] : memref<1x1x64x32xbf16, #tpu.memory_space<vmem>>, vector<1x1x64x32xbf16>
    %5 = vector.shape_cast %4 : vector<1x1x64x32xbf16> to vector<64x32xbf16>
    %cst = arith.constant dense<0.000000e+00> : vector<32x64xf32>
    %6 = tpu.matmul %1, %3, %cst {dimension_numbers = #tpu.dot_dimension_numbers<[1], [1], [0], [0], [0, 0, 1, 0], [], []>} : vector<32x32xbf16>, vector<64x32xbf16>, vector<32x64xf32> -> vector<32x64xf32>
    %7 = arith.index_cast %arg0 : i32 to index
    %8 = memref.load %arg3[%7] : memref<2xi32, #tpu.memory_space<smem>>
    %c32_i32 = arith.constant 32 : i32
    %9 = arith.muli %arg2, %c32_i32 : i32
    %10 = tpu.iota {dimensions = array<i32: 0>} : vector<32x64xi32>
    %11 = vector.broadcast %9 : i32 to vector<32x64xi32>
    %12 = arith.addi %11, %10 : vector<32x64xi32>
    %13 = tpu.iota {dimensions = array<i32: 1>} : vector<32x64xi32>
    %14 = arith.cmpi sle, %13, %12 : vector<32x64xi32>
    %15 = vector.broadcast %8 : i32 to vector<32x64xi32>
    %16 = arith.cmpi slt, %13, %15 : vector<32x64xi32>
    %17 = arith.andi %14, %16 : vector<32x64xi1>
    %cst_11 = arith.constant -1.000000e+09 : f32
    %18 = vector.broadcast %cst_11 : f32 to vector<32x64xf32>
    %19 = arith.select %17, %6, %18 : vector<32x64xi1>, vector<32x64xf32>
    %cst_12 = arith.constant dense<0xFF800000> : vector<32xf32>
    %20 = vector.multi_reduction <maximumf>, %19, %cst_12 [1] : vector<32x64xf32> to vector<32xf32>
    %21 = vector.shape_cast %20 : vector<32xf32> to vector<32x1xf32>
    %22 = vector.broadcast %21 : vector<32x1xf32> to vector<32x64xf32>
    %23 = arith.subf %19, %22 : vector<32x64xf32>
    %24 = math.exp %23 : vector<32x64xf32>
    %cst_13 = arith.constant dense<0.000000e+00> : vector<32xf32>
    %25 = vector.multi_reduction <add>, %24, %cst_13 [1] : vector<32x64xf32> to vector<32xf32>
    %26 = vector.shape_cast %25 : vector<32xf32> to vector<32x1xf32>
    %27 = tpu.reciprocal %26 : vector<32x1xf32> -> vector<32x1xf32>
    %28 = vector.broadcast %27 : vector<32x1xf32> to vector<32x64xf32>
    %29 = arith.mulf %24, %28 : vector<32x64xf32>
    %30 = arith.truncf %29 : vector<32x64xf32> to vector<32x64xbf16>
    %cst_14 = arith.constant dense<0.000000e+00> : vector<32x32xf32>
    %31 = tpu.matmul %30, %5, %cst_14 {dimension_numbers = #tpu.dot_dimension_numbers<[1], [0], [0], [1], [0, 0, 1, 1], [], []>} : vector<32x64xbf16>, vector<64x32xbf16>, vector<32x32xf32> -> vector<32x32xf32>
    %32 = arith.truncf %31 : vector<32x32xf32> to vector<32x32xbf16>
    %c0_15 = arith.constant 0 : index
    %c0_16 = arith.constant 0 : index
    %c0_17 = arith.constant 0 : index
    %c0_18 = arith.constant 0 : index
    %33 = vector.load %arg7[%c0_15, %c0_16, %c0_17, %c0_18] : memref<1x1x32x32xbf16, #tpu.memory_space<vmem>>, vector<1x1x32x32xbf16>
    %34 = vector.shape_cast %33 : vector<1x1x32x32xbf16> to vector<32x32xbf16>
    %35 = vector.shape_cast %32 : vector<32x32xbf16> to vector<1x1x32x32xbf16>
    tpu.vector_store %arg7[%c0_15, %c0_16, %c0_17, %c0_18], %35 {strides = array<i32>} : memref<1x1x32x32xbf16, #tpu.memory_space<vmem>>, vector<1x1x32x32xbf16>,
    return
  }
  func.func @transform_0(%arg0: i32, %arg1: i32, %arg2: i32, %arg3: memref<2xi32, #tpu.memory_space<smem>>) -> (i32, i32, i32, i32) {
    %c0_i32 = arith.constant 0 : i32
    %c0_i32_0 = arith.constant 0 : i32
    return %arg0, %arg1, %arg2, %c0_i32 : i32, i32, i32, i32
  }
  func.func @transform_1(%arg0: i32, %arg1: i32, %arg2: i32, %arg3: memref<2xi32, #tpu.memory_space<smem>>) -> (i32, i32, i32, i32) {
    %c0_i32 = arith.constant 0 : i32
    %c0_i32_0 = arith.constant 0 : i32
    %c0_i32_1 = arith.constant 0 : i32
    return %arg0, %arg1, %c0_i32, %c0_i32_0 : i32, i32, i32, i32
  }
  func.func @transform_2(%arg0: i32, %arg1: i32, %arg2: i32, %arg3: memref<2xi32, #tpu.memory_space<smem>>) -> (i32, i32, i32, i32) {
    %c0_i32 = arith.constant 0 : i32
    %c0_i32_0 = arith.constant 0 : i32
    %c0_i32_1 = arith.constant 0 : i32
    return %arg0, %arg1, %c0_i32, %c0_i32_0 : i32, i32, i32, i32
  }
  func.func @transform_3(%arg0: i32, %arg1: i32, %arg2: i32, %arg3: memref<2xi32, #tpu.memory_space<smem>>) -> (i32, i32, i32, i32) {
    %c0_i32 = arith.constant 0 : i32
    %c0_i32_0 = arith.constant 0 : i32
    return %arg0, %arg1, %arg2, %c0_i32 : i32, i32, i32, i32
  }
}

module attributes {stable_mosaic.version = 11 : i64} {
  func.func @out_proj_kernel(%arg0: i32, %arg1: i32, %arg2: memref<64x128xf32, #tpu.memory_space<vmem>>, %arg3: memref<64x128xbf16, #tpu.memory_space<vmem>>, %arg4: memref<128x128xbf16, #tpu.memory_space<vmem>>, %arg5: memref<1x128xf32, #tpu.memory_space<vmem>>, %arg6: memref<64x128xf32, #tpu.memory_space<vmem>>) attributes {dimension_semantics = [#tpu.dimension_semantics<parallel>, #tpu.dimension_semantics<parallel>], iteration_bounds = array<i64: 2, 1>, scalar_prefetch = 0 : i64, scratch_operands = 0 : i64, tpu.core_type = #tpu.core_type<tc>, window_params = [{transform_indices = @transform_0, window_bounds = array<i64: 64, 128>}, {transform_indices = @transform_1, window_bounds = array<i64: 64, 128>}, {transform_indices = @transform_2, window_bounds = array<i64: 128, 128>}, {transform_indices = @transform_3, window_bounds = array<i64: 1, 128>}, {transform_indices = @transform_4, window_bounds = array<i64: 64, 128>}]} {
    %c0 = arith.constant 0 : index
    %c0_0 = arith.constant 0 : index
    %0 = vector.load %arg2[%c0, %c0_0] : memref<64x128xf32, #tpu.memory_space<vmem>>, vector<64x128xf32>
    %c0_1 = arith.constant 0 : index
    %c0_2 = arith.constant 0 : index
    %1 = vector.load %arg3[%c0_1, %c0_2] : memref<64x128xbf16, #tpu.memory_space<vmem>>, vector<64x128xbf16>
    %c0_3 = arith.constant 0 : index
    %c0_4 = arith.constant 0 : index
    %2 = vector.load %arg4[%c0_3, %c0_4] : memref<128x128xbf16, #tpu.memory_space<vmem>>, vector<128x128xbf16>
    %cst = arith.constant dense<0.000000e+00> : vector<64x128xf32>
    %3 = tpu.matmul %1, %2, %cst {dimension_numbers = #tpu.dot_dimension_numbers<[1], [0], [0], [1], [0, 0, 1, 1], [], []>} : vector<64x128xbf16>, vector<128x128xbf16>, vector<64x128xf32> -> vector<64x128xf32>
    %4 = arith.addf %0, %3 : vector<64x128xf32>
    %c0_5 = arith.constant 0 : index
    %c0_6 = arith.constant 0 : index
    %5 = vector.load %arg5[%c0_5, %c0_6] : memref<1x128xf32, #tpu.memory_space<vmem>>, vector<1x128xf32>
    %6 = vector.broadcast %5 : vector<1x128xf32> to vector<64x128xf32>
    %7 = arith.addf %4, %6 : vector<64x128xf32>
    %c0_7 = arith.constant 0 : index
    %c0_8 = arith.constant 0 : index
    %8 = vector.load %arg6[%c0_7, %c0_8] : memref<64x128xf32, #tpu.memory_space<vmem>>, vector<64x128xf32>
    tpu.vector_store %arg6[%c0_7, %c0_8], %7 {strides = array<i32>} : memref<64x128xf32, #tpu.memory_space<vmem>>, vector<64x128xf32>,
    return
  }
  func.func @transform_0(%arg0: i32, %arg1: i32) -> (i32, i32) {
    %c0_i32 = arith.constant 0 : i32
    return %arg0, %arg1 : i32, i32
  }
  func.func @transform_1(%arg0: i32, %arg1: i32) -> (i32, i32) {
    %c0_i32 = arith.constant 0 : i32
    %c0_i32_0 = arith.constant 0 : i32
    return %arg0, %c0_i32 : i32, i32
  }
  func.func @transform_2(%arg0: i32, %arg1: i32) -> (i32, i32) {
    %c0_i32 = arith.constant 0 : i32
    %c0_i32_0 = arith.constant 0 : i32
    return %c0_i32, %arg1 : i32, i32
  }
  func.func @transform_3(%arg0: i32, %arg1: i32) -> (i32, i32) {
    %c0_i32 = arith.constant 0 : i32
    %c0_i32_0 = arith.constant 0 : i32
    return %c0_i32, %arg1 : i32, i32
  }
  func.func @transform_4(%arg0: i32, %arg1: i32) -> (i32, i32) {
    %c0_i32 = arith.constant 0 : i32
    return %arg0, %arg1 : i32, i32
  }
}

module attributes {stable_mosaic.version = 11 : i64} {
  func.func @ffn_kernel(%arg0: i32, %arg1: i32, %arg2: memref<64x128xf32, #tpu.memory_space<vmem>>, %arg3: memref<1x128xf32, #tpu.memory_space<vmem>>, %arg4: memref<1x128xf32, #tpu.memory_space<vmem>>, %arg5: memref<128x256xbf16, #tpu.memory_space<vmem>>, %arg6: memref<1x256xf32, #tpu.memory_space<vmem>>, %arg7: memref<256x128xbf16, #tpu.memory_space<vmem>>, %arg8: memref<1x128xf32, #tpu.memory_space<vmem>>, %arg9: memref<64x128xf32, #tpu.memory_space<vmem>>, %arg10: memref<64x128xbf16, #tpu.memory_space<vmem>>, %arg11: memref<64x128xf32, #tpu.memory_space<vmem>>) attributes {dimension_semantics = [#tpu.dimension_semantics<parallel>, #tpu.dimension_semantics<arbitrary>], iteration_bounds = array<i64: 2, 2>, scalar_prefetch = 0 : i64, scratch_operands = 2 : i64, tpu.core_type = #tpu.core_type<tc>, window_params = [{transform_indices = @transform_0, window_bounds = array<i64: 64, 128>}, {pipeline_mode = #tpu.pipeline_mode<synchronous>, transform_indices = @transform_1, window_bounds = array<i64: 1, 128>}, {pipeline_mode = #tpu.pipeline_mode<synchronous>, transform_indices = @transform_2, window_bounds = array<i64: 1, 128>}, {transform_indices = @transform_3, window_bounds = array<i64: 128, 256>}, {transform_indices = @transform_4, window_bounds = array<i64: 1, 256>}, {transform_indices = @transform_5, window_bounds = array<i64: 256, 128>}, {pipeline_mode = #tpu.pipeline_mode<synchronous>, transform_indices = @transform_6, window_bounds = array<i64: 1, 128>}, {transform_indices = @transform_7, window_bounds = array<i64: 64, 128>}]} {
    %c0_i32 = arith.constant 0 : i32
    %0 = arith.cmpi eq, %arg1, %c0_i32 : i32
    %1 = arith.extui %0 : i1 to i32
    %c0_i32_0 = arith.constant 0 : i32
    %2 = arith.cmpi ne, %1, %c0_i32_0 : i32
    scf.if %2 {
      %c0_15 = arith.constant 0 : index
      %c0_16 = arith.constant 0 : index
      %20 = vector.load %arg2[%c0_15, %c0_16] : memref<64x128xf32, #tpu.memory_space<vmem>>, vector<64x128xf32>
      %c0_17 = arith.constant 0 : index
      %c0_18 = arith.constant 0 : index
      %21 = vector.load %arg3[%c0_17, %c0_18] : memref<1x128xf32, #tpu.memory_space<vmem>>, vector<1x128xf32>
      %c0_19 = arith.constant 0 : index
      %c0_20 = arith.constant 0 : index
      %22 = vector.load %arg4[%c0_19, %c0_20] : memref<1x128xf32, #tpu.memory_space<vmem>>, vector<1x128xf32>
      %cst_21 = arith.constant dense<0.000000e+00> : vector<64xf32>
      %23 = vector.multi_reduction <add>, %20, %cst_21 [1] : vector<64x128xf32> to vector<64xf32>
      %24 = vector.shape_cast %23 : vector<64xf32> to vector<64x1xf32>
      %cst_22 = arith.constant 1.280000e+02 : f32
      %25 = vector.broadcast %cst_22 : f32 to vector<64x1xf32>
      %26 = arith.divf %24, %25 : vector<64x1xf32>
      %27 = vector.broadcast %26 : vector<64x1xf32> to vector<64x128xf32>
      %28 = arith.subf %20, %27 : vector<64x128xf32>
      %29 = arith.mulf %28, %28 : vector<64x128xf32>
      %cst_23 = arith.constant dense<0.000000e+00> : vector<64xf32>
      %30 = vector.multi_reduction <add>, %29, %cst_23 [1] : vector<64x128xf32> to vector<64xf32>
      %31 = vector.shape_cast %30 : vector<64xf32> to vector<64x1xf32>
      %cst_24 = arith.constant 1.280000e+02 : f32
      %32 = vector.broadcast %cst_24 : f32 to vector<64x1xf32>
      %33 = arith.divf %31, %32 : vector<64x1xf32>
      %34 = vector.broadcast %26 : vector<64x1xf32> to vector<64x128xf32>
      %35 = arith.subf %20, %34 : vector<64x128xf32>
      %cst_25 = arith.constant 9.99999974E-6 : f32
      %36 = vector.broadcast %cst_25 : f32 to vector<64x1xf32>
      %37 = arith.addf %33, %36 : vector<64x1xf32>
      %38 = math.rsqrt %37 : vector<64x1xf32>
      %39 = vector.broadcast %38 : vector<64x1xf32> to vector<64x128xf32>
      %40 = arith.mulf %35, %39 : vector<64x128xf32>
      %41 = vector.broadcast %21 : vector<1x128xf32> to vector<64x128xf32>
      %42 = arith.mulf %40, %41 : vector<64x128xf32>
      %43 = vector.broadcast %22 : vector<1x128xf32> to vector<64x128xf32>
      %44 = arith.addf %42, %43 : vector<64x128xf32>
      %45 = arith.truncf %44 : vector<64x128xf32> to vector<64x128xbf16>
      %c0_26 = arith.constant 0 : index
      %c0_27 = arith.constant 0 : index
      %46 = vector.load %arg10[%c0_26, %c0_27] : memref<64x128xbf16, #tpu.memory_space<vmem>>, vector<64x128xbf16>
      tpu.vector_store %arg10[%c0_26, %c0_27], %45 {strides = array<i32>} : memref<64x128xbf16, #tpu.memory_space<vmem>>, vector<64x128xbf16>,
      %cst_28 = arith.constant 0.000000e+00 : f32
      %47 = vector.broadcast %cst_28 : f32 to vector<64x128xf32>
      %c0_29 = arith.constant 0 : index
      %c0_30 = arith.constant 0 : index
      %48 = vector.load %arg11[%c0_29, %c0_30] : memref<64x128xf32, #tpu.memory_space<vmem>>, vector<64x128xf32>
      tpu.vector_store %arg11[%c0_29, %c0_30], %47 {strides = array<i32>} : memref<64x128xf32, #tpu.memory_space<vmem>>, vector<64x128xf32>,
    } else {
    }
    %c0 = arith.constant 0 : index
    %c0_1 = arith.constant 0 : index
    %3 = vector.load %arg10[%c0, %c0_1] : memref<64x128xbf16, #tpu.memory_space<vmem>>, vector<64x128xbf16>
    %c0_2 = arith.constant 0 : index
    %c0_3 = arith.constant 0 : index
    %4 = vector.load %arg5[%c0_2, %c0_3] : memref<128x256xbf16, #tpu.memory_space<vmem>>, vector<128x256xbf16>
    %cst = arith.constant dense<0.000000e+00> : vector<64x256xf32>
    %5 = tpu.matmul %3, %4, %cst {dimension_numbers = #tpu.dot_dimension_numbers<[1], [0], [0], [1], [0, 0, 1, 1], [], []>} : vector<64x128xbf16>, vector<128x256xbf16>, vector<64x256xf32> -> vector<64x256xf32>
    %c0_4 = arith.constant 0 : index
    %c0_5 = arith.constant 0 : index
    %6 = vector.load %arg6[%c0_4, %c0_5] : memref<1x256xf32, #tpu.memory_space<vmem>>, vector<1x256xf32>
    %7 = vector.broadcast %6 : vector<1x256xf32> to vector<64x256xf32>
    %8 = arith.addf %5, %7 : vector<64x256xf32>
    %cst_6 = arith.constant 0.000000e+00 : f32
    %9 = vector.broadcast %cst_6 : f32 to vector<64x256xf32>
    %10 = arith.maximumf %8, %9 : vector<64x256xf32>
    %c0_7 = arith.constant 0 : index
    %c0_8 = arith.constant 0 : index
    %11 = vector.load %arg11[%c0_7, %c0_8] : memref<64x128xf32, #tpu.memory_space<vmem>>, vector<64x128xf32>
    %12 = arith.truncf %10 : vector<64x256xf32> to vector<64x256xbf16>
    %c0_9 = arith.constant 0 : index
    %c0_10 = arith.constant 0 : index
    %13 = vector.load %arg7[%c0_9, %c0_10] : memref<256x128xbf16, #tpu.memory_space<vmem>>, vector<256x128xbf16>
    %cst_11 = arith.constant dense<0.000000e+00> : vector<64x128xf32>
    %14 = tpu.matmul %12, %13, %cst_11 {dimension_numbers = #tpu.dot_dimension_numbers<[1], [0], [0], [1], [0, 0, 1, 1], [], []>} : vector<64x256xbf16>, vector<256x128xbf16>, vector<64x128xf32> -> vector<64x128xf32>
    %15 = arith.addf %11, %14 : vector<64x128xf32>
    %c0_12 = arith.constant 0 : index
    %c0_13 = arith.constant 0 : index
    %16 = vector.load %arg11[%c0_12, %c0_13] : memref<64x128xf32, #tpu.memory_space<vmem>>, vector<64x128xf32>
    tpu.vector_store %arg11[%c0_12, %c0_13], %15 {strides = array<i32>} : memref<64x128xf32, #tpu.memory_space<vmem>>, vector<64x128xf32>,
    %c1_i32 = arith.constant 1 : i32
    %17 = arith.cmpi eq, %arg1, %c1_i32 : i32
    %18 = arith.extui %17 : i1 to i32
    %c0_i32_14 = arith.constant 0 : i32
    %19 = arith.cmpi ne, %18, %c0_i32_14 : i32
    scf.if %19 {
      %c0_15 = arith.constant 0 : index
      %c0_16 = arith.constant 0 : index
      %20 = vector.load %arg2[%c0_15, %c0_16] : memref<64x128xf32, #tpu.memory_space<vmem>>, vector<64x128xf32>
      %c0_17 = arith.constant 0 : index
      %c0_18 = arith.constant 0 : index
      %21 = vector.load %arg11[%c0_17, %c0_18] : memref<64x128xf32, #tpu.memory_space<vmem>>, vector<64x128xf32>
      %22 = arith.addf %20, %21 : vector<64x128xf32>
      %c0_19 = arith.constant 0 : index
      %c0_20 = arith.constant 0 : index
      %23 = vector.load %arg8[%c0_19, %c0_20] : memref<1x128xf32, #tpu.memory_space<vmem>>, vector<1x128xf32>
      %24 = vector.broadcast %23 : vector<1x128xf32> to vector<64x128xf32>
      %25 = arith.addf %22, %24 : vector<64x128xf32>
      %c0_21 = arith.constant 0 : index
      %c0_22 = arith.constant 0 : index
      %26 = vector.load %arg9[%c0_21, %c0_22] : memref<64x128xf32, #tpu.memory_space<vmem>>, vector<64x128xf32>
      tpu.vector_store %arg9[%c0_21, %c0_22], %25 {strides = array<i32>} : memref<64x128xf32, #tpu.memory_space<vmem>>, vector<64x128xf32>,
    } else {
    }
    return
  }
  func.func @transform_0(%arg0: i32, %arg1: i32) -> (i32, i32) {
    %c0_i32 = arith.constant 0 : i32
    %c0_i32_0 = arith.constant 0 : i32
    return %arg0, %c0_i32 : i32, i32
  }
  func.func @transform_1(%arg0: i32, %arg1: i32) -> (i32, i32) {
    %c0_i32 = arith.constant 0 : i32
    %c0_i32_0 = arith.constant 0 : i32
    %c0_i32_1 = arith.constant 0 : i32
    return %c0_i32, %c0_i32_0 : i32, i32
  }
  func.func @transform_2(%arg0: i32, %arg1: i32) -> (i32, i32) {
    %c0_i32 = arith.constant 0 : i32
    %c0_i32_0 = arith.constant 0 : i32
    %c0_i32_1 = arith.constant 0 : i32
    return %c0_i32, %c0_i32_0 : i32, i32
  }
  func.func @transform_3(%arg0: i32, %arg1: i32) -> (i32, i32) {
    %c0_i32 = arith.constant 0 : i32
    %c0_i32_0 = arith.constant 0 : i32
    return %c0_i32, %arg1 : i32, i32
  }
  func.func @transform_4(%arg0: i32, %arg1: i32) -> (i32, i32) {
    %c0_i32 = arith.constant 0 : i32
    %c0_i32_0 = arith.constant 0 : i32
    return %c0_i32, %arg1 : i32, i32
  }
  func.func @transform_5(%arg0: i32, %arg1: i32) -> (i32, i32) {
    %c0_i32 = arith.constant 0 : i32
    %c0_i32_0 = arith.constant 0 : i32
    return %arg1, %c0_i32 : i32, i32
  }
  func.func @transform_6(%arg0: i32, %arg1: i32) -> (i32, i32) {
    %c0_i32 = arith.constant 0 : i32
    %c0_i32_0 = arith.constant 0 : i32
    %c0_i32_1 = arith.constant 0 : i32
    return %c0_i32, %c0_i32_0 : i32, i32
  }
  func.func @transform_7(%arg0: i32, %arg1: i32) -> (i32, i32) {
    %c0_i32 = arith.constant 0 : i32
    %c0_i32_0 = arith.constant 0 : i32
    return %arg0, %c0_i32 : i32, i32
  }
}

</mosaic_0001>

<llo_original>
// kernel: _layer_impl.5
$region0: #{_layer_impl.5}
  #allocation0 [shape = 'u32[]', space=smem, size = 0x4, offset = 0x4, fixed_abs, tag = 'smem constant byte address 0x4 - core index']
  #allocation1 [shape = 'u32[144,128]{1,0:T(1,128)}', space=vmem, size = 0x12000, scoped, tag = 'internal scratch']
  #allocation2 [shape = 's32[1]{0}', space=sflag, size = 0x4, scoped, tag = 'scoped memory for _layer_impl.5']
  #allocation3 [shape = 'u8[512]{0}', space=smem, size = 0x200, scoped, tag = 'prefetched SMEM operand 0']
  %s0 = inlined_call_operand.vmem [shape: s32[2], index: 0, kind: input, shape index: {}]
  %s1 = inlined_call_operand.vmem [shape: bf16[2,4,64,32], index: 1, kind: input, shape index: {}]
  %s2 = inlined_call_operand.vmem [shape: bf16[2,4,64,32], index: 2, kind: input, shape index: {}]
  %s3 = inlined_call_operand.vmem [shape: bf16[2,4,64,32], index: 3, kind: input, shape index: {}]
  %s4 = inlined_call_operand.vmem [shape: bf16[2,4,64,32], index: 4, kind: output, shape index: {}]
  %s5 = sld [smem:[#allocation0]]
  $region45: #{_layer_impl.5} parent=0
    _
  %s7 = ssub.s32 1, %s5
  %s8 = scalar_select 0, %s7, %s5
  %s9 = sshll.u32 %s0, 4
  %s10 = int_to_ptr.vmem [resolvable:$true] %s9
  %12 = dma.vmem_to_smem %s10, 16, [#allocation3], [#allocation2]
  %13 = dma.done [#allocation2], 16
  %14 = sfence
  loop: start=0, step=1, limit=18
  $region2: #{_layer_impl.5} parent=0 // loop_pre_header
    _
  $region3: #{_layer_impl.5} parent=0 // loop_header
    %s16 = sphi 0, %s20
    %p17 = scmp.ge.s32.totalorder %s16, 18
    %s23 = sphi 0, %s42
    %s24 = sphi 0, %s38
    %s25 = sphi 0, %s34
    %s26 = sphi 0, %s23
    %s27 = sphi 0, %s24
    %s28 = sphi 0, %s25
    %s29 = sphi 0, %s26
    %s30 = sphi 0, %s27
    %s31 = sphi 0, %s28
    %s49 = sphi 0, %s51
    %s52 = sphi 0, %s49
    %s53 = sphi 0, %s52
    %s69 = sphi 0, %s53
    %s77 = sphi 0, %s79
    %s80 = sphi 0, %s77
    %s81 = sphi 0, %s80
    %s97 = sphi 0, %s81
    %s105 = sphi 0, %s107
    %s108 = sphi 0, %s105
    %s109 = sphi 0, %s108
    %s125 = sphi 0, %s109
    %s135 = sphi 0, %s137
    %s138 = sphi 0, %s135
    %s139 = sphi 0, %s138
    %s155 = sphi 0, %s139
  $region4: #{_layer_impl.5} parent=0 // loop_header_branch
    %19 = sbr.rel (%p17) target = $region8
  $region5: #{_layer_impl.5} parent=0 // loop_body
    %s21 = ssub.s32 %s16, 1
    %s22 = ssub.s32 %s16, 2
    %s32 = sadd.s32 1, %s25
    %p33 = scmp.ge.s32.totalorder %s32, 2
    %s34 = scalar_select %p33, 0, %s32
    %s35 = sadd.s32 1, %s24
    %s36 = scalar_select %p33, %s35, %s24
    %p37 = scmp.ge.s32.totalorder %s36, 4
    %s38 = scalar_select %p37, 0, %s36
    %s39 = sadd.s32 1, %s23
    %s40 = scalar_select %p37, %s39, %s23
    %p41 = scmp.ge.s32.totalorder %s40, 2
    %s42 = scalar_select %p41, 0, %s40
    %s43 = ssub.s32 %s23, %s42
    %s44 = ssub.s32 %s24, %s38
    %s45 = sor.u32 %s43, %s44
    %s46 = ssub.s32 %s25, %s34
    %s47 = sor.u32 %s45, %s46
    %p48 = scmp.eq.s32.totalorder %s47, 0
    %s50 = sadd.s32 %s49, 1
    %s51 = scalar_select %p48, %s49, %s50
    %p54 = pneg %p48
    %p55 = scmp.eq.s32.totalorder %s16, 15
    %p56 = por %p54, %p55
    %p57 = scmp.ne.s32.totalorder %s49, %s52
    %p58 = scmp.eq.s32.totalorder %s16, 0
    %p59 = por %p57, %p58
    %p60 = scmp.ne.s32.totalorder %s49, %s52
    %p61 = scmp.eq.s32.totalorder %s21, 15
    %p62 = por %p60, %p61
    %p63 = scmp.ne.s32.totalorder %s52, %s53
    %p64 = scmp.eq.s32.totalorder %s21, 0
    %p65 = por %p63, %p64
    %p66 = scmp.ne.s32.totalorder %s52, %s53
    %p67 = scmp.eq.s32.totalorder %s22, 15
    %p68 = por %p66, %p67
    %p70 = scmp.ne.s32.totalorder %s53, %s69
    %p71 = scmp.eq.s32.totalorder %s22, 0
    %p72 = por %p70, %p71
    %s73 = ssub.s32 %s23, %s42
    %s74 = ssub.s32 %s24, %s38
    %s75 = sor.u32 %s73, %s74
    %p76 = scmp.eq.s32.totalorder %s75, 0
    %s78 = sadd.s32 %s77, 1
    %s79 = scalar_select %p76, %s77, %s78
    %p82 = pneg %p76
    %p83 = scmp.eq.s32.totalorder %s16, 15
    %p84 = por %p82, %p83
    %p85 = scmp.ne.s32.totalorder %s77, %s80
    %p86 = scmp.eq.s32.totalorder %s16, 0
    %p87 = por %p85, %p86
    %p88 = scmp.ne.s32.totalorder %s77, %s80
    %p89 = scmp.eq.s32.totalorder %s21, 15
    %p90 = por %p88, %p89
    %p91 = scmp.ne.s32.totalorder %s80, %s81
    %p92 = scmp.eq.s32.totalorder %s21, 0
    %p93 = por %p91, %p92
    %p94 = scmp.ne.s32.totalorder %s80, %s81
    %p95 = scmp.eq.s32.totalorder %s22, 15
    %p96 = por %p94, %p95
    %p98 = scmp.ne.s32.totalorder %s81, %s97
    %p99 = scmp.eq.s32.totalorder %s22, 0
    %p100 = por %p98, %p99
    %s101 = ssub.s32 %s23, %s42
    %s102 = ssub.s32 %s24, %s38
    %s103 = sor.u32 %s101, %s102
    %p104 = scmp.eq.s32.totalorder %s103, 0
    %s106 = sadd.s32 %s105, 1
    %s107 = scalar_select %p104, %s105, %s106
    %p110 = pneg %p104
    %p111 = scmp.eq.s32.totalorder %s16, 15
    %p112 = por %p110, %p111
    %p113 = scmp.ne.s32.totalorder %s105, %s108
    %p114 = scmp.eq.s32.totalorder %s16, 0
    %p115 = por %p113, %p114
    %p116 = scmp.ne.s32.totalorder %s105, %s108
    %p117 = scmp.eq.s32.totalorder %s21, 15
    %p118 = por %p116, %p117
    %p119 = scmp.ne.s32.totalorder %s108, %s109
    %p120 = scmp.eq.s32.totalorder %s21, 0
    %p121 = por %p119, %p120
    %p122 = scmp.ne.s32.totalorder %s108, %s109
    %p123 = scmp.eq.s32.totalorder %s22, 15
    %p124 = por %p122, %p123
    %p126 = scmp.ne.s32.totalorder %s109, %s125
    %p127 = scmp.eq.s32.totalorder %s22, 0
    %p128 = por %p126, %p127
    %s129 = ssub.s32 %s23, %s42
    %s130 = ssub.s32 %s24, %s38
    %s131 = sor.u32 %s129, %s130
    %s132 = ssub.s32 %s25, %s34
    %s133 = sor.u32 %s131, %s132
    %p134 = scmp.eq.s32.totalorder %s133, 0
    %s136 = sadd.s32 %s135, 1
    %s137 = scalar_select %p134, %s135, %s136
    %p140 = pneg %p134
    %p141 = scmp.eq.s32.totalorder %s16, 15
    %p142 = por %p140, %p141
    %p143 = scmp.ne.s32.totalorder %s135, %s138
    %p144 = scmp.eq.s32.totalorder %s16, 0
    %p145 = por %p143, %p144
    %p146 = scmp.ne.s32.totalorder %s135, %s138
    %p147 = scmp.eq.s32.totalorder %s21, 15
    %p148 = por %p146, %p147
    %p149 = scmp.ne.s32.totalorder %s138, %s139
    %p150 = scmp.eq.s32.totalorder %s21, 0
    %p151 = por %p149, %p150
    %p152 = scmp.ne.s32.totalorder %s138, %s139
    %p153 = scmp.eq.s32.totalorder %s22, 15
    %p154 = por %p152, %p153
    %p156 = scmp.ne.s32.totalorder %s139, %s155
    %p157 = scmp.eq.s32.totalorder %s22, 0
    %p158 = por %p156, %p157
    %p159 = scmp.le.s32.totalorder 1, %s16
    %p160 = scmp.lt.s32.totalorder %s16, 17
    %p161 = pnand %p159, %p160
    %p162 = pneg %p161
    // Predicated region
    $region9: #{_layer_impl.5} parent=5 // pred_check
      _
    $region10: #{_layer_impl.5} parent=5 // pred_check_branch
      %164 = sbr.rel (%p161) target = $region12
    $region11: #{_layer_impl.5} parent=5 // pred_region
      %s165 = ssub.s32 %s16, 1
    $region12: #{_layer_impl.5} parent=5 // pred_fallthru
      _
    %p166 = scmp.lt.s32.totalorder %s16, 16
    // Predicated region
    $region13: #{_layer_impl.5} parent=5 // pred_check
      %p167 = pneg %p166
    $region14: #{_layer_impl.5} parent=5 // pred_check_branch
      %169 = sbr.rel (%p167) target = $region16
    $region15: #{_layer_impl.5} parent=5 // pred_region
      // Predicated region
      $region17: #{_layer_impl.5} parent=15 // pred_check
        %p170 = pneg %p59
      $region18: #{_layer_impl.5} parent=15 // pred_check_branch
        %172 = sbr.rel (%p170) target = $region20
      $region19: #{_layer_impl.5} parent=15 // pred_region
        %s173 = smul.u32 4, %s25
        %p174 = scmp.lt.s32.totalorder %s23, 1
        %s175 = scalar_select %p174, %s23, 1
        %p176 = scmp.lt.s32.totalorder %s24, 3
        %s177 = scalar_select %p176, %s24, 3
        %p178 = scmp.lt.s32.totalorder %s173, 7
        %s179 = scalar_select %p178, %s173, 7
        %s180 = smul.addr %s177, 8
        %s181 = sadd.s32 %s179, %s180
        %s182 = smul.addr %s175, 32
        %s183 = sadd.s32 %s181, %s182
        %s184 = smul.addr %s183, 4
        %s185 = scalar_lea.vmem %s1, %s184
        %s186 = smul.u32 4, %s25
      $region20: #{_layer_impl.5} parent=15 // pred_fallthru
        _
      // Predicated region
      $region21: #{_layer_impl.5} parent=15 // pred_check
        %p187 = pneg %p87
      $region22: #{_layer_impl.5} parent=15 // pred_check_branch
        %189 = sbr.rel (%p187) target = $region24
      $region23: #{_layer_impl.5} parent=15 // pred_region
        %p190 = scmp.lt.s32.totalorder %s23, 1
        %s191 = scalar_select %p190, %s23, 1
        %p192 = scmp.lt.s32.totalorder %s24, 3
        %s193 = scalar_select %p192, %s24, 3
        %s194 = smul.addr %s193, 8
        %s195 = smul.addr %s191, 32
        %s196 = sadd.s32 %s194, %s195
        %s197 = smul.addr %s196, 4
        %s198 = scalar_lea.vmem %s2, %s197
      $region24: #{_layer_impl.5} parent=15 // pred_fallthru
        _
      // Predicated region
      $region25: #{_layer_impl.5} parent=15 // pred_check
        %p199 = pneg %p115
      $region26: #{_layer_impl.5} parent=15 // pred_check_branch
        %201 = sbr.rel (%p199) target = $region28
      $region27: #{_layer_impl.5} parent=15 // pred_region
        %p202 = scmp.lt.s32.totalorder %s23, 1
        %s203 = scalar_select %p202, %s23, 1
        %p204 = scmp.lt.s32.totalorder %s24, 3
        %s205 = scalar_select %p204, %s24, 3
        %s206 = smul.addr %s205, 8
        %s207 = smul.addr %s203, 32
        %s208 = sadd.s32 %s206, %s207
        %s209 = smul.addr %s208, 4
        %s210 = scalar_lea.vmem %s3, %s209
      $region28: #{_layer_impl.5} parent=15 // pred_fallthru
        _
    $region16: #{_layer_impl.5} parent=5 // pred_fallthru
      _
    %p211 = scmp.le.s32.totalorder 1, %s16
    %p212 = scmp.lt.s32.totalorder %s16, 17
    %p213 = pnand %p211, %p212
    %p214 = pneg %p213
    // Predicated region
    $region29: #{_layer_impl.5} parent=5 // pred_check
      _
    $region30: #{_layer_impl.5} parent=5 // pred_check_branch
      %216 = sbr.rel (%p213) target = $region32
    $region31: #{_layer_impl.5} parent=5 // pred_region
      %s217 = ssub.s32 %s16, 1
      %s218 = smul.u32 4, %s28
      %p219 = scmp.lt.s32.totalorder %s26, 1
      %s220 = scalar_select %p219, %s26, 1
      %p221 = scmp.lt.s32.totalorder %s27, 3
      %s222 = scalar_select %p221, %s27, 3
      %p223 = scmp.lt.s32.totalorder %s218, 7
      %s224 = scalar_select %p223, %s218, 7
      %s225 = smul.addr %s222, 8
      %s226 = sadd.s32 %s224, %s225
      %s227 = smul.addr %s220, 32
      %s228 = sadd.s32 %s226, %s227
      %s229 = smul.addr %s228, 4
      %s230 = scalar_lea.vmem %s1, %s229
      %p231 = pneg %p65
      %p232 = pneg %p62
      %p233 = scmp.lt.s32.totalorder %s26, 1
      %s234 = scalar_select %p233, %s26, 1
      %p235 = scmp.lt.s32.totalorder %s27, 3
      %s236 = scalar_select %p235, %s27, 3
      %s237 = smul.addr %s236, 8
      %s238 = smul.addr %s234, 32
      %s239 = sadd.s32 %s237, %s238
      %s240 = smul.addr %s239, 4
      %s241 = scalar_lea.vmem %s2, %s240
      %p242 = pneg %p93
      %p243 = pneg %p90
      %p244 = scmp.lt.s32.totalorder %s26, 1
      %s245 = scalar_select %p244, %s26, 1
      %p246 = scmp.lt.s32.totalorder %s27, 3
      %s247 = scalar_select %p246, %s27, 3
      %s248 = smul.addr %s247, 8
      %s249 = smul.addr %s245, 32
      %s250 = sadd.s32 %s248, %s249
      %s251 = smul.addr %s250, 4
      %s252 = scalar_lea.vmem %s3, %s251
      %p253 = pneg %p121
      %p254 = pneg %p118
      %p255 = pneg %p151
      %p256 = pneg %p148
      %s257 = smul.u32 4, %s28
      %p258 = scmp.lt.s32.totalorder %s26, 1
      %s259 = scalar_select %p258, %s26, 1
      %p260 = scmp.lt.s32.totalorder %s27, 3
      %s261 = scalar_select %p260, %s27, 3
      %p262 = scmp.lt.s32.totalorder %s257, 7
      %s263 = scalar_select %p262, %s257, 7
      %s264 = smul.addr %s261, 8
      %s265 = sadd.s32 %s263, %s264
      %s266 = smul.addr %s259, 32
      %s267 = sadd.s32 %s265, %s266
      %s268 = smul.addr %s267, 4
      %s269 = scalar_lea.vmem %s4, %s268
      %s270 = smul.u32 4, %s28
      %p271 = scmp.lt.s32.totalorder %s26, 1
      %s272 = scalar_select %p271, %s26, 1
      %p273 = scmp.lt.s32.totalorder %s27, 3
      %s274 = scalar_select %p273, %s27, 3
      %p275 = scmp.lt.s32.totalorder %s270, 7
      %s276 = scalar_select %p275, %s270, 7
      %s277 = smul.addr %s274, 8
      %s278 = sadd.s32 %s276, %s277
      %s279 = smul.addr %s272, 32
      %s280 = sadd.s32 %s278, %s279
      %s281 = smul.addr %s280, 4
      %s282 = scalar_lea.vmem %s1, %s281
      %s283 = smul.u32 4, %s28
      %p284 = scmp.lt.s32.totalorder %s26, 1
      %s285 = scalar_select %p284, %s26, 1
      %p286 = scmp.lt.s32.totalorder %s27, 3
      %s287 = scalar_select %p286, %s27, 3
      %s288 = smul.addr %s287, 8
      %s289 = smul.addr %s285, 32
      %s290 = sadd.s32 %s288, %s289
      %s291 = smul.addr %s290, 4
      %s292 = scalar_lea.vmem %s2, %s291
      %p293 = scmp.lt.s32.totalorder %s26, 1
      %s294 = scalar_select %p293, %s26, 1
      %p295 = scmp.lt.s32.totalorder %s27, 3
      %s296 = scalar_select %p295, %s27, 3
      %s297 = smul.addr %s296, 8
      %s298 = smul.addr %s294, 32
      %s299 = sadd.s32 %s297, %s298
      %s300 = smul.addr %s299, 4
      %s301 = scalar_lea.vmem %s3, %s300
      %s302 = smul.u32 4, %s28
      %p303 = scmp.lt.s32.totalorder %s26, 1
      %s304 = scalar_select %p303, %s26, 1
      %p305 = scmp.lt.s32.totalorder %s27, 3
      %s306 = scalar_select %p305, %s27, 3
      %p307 = scmp.lt.s32.totalorder %s302, 7
      %s308 = scalar_select %p307, %s302, 7
      %s309 = smul.addr %s306, 8
      %s310 = sadd.s32 %s308, %s309
      %s311 = smul.addr %s304, 32
      %s312 = sadd.s32 %s310, %s311
      %s313 = smul.addr %s312, 4
      %s314 = scalar_lea.vmem %s4, %s313
      %s315 = smul.u32 4, %s28
      %v317 = vld [vmem:[%s282] sm:$0xf]
      %v318 = vld [vmem:[%s282 + $0x4] sm:$0xf]
      %v319 = vld [vmem:[%s282 + $0x8] sm:$0xf]
      %v320 = vld [vmem:[%s282 + $0xc] sm:$0xf]
      %v321 = vld [vmem:[%s292] sm:$0xf]
      %v322 = vld [vmem:[%s292 + $0x4] sm:$0xf]
      %v323 = vld [vmem:[%s292 + $0x8] sm:$0xf]
      %v324 = vld [vmem:[%s292 + $0xc] sm:$0xf]
      %v325 = vld [vmem:[%s292 + $0x10] sm:$0xf]
      %v326 = vld [vmem:[%s292 + $0x14] sm:$0xf]
      %v327 = vld [vmem:[%s292 + $0x18] sm:$0xf]
      %v328 = vld [vmem:[%s292 + $0x1c] sm:$0xf]
      %v329 = vld [vmem:[%s301] sm:$0xf]
      %v330 = vld [vmem:[%s301 + $0x4] sm:$0xf]
      %v331 = vld [vmem:[%s301 + $0x8] sm:$0xf]
      %v332 = vld [vmem:[%s301 + $0xc] sm:$0xf]
      %v333 = vld [vmem:[%s301 + $0x10] sm:$0xf]
      %v334 = vld [vmem:[%s301 + $0x14] sm:$0xf]
      %v335 = vld [vmem:[%s301 + $0x18] sm:$0xf]
      %v336 = vld [vmem:[%s301 + $0x1c] sm:$0xf]
      %v341 = vunpack.c.l.b16 %v317
      %v342 = vunpack.c.l.b16 %v318
      %v343 = vunpack.c.l.b16 %v319
      %v344 = vunpack.c.l.b16 %v320
      %v345 = vpack.c.b16 %v342, %v341
      %v346 = vpack.c.b16 %v344, %v343
      %v355 = vunpack.c.l.b16 %v321
      %v356 = vunpack.c.l.b16 %v322
      %v357 = vunpack.c.l.b16 %v323
      %v358 = vunpack.c.l.b16 %v324
      %v359 = vunpack.c.l.b16 %v325
      %v360 = vunpack.c.l.b16 %v326
      %v361 = vunpack.c.l.b16 %v327
      %v362 = vunpack.c.l.b16 %v328
      %v363 = vpack.c.b16 %v356, %v355
      %v364 = vpack.c.b16 %v358, %v357
      %v365 = vpack.c.b16 %v360, %v359
      %v366 = vpack.c.b16 %v362, %v361
      %vm367 = vcmask 261120
      %v369 = vsel %vm367, %v345, 0
      %v372 = vsel %vm367, %v346, 0
      %v375 = vsel %vm367, %v363, 0
      %v378 = vsel %vm367, %v364, 0
      %v381 = vsel %vm367, %v365, 0
      %v384 = vsel %vm367, %v366, 0
      %386 = vmatprep.subr.bf16.mxu0 0
      %387 = vmatpush1.bf16.xpose.msra.mxu0 %v375
      %388 = vmatprep.subr.bf16.mxu0 0
      %389 = vmatpush1.bf16.xpose.msra.mxu0 %v378
      %390 = vmatprep.subr.bf16.mxu0 0
      %391 = vmatpush1.bf16.xpose.msra.mxu0 %v381
      %392 = vmatprep.subr.bf16.mxu0 0
      %393 = vmatpush1.bf16.xpose.msra.mxu0 %v384
      %394 = vmatprep.subr.bf16.mxu0 0
      %395 = vmatpush1.bf16.xpose.msra.mxu0 0
      %396 = vmatprep.subr.bf16.mxu0 0
      %397 = vmatpush1.bf16.xpose.msra.mxu0 0
      %398 = vmatprep.subr.bf16.mxu0 0
      %399 = vmatpush1.bf16.xpose.msra.mxu0 0
      %400 = vmatprep.subr.bf16.mxu0 0
      %401 = vmatpush1.bf16.xpose.msra.mxu0 0
      %402 = vmatprep.subr.bf16.mxu0 0
      %403 = vmatpush1.bf16.xpose.msra.mxu0 0
      %404 = vmatprep.subr.bf16.mxu0 0
      %405 = vmatpush1.bf16.xpose.msra.mxu0 0
      %406 = vmatprep.subr.bf16.mxu0 0
      %407 = vmatpush1.bf16.xpose.msra.mxu0 0
      %408 = vmatprep.subr.bf16.mxu0 0
      %409 = vmatpush1.bf16.xpose.msra.mxu0 0
      %410 = vmatprep.subr.bf16.mxu0 0
      %411 = vmatpush1.bf16.xpose.msra.mxu0 0
      %412 = vmatprep.subr.bf16.mxu0 0
      %413 = vmatpush1.bf16.xpose.msra.mxu0 0
      %414 = vmatprep.subr.bf16.mxu0 0
      %415 = vmatpush1.bf16.xpose.msra.mxu0 0
      %416 = vmatprep.subr.bf16.mxu0 0
      %417 = vmatpush1.bf16.xpose.msra.mxu0 0
      %418 = vmatprep.mubr.bf16.mxu0 0
      %419 = vmatmul.mubr.bf16.gmra.mrb[0].mxu0 %v369
      %v420 = vpop.f32.mrb[0].mxu0
      %v421 = vadd.f32 0.0, %v420
      %v422 = vpop.f32.mrb[0].mxu0
      %v423 = vpop.f32.mrb[0].mxu0
      %v424 = vadd.f32 0.0, %v423
      %v425 = vpop.f32.mrb[0].mxu0
      %426 = vmatprep.mubr.bf16.mxu0 0
      %427 = vmatmul.mubr.bf16.gmra.mrb[0].mxu0 %v372
      %v428 = vpop.f32.mrb[0].mxu0
      %v429 = vadd.f32 0.0, %v428
      %v430 = vpop.f32.mrb[0].mxu0
      %v431 = vpop.f32.mrb[0].mxu0
      %v432 = vadd.f32 0.0, %v431
      %v433 = vpop.f32.mrb[0].mxu0
      %434 = vdwg.mxu0
      %s435 = sld [smem:[#allocation3 + %s26]]
      %s436 = smul.u32 %s28, 32
      %v437 = vlaneseq
      %v438 = vshrl.u32 %v437, 7
      %v439 = vadd.s32 %v438, 8
      %v440 = vadd.s32 %v438, 16
      %v441 = vadd.s32 %v438, 24
      %v442 = vstv %s436
      %v443 = vadd.s32 %v442, %v438
      %v444 = vadd.s32 %v442, %v439
      %v445 = vadd.s32 %v442, %v440
      %v446 = vadd.s32 %v442, %v441
      %v447 = vlaneseq
      %v448 = vand.u32 %v447, 127
      %vm449 = vcmp.le.s32.totalorder %v448, %v443
      %vm450 = vcmp.le.s32.totalorder %v448, %v444
      %vm451 = vcmp.le.s32.totalorder %v448, %v445
      %vm452 = vcmp.le.s32.totalorder %v448, %v446
      %v453 = vstv %s435
      %vm454 = vcmp.lt.s32.totalorder %v448, %v453
      %vm455 = vmand %vm449, %vm454
      %vm456 = vmand %vm450, %vm454
      %vm457 = vmand %vm451, %vm454
      %vm458 = vmand %vm452, %vm454
      %v459 = vsel %vm455, %v421, -1e+09
      %v460 = vsel %vm456, %v424, -1e+09
      %v461 = vsel %vm457, %v429, -1e+09
      %v462 = vsel %vm458, %v432, -1e+09
      %vm463 = vcmask 523264
      %v464 = vsel %vm463, %v459, -inf
      %465 = vmax.xlane.f32.xlu0 %v464
      %v466 = vpop.xlane.xlu0 %465
      %v467 = vsel %vm463, %v460, -inf
      %468 = vmax.xlane.f32.xlu0 %v467
      %v469 = vpop.xlane.xlu0 %468
      %v470 = vsel %vm463, %v461, -inf
      %471 = vmax.xlane.f32.xlu0 %v470
      %v472 = vpop.xlane.xlu0 %471
      %v473 = vsel %vm463, %v462, -inf
      %474 = vmax.xlane.f32.xlu0 %v473
      %v475 = vpop.xlane.xlu0 %474
      %v476 = vsub.f32 %v459, %v466
      %v477 = vsub.f32 %v460, %v469
      %v478 = vsub.f32 %v461, %v472
      %v479 = vsub.f32 %v462, %v475
      %v480 = vmul.f32 %v476, 1.442695
      %v481 = vpow.pop %v480
      %v482 = vmul.f32 %v477, 1.442695
      %v483 = vpow.pop %v482
      %v484 = vmul.f32 %v478, 1.442695
      %v485 = vpow.pop %v484
      %v486 = vmul.f32 %v479, 1.442695
      %v487 = vpow.pop %v486
      %v488 = vsel %vm463, %v481, 0.0
      %489 = vadd.xlane.f32.xlu0 %v488
      %v490 = vpop.xlane.xlu0 %489
      %v491 = vsel %vm463, %v483, 0.0
      %492 = vadd.xlane.f32.xlu0 %v491
      %v493 = vpop.xlane.xlu0 %492
      %v494 = vsel %vm463, %v485, 0.0
      %495 = vadd.xlane.f32.xlu0 %v494
      %v496 = vpop.xlane.xlu0 %495
      %v497 = vsel %vm463, %v487, 0.0
      %498 = vadd.xlane.f32.xlu0 %v497
      %v499 = vpop.xlane.xlu0 %498
      %v500 = vrcp.pop %v490
      %v501 = vrcp.pop %v493
      %v502 = vrcp.pop %v496
      %v503 = vrcp.pop %v499
      %v504 = vmul.f32 %v481, %v500
      %v505 = vmul.f32 %v483, %v501
      %v506 = vmul.f32 %v485, %v502
      %v507 = vmul.f32 %v487, %v503
      %v508 = vpack.c.bf16 %v505, %v504
      %v509 = vpack.c.bf16 %v507, %v506
      %v518 = vunpack.c.l.b16 %v329
      %v519 = vunpack.c.l.b16 %v330
      %v520 = vunpack.c.l.b16 %v331
      %v521 = vunpack.c.l.b16 %v332
      %v522 = vunpack.c.l.b16 %v333
      %v523 = vunpack.c.l.b16 %v334
      %v524 = vunpack.c.l.b16 %v335
      %v525 = vunpack.c.l.b16 %v336
      %v526 = vpack.c.b16 %v519, %v518
      %v527 = vpack.c.b16 %v521, %v520
      %v528 = vpack.c.b16 %v523, %v522
      %v529 = vpack.c.b16 %v525, %v524
      %v535 = vsel %vm463, %v508, 0
      %v538 = vsel %vm463, %v509, 0
      %540 = vmatprep.subr.bf16.mxu0 0
      %541 = vmatpush1.bf16.msra.mxu0 %v526
      %542 = vmatprep.subr.bf16.mxu0 0
      %543 = vmatpush1.bf16.msra.mxu0 %v527
      %544 = vmatprep.subr.bf16.mxu0 0
      %545 = vmatpush1.bf16.msra.mxu0 %v528
      %546 = vmatprep.subr.bf16.mxu0 0
      %547 = vmatpush1.bf16.msra.mxu0 %v529
      %548 = vmatprep.subr.bf16.mxu0 0
      %549 = vmatpush1.bf16.msra.mxu0 0
      %550 = vmatprep.subr.bf16.mxu0 0
      %551 = vmatpush1.bf16.msra.mxu0 0
      %552 = vmatprep.subr.bf16.mxu0 0
      %553 = vmatpush1.bf16.msra.mxu0 0
      %554 = vmatprep.subr.bf16.mxu0 0
      %555 = vmatpush1.bf16.msra.mxu0 0
      %556 = vmatprep.subr.bf16.mxu0 0
      %557 = vmatpush1.bf16.msra.mxu0 0
      %558 = vmatprep.subr.bf16.mxu0 0
      %559 = vmatpush1.bf16.msra.mxu0 0
      %560 = vmatprep.subr.bf16.mxu0 0
      %561 = vmatpush1.bf16.msra.mxu0 0
      %562 = vmatprep.subr.bf16.mxu0 0
      %563 = vmatpush1.bf16.msra.mxu0 0
      %564 = vmatprep.subr.bf16.mxu0 0
      %565 = vmatpush1.bf16.msra.mxu0 0
      %566 = vmatprep.subr.bf16.mxu0 0
      %567 = vmatpush1.bf16.msra.mxu0 0
      %568 = vmatprep.subr.bf16.mxu0 0
      %569 = vmatpush1.bf16.msra.mxu0 0
      %570 = vmatprep.subr.bf16.mxu0 0
      %571 = vmatpush1.bf16.msra.mxu0 0
      %572 = vmatprep.mubr.bf16.mxu0 0
      %573 = vmatmul.mubr.bf16.gmra.mrb[0].mxu0 %v535
      %v574 = vpop.f32.mrb[0].mxu0
      %v575 = vadd.f32 0.0, %v574
      %v576 = vpop.f32.mrb[0].mxu0
      %v577 = vpop.f32.mrb[0].mxu0
      %v578 = vadd.f32 0.0, %v577
      %v579 = vpop.f32.mrb[0].mxu0
      %580 = vmatprep.mubr.bf16.mxu0 0
      %581 = vmatmul.mubr.bf16.gmra.mrb[0].mxu0 %v538
      %v582 = vpop.f32.mrb[0].mxu0
      %v583 = vadd.f32 0.0, %v582
      %v584 = vpop.f32.mrb[0].mxu0
      %v585 = vpop.f32.mrb[0].mxu0
      %v586 = vadd.f32 0.0, %v585
      %v587 = vpop.f32.mrb[0].mxu0
      %588 = vdwg.mxu0
      %v589 = vpack.c.bf16 %v578, %v575
      %v590 = vpack.c.bf16 %v586, %v583
      %v593 = vunpack.c.l.b16 %v589
      %v594 = vunpack.c.h.b16 %v589
      %v595 = vunpack.c.l.b16 %v590
      %v596 = vunpack.c.h.b16 %v590
      %v597 = vpack.c.b16 %v593, %v593
      %v598 = vpack.c.b16 %v594, %v594
      %v599 = vpack.c.b16 %v595, %v595
      %v600 = vpack.c.b16 %v596, %v596
      %vm605 = vcmask 257024
      %606 = vst.msk [vmem:[%s314] sm:$0xf] %vm605, %v597
      %607 = vst.msk [vmem:[%s314 + $0x4] sm:$0xf] %vm605, %v598
      %608 = vst.msk [vmem:[%s314 + $0x8] sm:$0xf] %vm605, %v599
      %609 = vst.msk [vmem:[%s314 + $0xc] sm:$0xf] %vm605, %v600
      %s610 = smul.u32 4, %s28
      %p611 = scmp.lt.s32.totalorder %s26, 1
      %s612 = scalar_select %p611, %s26, 1
      %p613 = scmp.lt.s32.totalorder %s27, 3
      %s614 = scalar_select %p613, %s27, 3
      %p615 = scmp.lt.s32.totalorder %s610, 7
      %s616 = scalar_select %p615, %s610, 7
      %s617 = smul.addr %s614, 8
      %s618 = sadd.s32 %s616, %s617
      %s619 = smul.addr %s612, 32
      %s620 = sadd.s32 %s618, %s619
      %s621 = smul.addr %s620, 4
      %s622 = scalar_lea.vmem %s4, %s621
      // Predicated region
      $region33: #{_layer_impl.5} parent=31 // pred_check
        %p623 = pneg %p148
      $region34: #{_layer_impl.5} parent=31 // pred_check_branch
        %625 = sbr.rel (%p623) target = $region36
      $region35: #{_layer_impl.5} parent=31 // pred_region
        %s626 = smul.u32 4, %s28
      $region36: #{_layer_impl.5} parent=31 // pred_fallthru
        _
    $region32: #{_layer_impl.5} parent=5 // pred_fallthru
      _
    %p627 = scmp.le.s32.totalorder 2, %s16
    // Predicated region
    $region37: #{_layer_impl.5} parent=5 // pred_check
      %p628 = pneg %p627
    $region38: #{_layer_impl.5} parent=5 // pred_check_branch
      %630 = sbr.rel (%p628) target = $region40
    $region39: #{_layer_impl.5} parent=5 // pred_region
      %s631 = ssub.s32 %s16, 2
      // Predicated region
      $region41: #{_layer_impl.5} parent=39 // pred_check
        %p632 = pneg %p154
      $region42: #{_layer_impl.5} parent=39 // pred_check_branch
        %634 = sbr.rel (%p632) target = $region44
      $region43: #{_layer_impl.5} parent=39 // pred_region
        %s635 = smul.u32 4, %s31
        %p636 = scmp.lt.s32.totalorder %s29, 1
        %s637 = scalar_select %p636, %s29, 1
        %p638 = scmp.lt.s32.totalorder %s30, 3
        %s639 = scalar_select %p638, %s30, 3
        %p640 = scmp.lt.s32.totalorder %s635, 7
        %s641 = scalar_select %p640, %s635, 7
        %s642 = smul.addr %s639, 8
        %s643 = sadd.s32 %s641, %s642
        %s644 = smul.addr %s637, 32
        %s645 = sadd.s32 %s643, %s644
        %s646 = smul.addr %s645, 4
        %s647 = scalar_lea.vmem %s4, %s646
      $region44: #{_layer_impl.5} parent=39 // pred_fallthru
        _
    $region40: #{_layer_impl.5} parent=5 // pred_fallthru
      _
  $region6: #{_layer_impl.5} parent=0 // loop_footer
    %s20 = sadd.s32 1, %s16
  $region7: #{_layer_impl.5} parent=0 // loop_footer_branch
    %15 = sbr.rel target = $region3
  $region8: #{_layer_impl.5} parent=0 // loop_exit
    _

// kernel: _layer_impl.4
$region0: #{_layer_impl.4}
  #allocation0 [shape = 'u32[]', space=smem, size = 0x4, offset = 0x4, fixed_abs, tag = 'smem constant byte address 0x4 - core index']
  #allocation1 [shape = 'u32[144,128]{1,0:T(1,128)}', space=vmem, size = 0x12000, scoped, tag = 'internal scratch']
  #allocation2 [shape = 'bf16[64,128]{1,0:T(16,128)(2,1)}', space=vmem, size = 0x4000, scoped, tag = 'scratch operand']
  %s0 = inlined_call_operand.hbm [shape: f32[128,128], index: 0, kind: input, shape index: {}]
  %s1 = inlined_call_operand.vmem [shape: f32[1,128], index: 1, kind: input, shape index: {}]
  %s2 = inlined_call_operand.vmem [shape: f32[1,128], index: 2, kind: input, shape index: {}]
  %s3 = inlined_call_operand.hbm [shape: bf16[128,384], index: 3, kind: input, shape index: {}]
  %s4 = inlined_call_operand.vmem [shape: f32[1,384], index: 4, kind: input, shape index: {}]
  %s5 = inlined_call_operand.vmem [shape: bf16[128,384], index: 5, kind: output, shape index: {}]
  %s6 = sld [smem:[#allocation0]]
  $region102: #{_layer_impl.4} parent=0
    _
  %s8 = ssub.s32 1, %s6
  %s9 = scalar_select 0, %s8, %s6
  $region1: #{_layer_impl.4} parent=0
    #allocation3 [shape = 'u8[65536]{0}', space=vmem, size = 0x10000, scoped, tag = 'input window, operand 0']
    #allocation4 [shape = 's32[2]{0}', space=sflag, size = 0x8, scoped, tag = 'scoped memory for _layer_impl.4']
    #allocation5 [shape = 'u8[65536]{0}', space=vmem, size = 0x10000, scoped, tag = 'input window, operand 3']
    #allocation6 [shape = 's32[2]{0}', space=sflag, size = 0x8, scoped, tag = 'scoped memory for _layer_impl.4']
    #allocation7 [shape = 'u8[32768]{0}', space=vmem, size = 0x8000, scoped, tag = 'output window, operand 0']
    %10 = vsyncpa [#allocation4], 0
    %s11 = scalar_lea.sflag [#allocation4], 1
    %12 = vsyncpa %s11, 0
    %13 = vsyncpa [#allocation6], 0
    %s14 = scalar_lea.sflag [#allocation6], 1
    %15 = vsyncpa %s14, 0
    loop: start=0, step=1, limit=8
    $region2: #{_layer_impl.4} parent=1 // loop_pre_header
      _
    $region3: #{_layer_impl.4} parent=1 // loop_header
      %s17 = sphi 0, %s21
      %p18 = scmp.ge.s32.totalorder %s17, 8
      %s24 = sphi 0, %s36
      %s25 = sphi 0, %s32
      %s26 = sphi 0, %s24
      %s27 = sphi 0, %s25
      %s28 = sphi 0, %s26
      %s29 = sphi 0, %s27
      %s39 = sphi 0, %s41
      %s42 = sphi 0, %s39
      %s43 = sphi 0, %s42
      %s59 = sphi 0, %s43
      %s63 = sphi 0, %s63
      %s65 = sphi 0, %s63
      %s66 = sphi 0, %s65
      %s80 = sphi 0, %s66
      %s84 = sphi 0, %s84
      %s86 = sphi 0, %s84
      %s87 = sphi 0, %s86
      %s101 = sphi 0, %s87
      %s107 = sphi 0, %s109
      %s110 = sphi 0, %s107
      %s111 = sphi 0, %s110
      %s127 = sphi 0, %s111
      %s133 = sphi 0, %s135
      %s136 = sphi 0, %s133
      %s137 = sphi 0, %s136
      %s153 = sphi 0, %s137
      %s161 = sphi 0, %s163
      %s164 = sphi 0, %s161
      %s165 = sphi 0, %s164
      %s181 = sphi 0, %s165
    $region4: #{_layer_impl.4} parent=1 // loop_header_branch
      %20 = sbr.rel (%p18) target = $region8
    $region5: #{_layer_impl.4} parent=1 // loop_body
      %s22 = ssub.s32 %s17, 1
      %s23 = ssub.s32 %s17, 2
      %s30 = sadd.s32 1, %s25
      %p31 = scmp.ge.s32.totalorder %s30, 3
      %s32 = scalar_select %p31, 0, %s30
      %s33 = sadd.s32 1, %s24
      %s34 = scalar_select %p31, %s33, %s24
      %p35 = scmp.ge.s32.totalorder %s34, 2
      %s36 = scalar_select %p35, 0, %s34
      %s37 = ssub.s32 %s24, %s36
      %p38 = scmp.eq.s32.totalorder %s37, 0
      %s40 = sadd.s32 %s39, 1
      %s41 = scalar_select %p38, %s39, %s40
      %p44 = pneg %p38
      %p45 = scmp.eq.s32.totalorder %s17, 5
      %p46 = por %p44, %p45
      %p47 = scmp.ne.s32.totalorder %s39, %s42
      %p48 = scmp.eq.s32.totalorder %s17, 0
      %p49 = por %p47, %p48
      %p50 = scmp.ne.s32.totalorder %s39, %s42
      %p51 = scmp.eq.s32.totalorder %s22, 5
      %p52 = por %p50, %p51
      %p53 = scmp.ne.s32.totalorder %s42, %s43
      %p54 = scmp.eq.s32.totalorder %s22, 0
      %p55 = por %p53, %p54
      %p56 = scmp.ne.s32.totalorder %s42, %s43
      %p57 = scmp.eq.s32.totalorder %s23, 5
      %p58 = por %p56, %p57
      %p60 = scmp.ne.s32.totalorder %s43, %s59
      %p61 = scmp.eq.s32.totalorder %s23, 0
      %p62 = por %p60, %p61
      %s64 = sadd.s32 %s63, 1
      %p67 = scmp.eq.s32.totalorder %s17, 5
      %p68 = scmp.ne.s32.totalorder %s63, %s65
      %p69 = scmp.eq.s32.totalorder %s17, 0
      %p70 = por %p68, %p69
      %p71 = scmp.ne.s32.totalorder %s63, %s65
      %p72 = scmp.eq.s32.totalorder %s22, 5
      %p73 = por %p71, %p72
      %p74 = scmp.ne.s32.totalorder %s65, %s66
      %p75 = scmp.eq.s32.totalorder %s22, 0
      %p76 = por %p74, %p75
      %p77 = scmp.ne.s32.totalorder %s65, %s66
      %p78 = scmp.eq.s32.totalorder %s23, 5
      %p79 = por %p77, %p78
      %p81 = scmp.ne.s32.totalorder %s66, %s80
      %p82 = scmp.eq.s32.totalorder %s23, 0
      %p83 = por %p81, %p82
      %s85 = sadd.s32 %s84, 1
      %p88 = scmp.eq.s32.totalorder %s17, 5
      %p89 = scmp.ne.s32.totalorder %s84, %s86
      %p90 = scmp.eq.s32.totalorder %s17, 0
      %p91 = por %p89, %p90
      %p92 = scmp.ne.s32.totalorder %s84, %s86
      %p93 = scmp.eq.s32.totalorder %s22, 5
      %p94 = por %p92, %p93
      %p95 = scmp.ne.s32.totalorder %s86, %s87
      %p96 = scmp.eq.s32.totalorder %s22, 0
      %p97 = por %p95, %p96
      %p98 = scmp.ne.s32.totalorder %s86, %s87
      %p99 = scmp.eq.s32.totalorder %s23, 5
      %p100 = por %p98, %p99
      %p102 = scmp.ne.s32.totalorder %s87, %s101
      %p103 = scmp.eq.s32.totalorder %s23, 0
      %p104 = por %p102, %p103
      %s105 = ssub.s32 %s25, %s32
      %p106 = scmp.eq.s32.totalorder %s105, 0
      %s108 = sadd.s32 %s107, 1
      %s109 = scalar_select %p106, %s107, %s108
      %p112 = pneg %p106
      %p113 = scmp.eq.s32.totalorder %s17, 5
      %p114 = por %p112, %p113
      %p115 = scmp.ne.s32.totalorder %s107, %s110
      %p116 = scmp.eq.s32.totalorder %s17, 0
      %p117 = por %p115, %p116
      %p118 = scmp.ne.s32.totalorder %s107, %s110
      %p119 = scmp.eq.s32.totalorder %s22, 5
      %p120 = por %p118, %p119
      %p121 = scmp.ne.s32.totalorder %s110, %s111
      %p122 = scmp.eq.s32.totalorder %s22, 0
      %p123 = por %p121, %p122
      %p124 = scmp.ne.s32.totalorder %s110, %s111
      %p125 = scmp.eq.s32.totalorder %s23, 5
      %p126 = por %p124, %p125
      %p128 = scmp.ne.s32.totalorder %s111, %s127
      %p129 = scmp.eq.s32.totalorder %s23, 0
      %p130 = por %p128, %p129
      %s131 = ssub.s32 %s25, %s32
      %p132 = scmp.eq.s32.totalorder %s131, 0
      %s134 = sadd.s32 %s133, 1
      %s135 = scalar_select %p132, %s133, %s134
      %p138 = pneg %p132
      %p139 = scmp.eq.s32.totalorder %s17, 5
      %p140 = por %p138, %p139
      %p141 = scmp.ne.s32.totalorder %s133, %s136
      %p142 = scmp.eq.s32.totalorder %s17, 0
      %p143 = por %p141, %p142
      %p144 = scmp.ne.s32.totalorder %s133, %s136
      %p145 = scmp.eq.s32.totalorder %s22, 5
      %p146 = por %p144, %p145
      %p147 = scmp.ne.s32.totalorder %s136, %s137
      %p148 = scmp.eq.s32.totalorder %s22, 0
      %p149 = por %p147, %p148
      %p150 = scmp.ne.s32.totalorder %s136, %s137
      %p151 = scmp.eq.s32.totalorder %s23, 5
      %p152 = por %p150, %p151
      %p154 = scmp.ne.s32.totalorder %s137, %s153
      %p155 = scmp.eq.s32.totalorder %s23, 0
      %p156 = por %p154, %p155
      %s157 = ssub.s32 %s24, %s36
      %s158 = ssub.s32 %s25, %s32
      %s159 = sor.u32 %s157, %s158
      %p160 = scmp.eq.s32.totalorder %s159, 0
      %s162 = sadd.s32 %s161, 1
      %s163 = scalar_select %p160, %s161, %s162
      %p166 = pneg %p160
      %p167 = scmp.eq.s32.totalorder %s17, 5
      %p168 = por %p166, %p167
      %p169 = scmp.ne.s32.totalorder %s161, %s164
      %p170 = scmp.eq.s32.totalorder %s17, 0
      %p171 = por %p169, %p170
      %p172 = scmp.ne.s32.totalorder %s161, %s164
      %p173 = scmp.eq.s32.totalorder %s22, 5
      %p174 = por %p172, %p173
      %p175 = scmp.ne.s32.totalorder %s164, %s165
      %p176 = scmp.eq.s32.totalorder %s22, 0
      %p177 = por %p175, %p176
      %p178 = scmp.ne.s32.totalorder %s164, %s165
      %p179 = scmp.eq.s32.totalorder %s23, 5
      %p180 = por %p178, %p179
      %p182 = scmp.ne.s32.totalorder %s165, %s181
      %p183 = scmp.eq.s32.totalorder %s23, 0
      %p184 = por %p182, %p183
      %p185 = scmp.le.s32.totalorder 1, %s17
      %p186 = scmp.lt.s32.totalorder %s17, 7
      %p187 = pnand %p185, %p186
      %p188 = pneg %p187
      // Predicated region
      $region9: #{_layer_impl.4} parent=5 // pred_check
        _
      $region10: #{_layer_impl.4} parent=5 // pred_check_branch
        %190 = sbr.rel (%p187) target = $region12
      $region11: #{_layer_impl.4} parent=5 // pred_region
        %s191 = ssub.s32 %s17, 1
        // Predicated region
        $region13: #{_layer_impl.4} parent=11 // pred_check
          %p192 = pneg %p76
        $region14: #{_layer_impl.4} parent=11 // pred_check_branch
          %194 = sbr.rel (%p192) target = $region16
        $region15: #{_layer_impl.4} parent=11 // pred_region
          _
        $region16: #{_layer_impl.4} parent=11 // pred_fallthru
          _
        // Predicated region
        $region17: #{_layer_impl.4} parent=11 // pred_check
          %p195 = pneg %p97
        $region18: #{_layer_impl.4} parent=11 // pred_check_branch
          %197 = sbr.rel (%p195) target = $region20
        $region19: #{_layer_impl.4} parent=11 // pred_region
          _
        $region20: #{_layer_impl.4} parent=11 // pred_fallthru
          _
      $region12: #{_layer_impl.4} parent=5 // pred_fallthru
        _
      %p198 = scmp.lt.s32.totalorder %s17, 6
      // Predicated region
      $region21: #{_layer_impl.4} parent=5 // pred_check
        %p199 = pneg %p198
      $region22: #{_layer_impl.4} parent=5 // pred_check_branch
        %201 = sbr.rel (%p199) target = $region24
      $region23: #{_layer_impl.4} parent=5 // pred_region
        // Predicated region
        $region25: #{_layer_impl.4} parent=23 // pred_check
          %p202 = pneg %p49
        $region26: #{_layer_impl.4} parent=23 // pred_check_branch
          %204 = sbr.rel (%p202) target = $region28
        $region27: #{_layer_impl.4} parent=23 // pred_region
          %s205 = sand.u32 %s39, 1
          %s206 = scalar_lea.sflag [#allocation4], %s205
          %s207 = sand.u32 %s39, 1
          %s208 = smul.addr %s207, 64
          %s209 = scalar_lea.vmem [#allocation3], %s208
          %s210 = smul.u32 8, %s24
          %s212 = ssub.s32 1024, 1024
          %213 = vsyncadd %s206, %s212
          %s214 = smul.addr %s210, 128
          %s215 = scalar_lea.hbm %s0, %s214
          %s216 = sshll.u32 %s209, 4
          %s217 = int_to_ptr.vmem [resolvable:$true] %s216
          %222 = dma.hbm_to_vmem [thread:$0]  %s215, 1024, %s217, %s206, 128, 128, 8
        $region28: #{_layer_impl.4} parent=23 // pred_fallthru
          _
        // Predicated region
        $region29: #{_layer_impl.4} parent=23 // pred_check
          %p223 = pneg %p117
        $region30: #{_layer_impl.4} parent=23 // pred_check_branch
          %225 = sbr.rel (%p223) target = $region32
        $region31: #{_layer_impl.4} parent=23 // pred_region
          %s226 = sand.u32 %s107, 1
          %s227 = scalar_lea.sflag [#allocation6], %s226
          %s228 = sand.u32 %s107, 1
          %s229 = smul.addr %s228, 64
          %s230 = scalar_lea.vmem [#allocation5], %s229
          %s232 = ssub.s32 1024, 1024
          %233 = vsyncadd %s227, %s232
          %s234 = smul.addr %s25, 64
          %s235 = scalar_lea.hbm %s3, %s234
          %s236 = sshll.u32 %s230, 4
          %s237 = int_to_ptr.vmem [resolvable:$true] %s236
          %242 = dma.hbm_to_vmem [thread:$0]  %s235, 1024, %s237, %s227, 192, 64, 4
        $region32: #{_layer_impl.4} parent=23 // pred_fallthru
          _
        // Predicated region
        $region33: #{_layer_impl.4} parent=23 // pred_check
          %p243 = pneg %p143
        $region34: #{_layer_impl.4} parent=23 // pred_check_branch
          %245 = sbr.rel (%p243) target = $region36
        $region35: #{_layer_impl.4} parent=23 // pred_region
          %p246 = scmp.lt.s32.totalorder %s25, 2
          %s247 = scalar_select %p246, %s25, 2
          %s248 = scalar_lea.vmem %s4, %s247
        $region36: #{_layer_impl.4} parent=23 // pred_fallthru
          _
      $region24: #{_layer_impl.4} parent=5 // pred_fallthru
        _
      %p249 = scmp.le.s32.totalorder 1, %s17
      %p250 = scmp.lt.s32.totalorder %s17, 7
      %p251 = pnand %p249, %p250
      %p252 = pneg %p251
      // Predicated region
      $region37: #{_layer_impl.4} parent=5 // pred_check
        _
      $region38: #{_layer_impl.4} parent=5 // pred_check_branch
        %254 = sbr.rel (%p251) target = $region40
      $region39: #{_layer_impl.4} parent=5 // pred_region
        %s255 = ssub.s32 %s17, 1
        %s256 = sand.u32 %s42, 1
        %s257 = scalar_lea.sflag [#allocation4], %s256
        %s258 = sand.u32 %s42, 1
        %s259 = smul.addr %s258, 64
        %s260 = scalar_lea.vmem [#allocation3], %s259
        // Predicated region
        $region41: #{_layer_impl.4} parent=39 // pred_check
          %p261 = pneg %p55
        $region42: #{_layer_impl.4} parent=39 // pred_check_branch
          %263 = sbr.rel (%p261) target = $region44
        $region43: #{_layer_impl.4} parent=39 // pred_region
          %264 = dma.done %s257, 1024
        $region44: #{_layer_impl.4} parent=39 // pred_fallthru
          _
        %s265 = sand.u32 %s110, 1
        %s266 = scalar_lea.sflag [#allocation6], %s265
        %s267 = sand.u32 %s110, 1
        %s268 = smul.addr %s267, 64
        %s269 = scalar_lea.vmem [#allocation5], %s268
        // Predicated region
        $region45: #{_layer_impl.4} parent=39 // pred_check
          %p270 = pneg %p123
        $region46: #{_layer_impl.4} parent=39 // pred_check_branch
          %272 = sbr.rel (%p270) target = $region48
        $region47: #{_layer_impl.4} parent=39 // pred_region
          %273 = dma.done %s266, 1024
        $region48: #{_layer_impl.4} parent=39 // pred_fallthru
          _
        %s274 = sand.u32 %s42, 1
        %s275 = scalar_lea.sflag [#allocation4], %s274
        %s276 = sand.u32 %s42, 1
        %s277 = smul.addr %s276, 64
        %s278 = scalar_lea.vmem [#allocation3], %s277
        %p279 = pneg %p55
        %p280 = pneg %p52
        %p281 = pneg %p76
        %p282 = pneg %p73
        %p283 = pneg %p97
        %p284 = pneg %p94
        %s285 = sand.u32 %s110, 1
        %s286 = scalar_lea.sflag [#allocation6], %s285
        %s287 = sand.u32 %s110, 1
        %s288 = smul.addr %s287, 64
        %s289 = scalar_lea.vmem [#allocation5], %s288
        %p290 = pneg %p123
        %p291 = pneg %p120
        %p292 = scmp.lt.s32.totalorder %s27, 2
        %s293 = scalar_select %p292, %s27, 2
        %s294 = scalar_lea.vmem %s4, %s293
        %p295 = pneg %p149
        %p296 = pneg %p146
        %p297 = pneg %p177
        %p298 = pneg %p174
        %s299 = sand.u32 %s164, 1
        %s300 = sand.u32 %s164, 1
        %s301 = smul.addr %s300, 32
        %s302 = scalar_lea.vmem [#allocation7], %s301
        %s303 = smul.u32 8, %s26
        %p304 = scmp.lt.s32.totalorder %s27, 2
        %s305 = scalar_select %p304, %s27, 2
        %s306 = scalar_lea.vmem %s4, %s305
        %s307 = smul.u32 8, %s26
        %p309 = scmp.eq.s32.totalorder %s27, 0
        // Predicated region
        $region49: #{_layer_impl.4} parent=39 // pred_check
          %p310 = pneg %p309
        $region50: #{_layer_impl.4} parent=39 // pred_check_branch
          %312 = sbr.rel (%p310) target = $region52
        $region51: #{_layer_impl.4} parent=39 // pred_region
          %v313 = vld [vmem:[%s260] sm:$0xff]
          %v314 = vld [vmem:[%s260 + $0x8] sm:$0xff]
          %v315 = vld [vmem:[%s260 + $0x10] sm:$0xff]
          %v316 = vld [vmem:[%s260 + $0x18] sm:$0xff]
          %v317 = vld [vmem:[%s260 + $0x20] sm:$0xff]
          %v318 = vld [vmem:[%s260 + $0x28] sm:$0xff]
          %v319 = vld [vmem:[%s260 + $0x30] sm:$0xff]
          %v320 = vld [vmem:[%s260 + $0x38] sm:$0xff]
          %v321 = vld [vmem:[%s1] sm:$0x1]
          %v322 = vld [vmem:[%s2] sm:$0x1]
          %323 = vadd.xlane.f32.xlu0 %v313
          %v324 = vpop.xlane.xlu0 %323
          %325 = vadd.xlane.f32.xlu0 %v314
          %v326 = vpop.xlane.xlu0 %325
          %327 = vadd.xlane.f32.xlu0 %v315
          %v328 = vpop.xlane.xlu0 %327
          %329 = vadd.xlane.f32.xlu0 %v316
          %v330 = vpop.xlane.xlu0 %329
          %331 = vadd.xlane.f32.xlu0 %v317
          %v332 = vpop.xlane.xlu0 %331
          %333 = vadd.xlane.f32.xlu0 %v318
          %v334 = vpop.xlane.xlu0 %333
          %335 = vadd.xlane.f32.xlu0 %v319
          %v336 = vpop.xlane.xlu0 %335
          %337 = vadd.xlane.f32.xlu0 %v320
          %v338 = vpop.xlane.xlu0 %337
          %v339 = vrcp.pop 128.0
          %v340 = vmul.f32 %v324, %v339
          %v341 = vmul.f32 %v326, %v339
          %v342 = vmul.f32 %v328, %v339
          %v343 = vmul.f32 %v330, %v339
          %v344 = vmul.f32 %v332, %v339
          %v345 = vmul.f32 %v334, %v339
          %v346 = vmul.f32 %v336, %v339
          %v347 = vmul.f32 %v338, %v339
          %v348 = vsub.f32 %v313, %v340
          %v349 = vsub.f32 %v314, %v341
          %v350 = vsub.f32 %v315, %v342
          %v351 = vsub.f32 %v316, %v343
          %v352 = vsub.f32 %v317, %v344
          %v353 = vsub.f32 %v318, %v345
          %v354 = vsub.f32 %v319, %v346
          %v355 = vsub.f32 %v320, %v347
          %v356 = vmul.f32 %v348, %v348
          %v357 = vmul.f32 %v349, %v349
          %v358 = vmul.f32 %v350, %v350
          %v359 = vmul.f32 %v351, %v351
          %v360 = vmul.f32 %v352, %v352
          %v361 = vmul.f32 %v353, %v353
          %v362 = vmul.f32 %v354, %v354
          %v363 = vmul.f32 %v355, %v355
          %364 = vadd.xlane.f32.xlu0 %v356
          %v365 = vpop.xlane.xlu0 %364
          %366 = vadd.xlane.f32.xlu0 %v357
          %v367 = vpop.xlane.xlu0 %366
          %368 = vadd.xlane.f32.xlu0 %v358
          %v369 = vpop.xlane.xlu0 %368
          %370 = vadd.xlane.f32.xlu0 %v359
          %v371 = vpop.xlane.xlu0 %370
          %372 = vadd.xlane.f32.xlu0 %v360
          %v373 = vpop.xlane.xlu0 %372
          %374 = vadd.xlane.f32.xlu0 %v361
          %v375 = vpop.xlane.xlu0 %374
          %376 = vadd.xlane.f32.xlu0 %v362
          %v377 = vpop.xlane.xlu0 %376
          %378 = vadd.xlane.f32.xlu0 %v363
          %v379 = vpop.xlane.xlu0 %378
          %v380 = vmul.f32 %v365, %v339
          %v381 = vmul.f32 %v367, %v339
          %v382 = vmul.f32 %v369, %v339
          %v383 = vmul.f32 %v371, %v339
          %v384 = vmul.f32 %v373, %v339
          %v385 = vmul.f32 %v375, %v339
          %v386 = vmul.f32 %v377, %v339
          %v387 = vmul.f32 %v379, %v339
          %v388 = vadd.f32 %v380, 1e-05
          %v389 = vadd.f32 %v381, 1e-05
          %v390 = vadd.f32 %v382, 1e-05
          %v391 = vadd.f32 %v383, 1e-05
          %v392 = vadd.f32 %v384, 1e-05
          %v393 = vadd.f32 %v385, 1e-05
          %v394 = vadd.f32 %v386, 1e-05
          %v395 = vadd.f32 %v387, 1e-05
          %v396 = vrsqrt.pop %v388
          %v397 = vrsqrt.pop %v389
          %v398 = vrsqrt.pop %v390
          %v399 = vrsqrt.pop %v391
          %v400 = vrsqrt.pop %v392
          %v401 = vrsqrt.pop %v393
          %v402 = vrsqrt.pop %v394
          %v403 = vrsqrt.pop %v395
          %v404 = vmul.f32 %v348, %v396
          %v405 = vmul.f32 %v349, %v397
          %v406 = vmul.f32 %v350, %v398
          %v407 = vmul.f32 %v351, %v399
          %v408 = vmul.f32 %v352, %v400
          %v409 = vmul.f32 %v353, %v401
          %v410 = vmul.f32 %v354, %v402
          %v411 = vmul.f32 %v355, %v403
          %v413 = vlaneseq
          %v414 = vshrl.u32 %v413, 7
          %v415 = vsub.s32 0, %v414
          %v416 = vrot.slane %v321, %v415
          %v418 = vmul.f32 %v404, %v416
          %v419 = vmul.f32 %v405, %v416
          %v420 = vmul.f32 %v406, %v416
          %v421 = vmul.f32 %v407, %v416
          %v422 = vmul.f32 %v408, %v416
          %v423 = vmul.f32 %v409, %v416
          %v424 = vmul.f32 %v410, %v416
          %v425 = vmul.f32 %v411, %v416
          %v427 = vlaneseq
          %v428 = vshrl.u32 %v427, 7
          %v429 = vsub.s32 0, %v428
          %v430 = vrot.slane %v322, %v429
          %v432 = vadd.f32 %v418, %v430
          %v433 = vadd.f32 %v419, %v430
          %v434 = vadd.f32 %v420, %v430
          %v435 = vadd.f32 %v421, %v430
          %v436 = vadd.f32 %v422, %v430
          %v437 = vadd.f32 %v423, %v430
          %v438 = vadd.f32 %v424, %v430
          %v439 = vadd.f32 %v425, %v430
          %v440 = vpack.c.bf16 %v433, %v432
          %v441 = vpack.c.bf16 %v435, %v434
          %v442 = vpack.c.bf16 %v437, %v436
          %v443 = vpack.c.bf16 %v439, %v438
          %444 = vst [vmem:[#allocation2] sm:$0xff] %v440
          %445 = vst [vmem:[#allocation2 + $0x8] sm:$0xff] %v441
          %446 = vst [vmem:[#allocation2 + $0x10] sm:$0xff] %v442
          %447 = vst [vmem:[#allocation2 + $0x18] sm:$0xff] %v443
        $region52: #{_layer_impl.4} parent=39 // pred_fallthru
          _
        %v448 = vld [vmem:[#allocation2] sm:$0xff]
        %v449 = vld [vmem:[#allocation2 + $0x8] sm:$0xff]
        %v450 = vld [vmem:[#allocation2 + $0x10] sm:$0xff]
        %v451 = vld [vmem:[#allocation2 + $0x18] sm:$0xff]
        %v452 = vld [vmem:[%s269] sm:$0xf]
        %v453 = vld [vmem:[%s269 + $0x4] sm:$0xf]
        %v454 = vld [vmem:[%s269 + $0x8] sm:$0xf]
        %v455 = vld [vmem:[%s269 + $0xc] sm:$0xf]
        %v456 = vld [vmem:[%s269 + $0x10] sm:$0xf]
        %v457 = vld [vmem:[%s269 + $0x14] sm:$0xf]
        %v458 = vld [vmem:[%s269 + $0x18] sm:$0xf]
        %v459 = vld [vmem:[%s269 + $0x1c] sm:$0xf]
        %v460 = vld [vmem:[%s269 + $0x20] sm:$0xf]
        %v461 = vld [vmem:[%s269 + $0x24] sm:$0xf]
        %v462 = vld [vmem:[%s269 + $0x28] sm:$0xf]
        %v463 = vld [vmem:[%s269 + $0x2c] sm:$0xf]
        %v464 = vld [vmem:[%s269 + $0x30] sm:$0xf]
        %v465 = vld [vmem:[%s269 + $0x34] sm:$0xf]
        %v466 = vld [vmem:[%s269 + $0x38] sm:$0xf]
        %v467 = vld [vmem:[%s269 + $0x3c] sm:$0xf]
        %v468 = vld [vmem:[%s306] sm:$0x1]
        %v470 = vlaneseq
        %v471 = vshrl.u32 %v470, 7
        %v472 = vsub.s32 0, %v471
        %v473 = vrot.slane %v468, %v472
        %v491 = vunpack.c.l.b16 %v452
        %v492 = vunpack.c.l.b16 %v453
        %v493 = vunpack.c.l.b16 %v454
        %v494 = vunpack.c.l.b16 %v455
        %v495 = vunpack.c.l.b16 %v456
        %v496 = vunpack.c.l.b16 %v457
        %v497 = vunpack.c.l.b16 %v458
        %v498 = vunpack.c.l.b16 %v459
        %v499 = vunpack.c.l.b16 %v460
        %v500 = vunpack.c.l.b16 %v461
        %v501 = vunpack.c.l.b16 %v462
        %v502 = vunpack.c.l.b16 %v463
        %v503 = vunpack.c.l.b16 %v464
        %v504 = vunpack.c.l.b16 %v465
        %v505 = vunpack.c.l.b16 %v466
        %v506 = vunpack.c.l.b16 %v467
        %v507 = vpack.c.b16 %v492, %v491
        %v508 = vpack.c.b16 %v494, %v493
        %v509 = vpack.c.b16 %v496, %v495
        %v510 = vpack.c.b16 %v498, %v497
        %v511 = vpack.c.b16 %v500, %v499
        %v512 = vpack.c.b16 %v502, %v501
        %v513 = vpack.c.b16 %v504, %v503
        %v514 = vpack.c.b16 %v506, %v505
        %523 = vmatprep.subr.bf16.mxu0 0
        %524 = vmatpush1.bf16.msra.mxu0 %v507
        %525 = vmatprep.subr.bf16.mxu0 0
        %526 = vmatpush1.bf16.msra.mxu0 %v508
        %527 = vmatprep.subr.bf16.mxu0 0
        %528 = vmatpush1.bf16.msra.mxu0 %v509
        %529 = vmatprep.subr.bf16.mxu0 0
        %530 = vmatpush1.bf16.msra.mxu0 %v510
        %531 = vmatprep.subr.bf16.mxu0 0
        %532 = vmatpush1.bf16.msra.mxu0 %v511
        %533 = vmatprep.subr.bf16.mxu0 0
        %534 = vmatpush1.bf16.msra.mxu0 %v512
        %535 = vmatprep.subr.bf16.mxu0 0
        %536 = vmatpush1.bf16.msra.mxu0 %v513
        %537 = vmatprep.subr.bf16.mxu0 0
        %538 = vmatpush1.bf16.msra.mxu0 %v514
        %539 = vmatprep.subr.bf16.mxu0 0
        %540 = vmatpush1.bf16.msra.mxu0 0
        %541 = vmatprep.subr.bf16.mxu0 0
        %542 = vmatpush1.bf16.msra.mxu0 0
        %543 = vmatprep.subr.bf16.mxu0 0
        %544 = vmatpush1.bf16.msra.mxu0 0
        %545 = vmatprep.subr.bf16.mxu0 0
        %546 = vmatpush1.bf16.msra.mxu0 0
        %547 = vmatprep.subr.bf16.mxu0 0
        %548 = vmatpush1.bf16.msra.mxu0 0
        %549 = vmatprep.subr.bf16.mxu0 0
        %550 = vmatpush1.bf16.msra.mxu0 0
        %551 = vmatprep.subr.bf16.mxu0 0
        %552 = vmatpush1.bf16.msra.mxu0 0
        %553 = vmatprep.subr.bf16.mxu0 0
        %554 = vmatpush1.bf16.msra.mxu0 0
        %555 = vmatprep.mubr.bf16.mxu0 0
        %556 = vmatmul.mubr.bf16.gmra.mrb[0].mxu0 %v448
        %v557 = vpop.f32.mrb[0].mxu0
        %v558 = vadd.f32 %v473, %v557
        %v559 = vpop.f32.mrb[0].mxu0
        %v560 = vpop.f32.mrb[0].mxu0
        %v561 = vadd.f32 %v473, %v560
        %v562 = vpop.f32.mrb[0].mxu0
        %563 = vmatprep.mubr.bf16.mxu0 0
        %564 = vmatmul.mubr.bf16.gmra.mrb[0].mxu0 %v449
        %v565 = vpop.f32.mrb[0].mxu0
        %v566 = vadd.f32 %v473, %v565
        %v567 = vpop.f32.mrb[0].mxu0
        %v568 = vpop.f32.mrb[0].mxu0
        %v569 = vadd.f32 %v473, %v568
        %v570 = vpop.f32.mrb[0].mxu0
        %571 = vmatprep.mubr.bf16.mxu0 0
        %572 = vmatmul.mubr.bf16.gmra.mrb[0].mxu0 %v450
        %v573 = vpop.f32.mrb[0].mxu0
        %v574 = vadd.f32 %v473, %v573
        %v575 = vpop.f32.mrb[0].mxu0
        %v576 = vpop.f32.mrb[0].mxu0
        %v577 = vadd.f32 %v473, %v576
        %v578 = vpop.f32.mrb[0].mxu0
        %579 = vmatprep.mubr.bf16.mxu0 0
        %580 = vmatmul.mubr.bf16.gmra.mrb[0].mxu0 %v451
        %v581 = vpop.f32.mrb[0].mxu0
        %v582 = vadd.f32 %v473, %v581
        %v583 = vpop.f32.mrb[0].mxu0
        %v584 = vpop.f32.mrb[0].mxu0
        %v585 = vadd.f32 %v473, %v584
        %v586 = vpop.f32.mrb[0].mxu0
        %587 = vdwg.mxu0
        %v588 = vpack.c.bf16 %v561, %v558
        %v589 = vpack.c.bf16 %v569, %v566
        %v590 = vpack.c.bf16 %v577, %v574
        %v591 = vpack.c.bf16 %v585, %v582
        %v596 = vunpack.c.l.b16 %v588
        %v597 = vunpack.c.h.b16 %v588
        %v598 = vunpack.c.l.b16 %v589
        %v599 = vunpack.c.h.b16 %v589
        %v600 = vunpack.c.l.b16 %v590
        %v601 = vunpack.c.h.b16 %v590
        %v602 = vunpack.c.l.b16 %v591
        %v603 = vunpack.c.h.b16 %v591
        %v604 = vpack.c.b16 %v596, %v596
        %v605 = vpack.c.b16 %v597, %v597
        %v606 = vpack.c.b16 %v598, %v598
        %v607 = vpack.c.b16 %v599, %v599
        %v608 = vpack.c.b16 %v600, %v600
        %v609 = vpack.c.b16 %v601, %v601
        %v610 = vpack.c.b16 %v602, %v602
        %v611 = vpack.c.b16 %v603, %v603
        %620 = vst [vmem:[%s302] sm:$0xf] %v604
        %621 = vst [vmem:[%s302 + $0x4] sm:$0xf] %v605
        %622 = vst [vmem:[%s302 + $0x8] sm:$0xf] %v606
        %623 = vst [vmem:[%s302 + $0xc] sm:$0xf] %v607
        %624 = vst [vmem:[%s302 + $0x10] sm:$0xf] %v608
        %625 = vst [vmem:[%s302 + $0x14] sm:$0xf] %v609
        %626 = vst [vmem:[%s302 + $0x18] sm:$0xf] %v610
        %627 = vst [vmem:[%s302 + $0x1c] sm:$0xf] %v611
        %s628 = sand.u32 %s164, 1
        %s629 = sand.u32 %s164, 1
        %s630 = smul.addr %s629, 32
        %s631 = scalar_lea.vmem [#allocation7], %s630
        // Predicated region
        $region53: #{_layer_impl.4} parent=39 // pred_check
          %p632 = pneg %p174
        $region54: #{_layer_impl.4} parent=39 // pred_check_branch
          %634 = sbr.rel (%p632) target = $region56
        $region55: #{_layer_impl.4} parent=39 // pred_region
          %s635 = smul.u32 8, %s26
          %s636 = smul.addr %s635, 3
          %s637 = sadd.s32 %s27, %s636
          %s638 = smul.addr %s637, 4
          %s639 = scalar_lea.vmem %s5, %s638
          // Predicated region
          $region57: #{_layer_impl.4} parent=55 // pred_check
            _
          $region58: #{_layer_impl.4} parent=55 // pred_check_branch
            %641 = sbr.rel (0) target = $region60
          $region59: #{_layer_impl.4} parent=55 // pred_region
            // Predicated region
            $region61: #{_layer_impl.4} parent=59 // pred_check
              _
            $region62: #{_layer_impl.4} parent=59 // pred_check_branch
              %643 = sbr.rel target = $region64
            $region63: #{_layer_impl.4} parent=59 // pred_region
              // Predicated region
              $region76: #{_layer_impl.4} parent=63 // pred_check
                _
              $region77: #{_layer_impl.4} parent=63 // pred_check_branch
                %672 = sbr.rel (0) target = $region79
              $region78: #{_layer_impl.4} parent=63 // pred_region
                loop: start=0, step=1, limit=1
                $region80: #{_layer_impl.4} parent=78 // loop_pre_header
                  _
                $region81: #{_layer_impl.4} parent=78 // loop_header
                  %s674 = sphi 0, %s678
                  %p675 = scmp.ge.s32.totalorder %s674, 1
                  %s679 = sphi %s631, %s631
                  %s680 = sphi %s639, %s639
                $region82: #{_layer_impl.4} parent=78 // loop_header_branch
                  %677 = sbr.rel (%p675) target = $region86
                $region83: #{_layer_impl.4} parent=78 // loop_body
                  _
                $region84: #{_layer_impl.4} parent=78 // loop_footer
                  %s678 = sadd.s32 1, %s674
                $region85: #{_layer_impl.4} parent=78 // loop_footer_branch
                  %673 = sbr.rel target = $region81
                $region86: #{_layer_impl.4} parent=78 // loop_exit
                  _
                loop: start=0, step=1, limit=1
                $region87: #{_layer_impl.4} parent=78 // loop_pre_header
                  _
                $region88: #{_layer_impl.4} parent=78 // loop_header
                  %s683 = sphi 0, %s687
                  %p684 = scmp.ge.s32.totalorder %s683, 1
                  %s688 = sphi %s631, %s631
                  %s689 = sphi %s639, %s639
                $region89: #{_layer_impl.4} parent=78 // loop_header_branch
                  %686 = sbr.rel (%p684) target = $region93
                $region90: #{_layer_impl.4} parent=78 // loop_body
                  %v690 = vld [vmem:[%s688] sm:$0xf]
                  %691 = vst [vmem:[%s689] sm:$0xf] %v690
                  %v692 = vld [vmem:[%s688 + $0x4] sm:$0xf]
                  %693 = vst [vmem:[%s689 + $0xc] sm:$0xf] %v692
                  %v694 = vld [vmem:[%s688 + $0x8] sm:$0xf]
                  %695 = vst [vmem:[%s689 + $0x18] sm:$0xf] %v694
                  %v696 = vld [vmem:[%s688 + $0xc] sm:$0xf]
                  %697 = vst [vmem:[%s689 + $0x24] sm:$0xf] %v696
                  %v698 = vld [vmem:[%s688 + $0x10] sm:$0xf]
                  %699 = vst [vmem:[%s689 + $0x30] sm:$0xf] %v698
                  %v700 = vld [vmem:[%s688 + $0x14] sm:$0xf]
                  %701 = vst [vmem:[%s689 + $0x3c] sm:$0xf] %v700
                  %v702 = vld [vmem:[%s688 + $0x18] sm:$0xf]
                  %703 = vst [vmem:[%s689 + $0x48] sm:$0xf] %v702
                  %v704 = vld [vmem:[%s688 + $0x1c] sm:$0xf]
                  %705 = vst [vmem:[%s689 + $0x54] sm:$0xf] %v704
                $region91: #{_layer_impl.4} parent=78 // loop_footer
                  %s687 = sadd.s32 1, %s683
                $region92: #{_layer_impl.4} parent=78 // loop_footer_branch
                  %682 = sbr.rel target = $region88
                $region93: #{_layer_impl.4} parent=78 // loop_exit
                  _
              $region79: #{_layer_impl.4} parent=63 // pred_fallthru
                _
            $region64: #{_layer_impl.4} parent=59 // pred_fallthru
              _
            // Predicated region
            $region65: #{_layer_impl.4} parent=59 // pred_check
              _
            $region66: #{_layer_impl.4} parent=59 // pred_check_branch
              %645 = sbr.rel (0) target = $region68
            $region67: #{_layer_impl.4} parent=59 // pred_region
              loop: start=0, step=1, limit=1
              $region69: #{_layer_impl.4} parent=67 // loop_pre_header
                _
              $region70: #{_layer_impl.4} parent=67 // loop_header
                %s648 = sphi 0, %s652
                %p649 = scmp.ge.s32.totalorder %s648, 1
                %s653 = sphi %s631, %s631
                %s654 = sphi %s639, %s639
              $region71: #{_layer_impl.4} parent=67 // loop_header_branch
                %651 = sbr.rel (%p649) target = $region75
              $region72: #{_layer_impl.4} parent=67 // loop_body
                %v655 = vld [vmem:[%s653] sm:$0xf]
                %656 = vst [vmem:[%s654] sm:$0xf] %v655
                %v657 = vld [vmem:[%s653 + $0x4] sm:$0xf]
                %658 = vst [vmem:[%s654 + $0xc] sm:$0xf] %v657
                %v659 = vld [vmem:[%s653 + $0x8] sm:$0xf]
                %660 = vst [vmem:[%s654 + $0x18] sm:$0xf] %v659
                %v661 = vld [vmem:[%s653 + $0xc] sm:$0xf]
                %662 = vst [vmem:[%s654 + $0x24] sm:$0xf] %v661
                %v663 = vld [vmem:[%s653 + $0x10] sm:$0xf]
                %664 = vst [vmem:[%s654 + $0x30] sm:$0xf] %v663
                %v665 = vld [vmem:[%s653 + $0x14] sm:$0xf]
                %666 = vst [vmem:[%s654 + $0x3c] sm:$0xf] %v665
                %v667 = vld [vmem:[%s653 + $0x18] sm:$0xf]
                %668 = vst [vmem:[%s654 + $0x48] sm:$0xf] %v667
                %v669 = vld [vmem:[%s653 + $0x1c] sm:$0xf]
                %670 = vst [vmem:[%s654 + $0x54] sm:$0xf] %v669
              $region73: #{_layer_impl.4} parent=67 // loop_footer
                %s652 = sadd.s32 1, %s648
              $region74: #{_layer_impl.4} parent=67 // loop_footer_branch
                %647 = sbr.rel target = $region70
              $region75: #{_layer_impl.4} parent=67 // loop_exit
                _
            $region68: #{_layer_impl.4} parent=59 // pred_fallthru
              _
          $region60: #{_layer_impl.4} parent=55 // pred_fallthru
            _
          %706 = vnop
        $region56: #{_layer_impl.4} parent=39 // pred_fallthru
          _
      $region40: #{_layer_impl.4} parent=5 // pred_fallthru
        _
      %p707 = scmp.le.s32.totalorder 2, %s17
      // Predicated region
      $region94: #{_layer_impl.4} parent=5 // pred_check
        %p708 = pneg %p707
      $region95: #{_layer_impl.4} parent=5 // pred_check_branch
        %710 = sbr.rel (%p708) target = $region97
      $region96: #{_layer_impl.4} parent=5 // pred_region
        %s711 = ssub.s32 %s17, 2
        // Predicated region
        $region98: #{_layer_impl.4} parent=96 // pred_check
          %p712 = pneg %p180
        $region99: #{_layer_impl.4} parent=96 // pred_check_branch
          %714 = sbr.rel (%p712) target = $region101
        $region100: #{_layer_impl.4} parent=96 // pred_region
          %s715 = sand.u32 %s165, 1
          %s716 = sand.u32 %s165, 1
          %s717 = smul.addr %s716, 32
          %s718 = scalar_lea.vmem [#allocation7], %s717
        $region101: #{_layer_impl.4} parent=96 // pred_fallthru
          _
      $region97: #{_layer_impl.4} parent=5 // pred_fallthru
        _
    $region6: #{_layer_impl.4} parent=1 // loop_footer
      %s21 = sadd.s32 1, %s17
    $region7: #{_layer_impl.4} parent=1 // loop_footer_branch
      %16 = sbr.rel target = $region3
    $region8: #{_layer_impl.4} parent=1 // loop_exit
      _
    %719 = vsyncpa [#allocation4], 1
    %s720 = scalar_lea.sflag [#allocation4], 1
    %721 = vsyncpa %s720, 1
    %722 = vsyncpa [#allocation6], 1
    %s723 = scalar_lea.sflag [#allocation6], 1
    %724 = vsyncpa %s723, 1

// kernel: _layer_impl.6
$region0: #{_layer_impl.6}
  #allocation0 [shape = 'u32[]', space=smem, size = 0x4, offset = 0x4, fixed_abs, tag = 'smem constant byte address 0x4 - core index']
  #allocation1 [shape = 'u32[144,128]{1,0:T(1,128)}', space=vmem, size = 0x12000, scoped, tag = 'internal scratch']
  %s0 = inlined_call_operand.vmem [shape: f32[128,128], index: 0, kind: input, shape index: {}]
  %s1 = inlined_call_operand.vmem [shape: bf16[128,128], index: 1, kind: input, shape index: {}]
  %s2 = inlined_call_operand.vmem [shape: bf16[128,128], index: 2, kind: input, shape index: {}]
  %s3 = inlined_call_operand.vmem [shape: f32[1,128], index: 3, kind: input, shape index: {}]
  %s4 = inlined_call_operand.vmem [shape: f32[128,128], index: 4, kind: output, shape index: {}]
  %s5 = sld [smem:[#allocation0]]
  $region49: #{_layer_impl.6} parent=0
    _
  %s7 = ssub.s32 1, %s5
  %s8 = scalar_select 0, %s7, %s5
  loop: start=0, step=1, limit=4
  $region2: #{_layer_impl.6} parent=0 // loop_pre_header
    _
  $region3: #{_layer_impl.6} parent=0 // loop_header
    %s10 = sphi 0, %s14
    %p11 = scmp.ge.s32.totalorder %s10, 4
    %s17 = sphi 0, %s29
    %s18 = sphi 0, %s25
    %s19 = sphi 0, %s17
    %s20 = sphi 0, %s18
    %s21 = sphi 0, %s19
    %s22 = sphi 0, %s20
    %s34 = sphi 0, %s36
    %s37 = sphi 0, %s34
    %s38 = sphi 0, %s37
    %s54 = sphi 0, %s38
    %s60 = sphi 0, %s62
    %s63 = sphi 0, %s60
    %s64 = sphi 0, %s63
    %s80 = sphi 0, %s64
    %s86 = sphi 0, %s88
    %s89 = sphi 0, %s86
    %s90 = sphi 0, %s89
    %s106 = sphi 0, %s90
    %s112 = sphi 0, %s114
    %s115 = sphi 0, %s112
    %s116 = sphi 0, %s115
    %s132 = sphi 0, %s116
    %s140 = sphi 0, %s142
    %s143 = sphi 0, %s140
    %s144 = sphi 0, %s143
    %s160 = sphi 0, %s144
  $region4: #{_layer_impl.6} parent=0 // loop_header_branch
    %13 = sbr.rel (%p11) target = $region8
  $region5: #{_layer_impl.6} parent=0 // loop_body
    %s15 = ssub.s32 %s10, 1
    %s16 = ssub.s32 %s10, 2
    %s23 = sadd.s32 1, %s18
    %p24 = scmp.ge.s32.totalorder %s23, 1
    %s25 = scalar_select %p24, 0, %s23
    %s26 = sadd.s32 1, %s17
    %s27 = scalar_select %p24, %s26, %s17
    %p28 = scmp.ge.s32.totalorder %s27, 2
    %s29 = scalar_select %p28, 0, %s27
    %s30 = ssub.s32 %s17, %s29
    %s31 = ssub.s32 %s18, %s25
    %s32 = sor.u32 %s30, %s31
    %p33 = scmp.eq.s32.totalorder %s32, 0
    %s35 = sadd.s32 %s34, 1
    %s36 = scalar_select %p33, %s34, %s35
    %p39 = pneg %p33
    %p40 = scmp.eq.s32.totalorder %s10, 1
    %p41 = por %p39, %p40
    %p42 = scmp.ne.s32.totalorder %s34, %s37
    %p43 = scmp.eq.s32.totalorder %s10, 0
    %p44 = por %p42, %p43
    %p45 = scmp.ne.s32.totalorder %s34, %s37
    %p46 = scmp.eq.s32.totalorder %s15, 1
    %p47 = por %p45, %p46
    %p48 = scmp.ne.s32.totalorder %s37, %s38
    %p49 = scmp.eq.s32.totalorder %s15, 0
    %p50 = por %p48, %p49
    %p51 = scmp.ne.s32.totalorder %s37, %s38
    %p52 = scmp.eq.s32.totalorder %s16, 1
    %p53 = por %p51, %p52
    %p55 = scmp.ne.s32.totalorder %s38, %s54
    %p56 = scmp.eq.s32.totalorder %s16, 0
    %p57 = por %p55, %p56
    %s58 = ssub.s32 %s17, %s29
    %p59 = scmp.eq.s32.totalorder %s58, 0
    %s61 = sadd.s32 %s60, 1
    %s62 = scalar_select %p59, %s60, %s61
    %p65 = pneg %p59
    %p66 = scmp.eq.s32.totalorder %s10, 1
    %p67 = por %p65, %p66
    %p68 = scmp.ne.s32.totalorder %s60, %s63
    %p69 = scmp.eq.s32.totalorder %s10, 0
    %p70 = por %p68, %p69
    %p71 = scmp.ne.s32.totalorder %s60, %s63
    %p72 = scmp.eq.s32.totalorder %s15, 1
    %p73 = por %p71, %p72
    %p74 = scmp.ne.s32.totalorder %s63, %s64
    %p75 = scmp.eq.s32.totalorder %s15, 0
    %p76 = por %p74, %p75
    %p77 = scmp.ne.s32.totalorder %s63, %s64
    %p78 = scmp.eq.s32.totalorder %s16, 1
    %p79 = por %p77, %p78
    %p81 = scmp.ne.s32.totalorder %s64, %s80
    %p82 = scmp.eq.s32.totalorder %s16, 0
    %p83 = por %p81, %p82
    %s84 = ssub.s32 %s18, %s25
    %p85 = scmp.eq.s32.totalorder %s84, 0
    %s87 = sadd.s32 %s86, 1
    %s88 = scalar_select %p85, %s86, %s87
    %p91 = pneg %p85
    %p92 = scmp.eq.s32.totalorder %s10, 1
    %p93 = por %p91, %p92
    %p94 = scmp.ne.s32.totalorder %s86, %s89
    %p95 = scmp.eq.s32.totalorder %s10, 0
    %p96 = por %p94, %p95
    %p97 = scmp.ne.s32.totalorder %s86, %s89
    %p98 = scmp.eq.s32.totalorder %s15, 1
    %p99 = por %p97, %p98
    %p100 = scmp.ne.s32.totalorder %s89, %s90
    %p101 = scmp.eq.s32.totalorder %s15, 0
    %p102 = por %p100, %p101
    %p103 = scmp.ne.s32.totalorder %s89, %s90
    %p104 = scmp.eq.s32.totalorder %s16, 1
    %p105 = por %p103, %p104
    %p107 = scmp.ne.s32.totalorder %s90, %s106
    %p108 = scmp.eq.s32.totalorder %s16, 0
    %p109 = por %p107, %p108
    %s110 = ssub.s32 %s18, %s25
    %p111 = scmp.eq.s32.totalorder %s110, 0
    %s113 = sadd.s32 %s112, 1
    %s114 = scalar_select %p111, %s112, %s113
    %p117 = pneg %p111
    %p118 = scmp.eq.s32.totalorder %s10, 1
    %p119 = por %p117, %p118
    %p120 = scmp.ne.s32.totalorder %s112, %s115
    %p121 = scmp.eq.s32.totalorder %s10, 0
    %p122 = por %p120, %p121
    %p123 = scmp.ne.s32.totalorder %s112, %s115
    %p124 = scmp.eq.s32.totalorder %s15, 1
    %p125 = por %p123, %p124
    %p126 = scmp.ne.s32.totalorder %s115, %s116
    %p127 = scmp.eq.s32.totalorder %s15, 0
    %p128 = por %p126, %p127
    %p129 = scmp.ne.s32.totalorder %s115, %s116
    %p130 = scmp.eq.s32.totalorder %s16, 1
    %p131 = por %p129, %p130
    %p133 = scmp.ne.s32.totalorder %s116, %s132
    %p134 = scmp.eq.s32.totalorder %s16, 0
    %p135 = por %p133, %p134
    %s136 = ssub.s32 %s17, %s29
    %s137 = ssub.s32 %s18, %s25
    %s138 = sor.u32 %s136, %s137
    %p139 = scmp.eq.s32.totalorder %s138, 0
    %s141 = sadd.s32 %s140, 1
    %s142 = scalar_select %p139, %s140, %s141
    %p145 = pneg %p139
    %p146 = scmp.eq.s32.totalorder %s10, 1
    %p147 = por %p145, %p146
    %p148 = scmp.ne.s32.totalorder %s140, %s143
    %p149 = scmp.eq.s32.totalorder %s10, 0
    %p150 = por %p148, %p149
    %p151 = scmp.ne.s32.totalorder %s140, %s143
    %p152 = scmp.eq.s32.totalorder %s15, 1
    %p153 = por %p151, %p152
    %p154 = scmp.ne.s32.totalorder %s143, %s144
    %p155 = scmp.eq.s32.totalorder %s15, 0
    %p156 = por %p154, %p155
    %p157 = scmp.ne.s32.totalorder %s143, %s144
    %p158 = scmp.eq.s32.totalorder %s16, 1
    %p159 = por %p157, %p158
    %p161 = scmp.ne.s32.totalorder %s144, %s160
    %p162 = scmp.eq.s32.totalorder %s16, 0
    %p163 = por %p161, %p162
    %p164 = scmp.le.s32.totalorder 1, %s10
    %p165 = scmp.lt.s32.totalorder %s10, 3
    %p166 = pnand %p164, %p165
    %p167 = pneg %p166
    // Predicated region
    $region9: #{_layer_impl.6} parent=5 // pred_check
      _
    $region10: #{_layer_impl.6} parent=5 // pred_check_branch
      %169 = sbr.rel (%p166) target = $region12
    $region11: #{_layer_impl.6} parent=5 // pred_region
      %s170 = ssub.s32 %s10, 1
      // Predicated region
      $region13: #{_layer_impl.6} parent=11 // pred_check
        %p171 = pneg %p102
      $region14: #{_layer_impl.6} parent=11 // pred_check_branch
        %173 = sbr.rel (%p171) target = $region16
      $region15: #{_layer_impl.6} parent=11 // pred_region
        %p174 = scmp.lt.s32.totalorder %s20, 0
        %s175 = scalar_select %p174, %s20, 0
        %s176 = smul.addr %s175, 4
        %s177 = scalar_lea.vmem %s2, %s176
      $region16: #{_layer_impl.6} parent=11 // pred_fallthru
        _
      // Predicated region
      $region17: #{_layer_impl.6} parent=11 // pred_check
        %p178 = pneg %p128
      $region18: #{_layer_impl.6} parent=11 // pred_check_branch
        %180 = sbr.rel (%p178) target = $region20
      $region19: #{_layer_impl.6} parent=11 // pred_region
        %p181 = scmp.lt.s32.totalorder %s20, 0
        %s182 = scalar_select %p181, %s20, 0
        %s183 = scalar_lea.vmem %s3, %s182
      $region20: #{_layer_impl.6} parent=11 // pred_fallthru
        _
    $region12: #{_layer_impl.6} parent=5 // pred_fallthru
      _
    %p184 = scmp.lt.s32.totalorder %s10, 2
    // Predicated region
    $region21: #{_layer_impl.6} parent=5 // pred_check
      %p185 = pneg %p184
    $region22: #{_layer_impl.6} parent=5 // pred_check_branch
      %187 = sbr.rel (%p185) target = $region24
    $region23: #{_layer_impl.6} parent=5 // pred_region
      // Predicated region
      $region25: #{_layer_impl.6} parent=23 // pred_check
        %p188 = pneg %p44
      $region26: #{_layer_impl.6} parent=23 // pred_check_branch
        %190 = sbr.rel (%p188) target = $region28
      $region27: #{_layer_impl.6} parent=23 // pred_region
        %s191 = smul.u32 8, %s17
        %p192 = scmp.lt.s32.totalorder %s191, 15
        %s193 = scalar_select %p192, %s191, 15
        %p194 = scmp.lt.s32.totalorder %s18, 0
        %s195 = scalar_select %p194, %s18, 0
        %s196 = sadd.s32 %s195, %s193
        %s197 = smul.addr %s196, 8
        %s198 = scalar_lea.vmem %s0, %s197
        %s199 = smul.u32 8, %s17
      $region28: #{_layer_impl.6} parent=23 // pred_fallthru
        _
      // Predicated region
      $region29: #{_layer_impl.6} parent=23 // pred_check
        %p200 = pneg %p70
      $region30: #{_layer_impl.6} parent=23 // pred_check_branch
        %202 = sbr.rel (%p200) target = $region32
      $region31: #{_layer_impl.6} parent=23 // pred_region
        %s203 = smul.u32 8, %s17
        %p204 = scmp.lt.s32.totalorder %s203, 15
        %s205 = scalar_select %p204, %s203, 15
        %s206 = smul.addr %s205, 4
        %s207 = scalar_lea.vmem %s1, %s206
        %s208 = smul.u32 8, %s17
      $region32: #{_layer_impl.6} parent=23 // pred_fallthru
        _
    $region24: #{_layer_impl.6} parent=5 // pred_fallthru
      _
    %p209 = scmp.le.s32.totalorder 1, %s10
    %p210 = scmp.lt.s32.totalorder %s10, 3
    %p211 = pnand %p209, %p210
    %p212 = pneg %p211
    // Predicated region
    $region33: #{_layer_impl.6} parent=5 // pred_check
      _
    $region34: #{_layer_impl.6} parent=5 // pred_check_branch
      %214 = sbr.rel (%p211) target = $region36
    $region35: #{_layer_impl.6} parent=5 // pred_region
      %s215 = ssub.s32 %s10, 1
      %s216 = smul.u32 8, %s19
      %p217 = scmp.lt.s32.totalorder %s216, 15
      %s218 = scalar_select %p217, %s216, 15
      %p219 = scmp.lt.s32.totalorder %s20, 0
      %s220 = scalar_select %p219, %s20, 0
      %s221 = sadd.s32 %s220, %s218
      %s222 = smul.addr %s221, 8
      %s223 = scalar_lea.vmem %s0, %s222
      %p224 = pneg %p50
      %p225 = pneg %p47
      %s226 = smul.u32 8, %s19
      %p227 = scmp.lt.s32.totalorder %s226, 15
      %s228 = scalar_select %p227, %s226, 15
      %s229 = smul.addr %s228, 4
      %s230 = scalar_lea.vmem %s1, %s229
      %p231 = pneg %p76
      %p232 = pneg %p73
      %p233 = scmp.lt.s32.totalorder %s20, 0
      %s234 = scalar_select %p233, %s20, 0
      %s235 = smul.addr %s234, 4
      %s236 = scalar_lea.vmem %s2, %s235
      %p237 = pneg %p102
      %p238 = pneg %p99
      %p239 = scmp.lt.s32.totalorder %s20, 0
      %s240 = scalar_select %p239, %s20, 0
      %s241 = scalar_lea.vmem %s3, %s240
      %p242 = pneg %p128
      %p243 = pneg %p125
      %p244 = pneg %p156
      %p245 = pneg %p153
      %s246 = smul.u32 8, %s19
      %p247 = scmp.lt.s32.totalorder %s246, 15
      %s248 = scalar_select %p247, %s246, 15
      %p249 = scmp.lt.s32.totalorder %s20, 0
      %s250 = scalar_select %p249, %s20, 0
      %s251 = sadd.s32 %s250, %s248
      %s252 = smul.addr %s251, 8
      %s253 = scalar_lea.vmem %s4, %s252
      %s254 = smul.u32 8, %s19
      %p255 = scmp.lt.s32.totalorder %s254, 15
      %s256 = scalar_select %p255, %s254, 15
      %p257 = scmp.lt.s32.totalorder %s20, 0
      %s258 = scalar_select %p257, %s20, 0
      %s259 = sadd.s32 %s258, %s256
      %s260 = smul.addr %s259, 8
      %s261 = scalar_lea.vmem %s0, %s260
      %s262 = smul.u32 8, %s19
      %s263 = smul.u32 8, %s19
      %p264 = scmp.lt.s32.totalorder %s263, 15
      %s265 = scalar_select %p264, %s263, 15
      %s266 = smul.addr %s265, 4
      %s267 = scalar_lea.vmem %s1, %s266
      %s268 = smul.u32 8, %s19
      %p269 = scmp.lt.s32.totalorder %s20, 0
      %s270 = scalar_select %p269, %s20, 0
      %s271 = smul.addr %s270, 4
      %s272 = scalar_lea.vmem %s2, %s271
      %p273 = scmp.lt.s32.totalorder %s20, 0
      %s274 = scalar_select %p273, %s20, 0
      %s275 = scalar_lea.vmem %s3, %s274
      %s276 = smul.u32 8, %s19
      %p277 = scmp.lt.s32.totalorder %s276, 15
      %s278 = scalar_select %p277, %s276, 15
      %p279 = scmp.lt.s32.totalorder %s20, 0
      %s280 = scalar_select %p279, %s20, 0
      %s281 = sadd.s32 %s280, %s278
      %s282 = smul.addr %s281, 8
      %s283 = scalar_lea.vmem %s4, %s282
      %s284 = smul.u32 8, %s19
      %v286 = vld [vmem:[%s261] sm:$0xff]
      %v287 = vld [vmem:[%s261 + $0x8] sm:$0xff]
      %v288 = vld [vmem:[%s261 + $0x10] sm:$0xff]
      %v289 = vld [vmem:[%s261 + $0x18] sm:$0xff]
      %v290 = vld [vmem:[%s261 + $0x20] sm:$0xff]
      %v291 = vld [vmem:[%s261 + $0x28] sm:$0xff]
      %v292 = vld [vmem:[%s261 + $0x30] sm:$0xff]
      %v293 = vld [vmem:[%s261 + $0x38] sm:$0xff]
      %v294 = vld [vmem:[%s267] sm:$0xf]
      %v295 = vld [vmem:[%s267 + $0x4] sm:$0xf]
      %v296 = vld [vmem:[%s267 + $0x8] sm:$0xf]
      %v297 = vld [vmem:[%s267 + $0xc] sm:$0xf]
      %v298 = vld [vmem:[%s267 + $0x10] sm:$0xf]
      %v299 = vld [vmem:[%s267 + $0x14] sm:$0xf]
      %v300 = vld [vmem:[%s267 + $0x18] sm:$0xf]
      %v301 = vld [vmem:[%s267 + $0x1c] sm:$0xf]
      %v302 = vld [vmem:[%s272] sm:$0xf]
      %v303 = vld [vmem:[%s272 + $0x4] sm:$0xf]
      %v304 = vld [vmem:[%s272 + $0x8] sm:$0xf]
      %v305 = vld [vmem:[%s272 + $0xc] sm:$0xf]
      %v306 = vld [vmem:[%s272 + $0x10] sm:$0xf]
      %v307 = vld [vmem:[%s272 + $0x14] sm:$0xf]
      %v308 = vld [vmem:[%s272 + $0x18] sm:$0xf]
      %v309 = vld [vmem:[%s272 + $0x1c] sm:$0xf]
      %v310 = vld [vmem:[%s272 + $0x20] sm:$0xf]
      %v311 = vld [vmem:[%s272 + $0x24] sm:$0xf]
      %v312 = vld [vmem:[%s272 + $0x28] sm:$0xf]
      %v313 = vld [vmem:[%s272 + $0x2c] sm:$0xf]
      %v314 = vld [vmem:[%s272 + $0x30] sm:$0xf]
      %v315 = vld [vmem:[%s272 + $0x34] sm:$0xf]
      %v316 = vld [vmem:[%s272 + $0x38] sm:$0xf]
      %v317 = vld [vmem:[%s272 + $0x3c] sm:$0xf]
      %v326 = vunpack.c.l.b16 %v294
      %v327 = vunpack.c.l.b16 %v295
      %v328 = vunpack.c.l.b16 %v296
      %v329 = vunpack.c.l.b16 %v297
      %v330 = vunpack.c.l.b16 %v298
      %v331 = vunpack.c.l.b16 %v299
      %v332 = vunpack.c.l.b16 %v300
      %v333 = vunpack.c.l.b16 %v301
      %v334 = vpack.c.b16 %v327, %v326
      %v335 = vpack.c.b16 %v329, %v328
      %v336 = vpack.c.b16 %v331, %v330
      %v337 = vpack.c.b16 %v333, %v332
      %v358 = vunpack.c.l.b16 %v302
      %v359 = vunpack.c.l.b16 %v303
      %v360 = vunpack.c.l.b16 %v304
      %v361 = vunpack.c.l.b16 %v305
      %v362 = vunpack.c.l.b16 %v306
      %v363 = vunpack.c.l.b16 %v307
      %v364 = vunpack.c.l.b16 %v308
      %v365 = vunpack.c.l.b16 %v309
      %v366 = vunpack.c.l.b16 %v310
      %v367 = vunpack.c.l.b16 %v311
      %v368 = vunpack.c.l.b16 %v312
      %v369 = vunpack.c.l.b16 %v313
      %v370 = vunpack.c.l.b16 %v314
      %v371 = vunpack.c.l.b16 %v315
      %v372 = vunpack.c.l.b16 %v316
      %v373 = vunpack.c.l.b16 %v317
      %v374 = vpack.c.b16 %v359, %v358
      %v375 = vpack.c.b16 %v361, %v360
      %v376 = vpack.c.b16 %v363, %v362
      %v377 = vpack.c.b16 %v365, %v364
      %v378 = vpack.c.b16 %v367, %v366
      %v379 = vpack.c.b16 %v369, %v368
      %v380 = vpack.c.b16 %v371, %v370
      %v381 = vpack.c.b16 %v373, %v372
      %390 = vmatprep.subr.bf16.mxu0 0
      %391 = vmatpush1.bf16.msra.mxu0 %v374
      %392 = vmatprep.subr.bf16.mxu0 0
      %393 = vmatpush1.bf16.msra.mxu0 %v375
      %394 = vmatprep.subr.bf16.mxu0 0
      %395 = vmatpush1.bf16.msra.mxu0 %v376
      %396 = vmatprep.subr.bf16.mxu0 0
      %397 = vmatpush1.bf16.msra.mxu0 %v377
      %398 = vmatprep.subr.bf16.mxu0 0
      %399 = vmatpush1.bf16.msra.mxu0 %v378
      %400 = vmatprep.subr.bf16.mxu0 0
      %401 = vmatpush1.bf16.msra.mxu0 %v379
      %402 = vmatprep.subr.bf16.mxu0 0
      %403 = vmatpush1.bf16.msra.mxu0 %v380
      %404 = vmatprep.subr.bf16.mxu0 0
      %405 = vmatpush1.bf16.msra.mxu0 %v381
      %406 = vmatprep.subr.bf16.mxu0 0
      %407 = vmatpush1.bf16.msra.mxu0 0
      %408 = vmatprep.subr.bf16.mxu0 0
      %409 = vmatpush1.bf16.msra.mxu0 0
      %410 = vmatprep.subr.bf16.mxu0 0
      %411 = vmatpush1.bf16.msra.mxu0 0
      %412 = vmatprep.subr.bf16.mxu0 0
      %413 = vmatpush1.bf16.msra.mxu0 0
      %414 = vmatprep.subr.bf16.mxu0 0
      %415 = vmatpush1.bf16.msra.mxu0 0
      %416 = vmatprep.subr.bf16.mxu0 0
      %417 = vmatpush1.bf16.msra.mxu0 0
      %418 = vmatprep.subr.bf16.mxu0 0
      %419 = vmatpush1.bf16.msra.mxu0 0
      %420 = vmatprep.subr.bf16.mxu0 0
      %421 = vmatpush1.bf16.msra.mxu0 0
      %422 = vmatprep.mubr.bf16.mxu0 0
      %423 = vmatmul.mubr.bf16.gmra.mrb[0].mxu0 %v334
      %v424 = vpop.f32.mrb[0].mxu0
      %v425 = vadd.f32 0.0, %v424
      %v426 = vpop.f32.mrb[0].mxu0
      %v427 = vpop.f32.mrb[0].mxu0
      %v428 = vadd.f32 0.0, %v427
      %v429 = vpop.f32.mrb[0].mxu0
      %430 = vmatprep.mubr.bf16.mxu0 0
      %431 = vmatmul.mubr.bf16.gmra.mrb[0].mxu0 %v335
      %v432 = vpop.f32.mrb[0].mxu0
      %v433 = vadd.f32 0.0, %v432
      %v434 = vpop.f32.mrb[0].mxu0
      %v435 = vpop.f32.mrb[0].mxu0
      %v436 = vadd.f32 0.0, %v435
      %v437 = vpop.f32.mrb[0].mxu0
      %438 = vmatprep.mubr.bf16.mxu0 0
      %439 = vmatmul.mubr.bf16.gmra.mrb[0].mxu0 %v336
      %v440 = vpop.f32.mrb[0].mxu0
      %v441 = vadd.f32 0.0, %v440
      %v442 = vpop.f32.mrb[0].mxu0
      %v443 = vpop.f32.mrb[0].mxu0
      %v444 = vadd.f32 0.0, %v443
      %v445 = vpop.f32.mrb[0].mxu0
      %446 = vmatprep.mubr.bf16.mxu0 0
      %447 = vmatmul.mubr.bf16.gmra.mrb[0].mxu0 %v337
      %v448 = vpop.f32.mrb[0].mxu0
      %v449 = vadd.f32 0.0, %v448
      %v450 = vpop.f32.mrb[0].mxu0
      %v451 = vpop.f32.mrb[0].mxu0
      %v452 = vadd.f32 0.0, %v451
      %v453 = vpop.f32.mrb[0].mxu0
      %454 = vdwg.mxu0
      %v455 = vadd.f32 %v286, %v425
      %v456 = vadd.f32 %v287, %v428
      %v457 = vadd.f32 %v288, %v433
      %v458 = vadd.f32 %v289, %v436
      %v459 = vadd.f32 %v290, %v441
      %v460 = vadd.f32 %v291, %v444
      %v461 = vadd.f32 %v292, %v449
      %v462 = vadd.f32 %v293, %v452
      %v463 = vld [vmem:[%s275] sm:$0x1]
      %v465 = vlaneseq
      %v466 = vshrl.u32 %v465, 7
      %v467 = vsub.s32 0, %v466
      %v468 = vrot.slane %v463, %v467
      %v470 = vadd.f32 %v455, %v468
      %v471 = vadd.f32 %v456, %v468
      %v472 = vadd.f32 %v457, %v468
      %v473 = vadd.f32 %v458, %v468
      %v474 = vadd.f32 %v459, %v468
      %v475 = vadd.f32 %v460, %v468
      %v476 = vadd.f32 %v461, %v468
      %v477 = vadd.f32 %v462, %v468
      %478 = vst [vmem:[%s283] sm:$0xff] %v470
      %479 = vst [vmem:[%s283 + $0x8] sm:$0xff] %v471
      %480 = vst [vmem:[%s283 + $0x10] sm:$0xff] %v472
      %481 = vst [vmem:[%s283 + $0x18] sm:$0xff] %v473
      %482 = vst [vmem:[%s283 + $0x20] sm:$0xff] %v474
      %483 = vst [vmem:[%s283 + $0x28] sm:$0xff] %v475
      %484 = vst [vmem:[%s283 + $0x30] sm:$0xff] %v476
      %485 = vst [vmem:[%s283 + $0x38] sm:$0xff] %v477
      %s486 = smul.u32 8, %s19
      %p487 = scmp.lt.s32.totalorder %s486, 15
      %s488 = scalar_select %p487, %s486, 15
      %p489 = scmp.lt.s32.totalorder %s20, 0
      %s490 = scalar_select %p489, %s20, 0
      %s491 = sadd.s32 %s490, %s488
      %s492 = smul.addr %s491, 8
      %s493 = scalar_lea.vmem %s4, %s492
      // Predicated region
      $region37: #{_layer_impl.6} parent=35 // pred_check
        %p494 = pneg %p153
      $region38: #{_layer_impl.6} parent=35 // pred_check_branch
        %496 = sbr.rel (%p494) target = $region40
      $region39: #{_layer_impl.6} parent=35 // pred_region
        %s497 = smul.u32 8, %s19
      $region40: #{_layer_impl.6} parent=35 // pred_fallthru
        _
    $region36: #{_layer_impl.6} parent=5 // pred_fallthru
      _
    %p498 = scmp.le.s32.totalorder 2, %s10
    // Predicated region
    $region41: #{_layer_impl.6} parent=5 // pred_check
      %p499 = pneg %p498
    $region42: #{_layer_impl.6} parent=5 // pred_check_branch
      %501 = sbr.rel (%p499) target = $region44
    $region43: #{_layer_impl.6} parent=5 // pred_region
      %s502 = ssub.s32 %s10, 2
      // Predicated region
      $region45: #{_layer_impl.6} parent=43 // pred_check
        %p503 = pneg %p159
      $region46: #{_layer_impl.6} parent=43 // pred_check_branch
        %505 = sbr.rel (%p503) target = $region48
      $region47: #{_layer_impl.6} parent=43 // pred_region
        %s506 = smul.u32 8, %s21
        %p507 = scmp.lt.s32.totalorder %s506, 15
        %s508 = scalar_select %p507, %s506, 15
        %p509 = scmp.lt.s32.totalorder %s22, 0
        %s510 = scalar_select %p509, %s22, 0
        %s511 = sadd.s32 %s510, %s508
        %s512 = smul.addr %s511, 8
        %s513 = scalar_lea.vmem %s4, %s512
      $region48: #{_layer_impl.6} parent=43 // pred_fallthru
        _
    $region44: #{_layer_impl.6} parent=5 // pred_fallthru
      _
  $region6: #{_layer_impl.6} parent=0 // loop_footer
    %s14 = sadd.s32 1, %s10
  $region7: #{_layer_impl.6} parent=0 // loop_footer_branch
    %9 = sbr.rel target = $region3
  $region8: #{_layer_impl.6} parent=0 // loop_exit
    _

// kernel: _layer_impl.7
$region0: #{_layer_impl.7}
  #allocation0 [shape = 'u32[]', space=smem, size = 0x4, offset = 0x4, fixed_abs, tag = 'smem constant byte address 0x4 - core index']
  #allocation1 [shape = 'u32[144,128]{1,0:T(1,128)}', space=vmem, size = 0x12000, scoped, tag = 'internal scratch']
  #allocation2 [shape = 'bf16[64,128]{1,0:T(16,128)(2,1)}', space=vmem, size = 0x4000, scoped, tag = 'scratch operand']
  #allocation3 [shape = 'f32[64,128]{1,0:T(8,128)}', space=vmem, size = 0x8000, scoped, tag = 'scratch operand']
  %s0 = inlined_call_operand.vmem [shape: f32[128,128], index: 0, kind: input, shape index: {}, may-alias: {0,7}]
  %s1 = inlined_call_operand.vmem [shape: f32[1,128], index: 1, kind: input, shape index: {}]
  %s2 = inlined_call_operand.vmem [shape: f32[1,128], index: 2, kind: input, shape index: {}]
  %s3 = inlined_call_operand.vmem [shape: bf16[128,512], index: 3, kind: input, shape index: {}]
  %s4 = inlined_call_operand.vmem [shape: f32[1,512], index: 4, kind: input, shape index: {}]
  %s5 = inlined_call_operand.vmem [shape: bf16[512,128], index: 5, kind: input, shape index: {}]
  %s6 = inlined_call_operand.vmem [shape: f32[1,128], index: 6, kind: input, shape index: {}]
  %s7 = inlined_call_operand.vmem [shape: f32[128,128], index: 7, kind: output, shape index: {}, may-alias: {0,7}]
  %s8 = sld [smem:[#allocation0]]
  $region107: #{_layer_impl.7} parent=0
    _
  %s10 = ssub.s32 1, %s8
  %s11 = scalar_select 0, %s10, %s8
  $region1: #{_layer_impl.7} parent=0
    #allocation4 [shape = 'u8[131072]{0}', space=vmem, size = 0x20000, scoped, tag = 'input window, operand 3']
    loop: start=0, step=1, limit=6
    $region2: #{_layer_impl.7} parent=1 // loop_pre_header
      _
    $region3: #{_layer_impl.7} parent=1 // loop_header
      %s13 = sphi 0, %s17
      %p14 = scmp.ge.s32.totalorder %s13, 6
      %s20 = sphi 0, %s32
      %s21 = sphi 0, %s28
      %s22 = sphi 0, %s20
      %s23 = sphi 0, %s21
      %s24 = sphi 0, %s22
      %s25 = sphi 0, %s23
      %s35 = sphi 0, %s37
      %s38 = sphi 0, %s35
      %s39 = sphi 0, %s38
      %s55 = sphi 0, %s39
      %s59 = sphi 0, %s59
      %s61 = sphi 0, %s59
      %s62 = sphi 0, %s61
      %s76 = sphi 0, %s62
      %s80 = sphi 0, %s80
      %s82 = sphi 0, %s80
      %s83 = sphi 0, %s82
      %s97 = sphi 0, %s83
      %s103 = sphi 0, %s105
      %s106 = sphi 0, %s103
      %s107 = sphi 0, %s106
      %s123 = sphi 0, %s107
      %s129 = sphi 0, %s131
      %s132 = sphi 0, %s129
      %s133 = sphi 0, %s132
      %s149 = sphi 0, %s133
      %s155 = sphi 0, %s157
      %s158 = sphi 0, %s155
      %s159 = sphi 0, %s158
      %s175 = sphi 0, %s159
      %s179 = sphi 0, %s179
      %s181 = sphi 0, %s179
      %s182 = sphi 0, %s181
      %s196 = sphi 0, %s182
      %s202 = sphi 0, %s204
      %s205 = sphi 0, %s202
      %s206 = sphi 0, %s205
      %s222 = sphi 0, %s206
    $region4: #{_layer_impl.7} parent=1 // loop_header_branch
      %16 = sbr.rel (%p14) target = $region8
    $region5: #{_layer_impl.7} parent=1 // loop_body
      %s18 = ssub.s32 %s13, 1
      %s19 = ssub.s32 %s13, 2
      %s26 = sadd.s32 1, %s21
      %p27 = scmp.ge.s32.totalorder %s26, 2
      %s28 = scalar_select %p27, 0, %s26
      %s29 = sadd.s32 1, %s20
      %s30 = scalar_select %p27, %s29, %s20
      %p31 = scmp.ge.s32.totalorder %s30, 2
      %s32 = scalar_select %p31, 0, %s30
      %s33 = ssub.s32 %s20, %s32
      %p34 = scmp.eq.s32.totalorder %s33, 0
      %s36 = sadd.s32 %s35, 1
      %s37 = scalar_select %p34, %s35, %s36
      %p40 = pneg %p34
      %p41 = scmp.eq.s32.totalorder %s13, 3
      %p42 = por %p40, %p41
      %p43 = scmp.ne.s32.totalorder %s35, %s38
      %p44 = scmp.eq.s32.totalorder %s13, 0
      %p45 = por %p43, %p44
      %p46 = scmp.ne.s32.totalorder %s35, %s38
      %p47 = scmp.eq.s32.totalorder %s18, 3
      %p48 = por %p46, %p47
      %p49 = scmp.ne.s32.totalorder %s38, %s39
      %p50 = scmp.eq.s32.totalorder %s18, 0
      %p51 = por %p49, %p50
      %p52 = scmp.ne.s32.totalorder %s38, %s39
      %p53 = scmp.eq.s32.totalorder %s19, 3
      %p54 = por %p52, %p53
      %p56 = scmp.ne.s32.totalorder %s39, %s55
      %p57 = scmp.eq.s32.totalorder %s19, 0
      %p58 = por %p56, %p57
      %s60 = sadd.s32 %s59, 1
      %p63 = scmp.eq.s32.totalorder %s13, 3
      %p64 = scmp.ne.s32.totalorder %s59, %s61
      %p65 = scmp.eq.s32.totalorder %s13, 0
      %p66 = por %p64, %p65
      %p67 = scmp.ne.s32.totalorder %s59, %s61
      %p68 = scmp.eq.s32.totalorder %s18, 3
      %p69 = por %p67, %p68
      %p70 = scmp.ne.s32.totalorder %s61, %s62
      %p71 = scmp.eq.s32.totalorder %s18, 0
      %p72 = por %p70, %p71
      %p73 = scmp.ne.s32.totalorder %s61, %s62
      %p74 = scmp.eq.s32.totalorder %s19, 3
      %p75 = por %p73, %p74
      %p77 = scmp.ne.s32.totalorder %s62, %s76
      %p78 = scmp.eq.s32.totalorder %s19, 0
      %p79 = por %p77, %p78
      %s81 = sadd.s32 %s80, 1
      %p84 = scmp.eq.s32.totalorder %s13, 3
      %p85 = scmp.ne.s32.totalorder %s80, %s82
      %p86 = scmp.eq.s32.totalorder %s13, 0
      %p87 = por %p85, %p86
      %p88 = scmp.ne.s32.totalorder %s80, %s82
      %p89 = scmp.eq.s32.totalorder %s18, 3
      %p90 = por %p88, %p89
      %p91 = scmp.ne.s32.totalorder %s82, %s83
      %p92 = scmp.eq.s32.totalorder %s18, 0
      %p93 = por %p91, %p92
      %p94 = scmp.ne.s32.totalorder %s82, %s83
      %p95 = scmp.eq.s32.totalorder %s19, 3
      %p96 = por %p94, %p95
      %p98 = scmp.ne.s32.totalorder %s83, %s97
      %p99 = scmp.eq.s32.totalorder %s19, 0
      %p100 = por %p98, %p99
      %s101 = ssub.s32 %s21, %s28
      %p102 = scmp.eq.s32.totalorder %s101, 0
      %s104 = sadd.s32 %s103, 1
      %s105 = scalar_select %p102, %s103, %s104
      %p108 = pneg %p102
      %p109 = scmp.eq.s32.totalorder %s13, 3
      %p110 = por %p108, %p109
      %p111 = scmp.ne.s32.totalorder %s103, %s106
      %p112 = scmp.eq.s32.totalorder %s13, 0
      %p113 = por %p111, %p112
      %p114 = scmp.ne.s32.totalorder %s103, %s106
      %p115 = scmp.eq.s32.totalorder %s18, 3
      %p116 = por %p114, %p115
      %p117 = scmp.ne.s32.totalorder %s106, %s107
      %p118 = scmp.eq.s32.totalorder %s18, 0
      %p119 = por %p117, %p118
      %p120 = scmp.ne.s32.totalorder %s106, %s107
      %p121 = scmp.eq.s32.totalorder %s19, 3
      %p122 = por %p120, %p121
      %p124 = scmp.ne.s32.totalorder %s107, %s123
      %p125 = scmp.eq.s32.totalorder %s19, 0
      %p126 = por %p124, %p125
      %s127 = ssub.s32 %s21, %s28
      %p128 = scmp.eq.s32.totalorder %s127, 0
      %s130 = sadd.s32 %s129, 1
      %s131 = scalar_select %p128, %s129, %s130
      %p134 = pneg %p128
      %p135 = scmp.eq.s32.totalorder %s13, 3
      %p136 = por %p134, %p135
      %p137 = scmp.ne.s32.totalorder %s129, %s132
      %p138 = scmp.eq.s32.totalorder %s13, 0
      %p139 = por %p137, %p138
      %p140 = scmp.ne.s32.totalorder %s129, %s132
      %p141 = scmp.eq.s32.totalorder %s18, 3
      %p142 = por %p140, %p141
      %p143 = scmp.ne.s32.totalorder %s132, %s133
      %p144 = scmp.eq.s32.totalorder %s18, 0
      %p145 = por %p143, %p144
      %p146 = scmp.ne.s32.totalorder %s132, %s133
      %p147 = scmp.eq.s32.totalorder %s19, 3
      %p148 = por %p146, %p147
      %p150 = scmp.ne.s32.totalorder %s133, %s149
      %p151 = scmp.eq.s32.totalorder %s19, 0
      %p152 = por %p150, %p151
      %s153 = ssub.s32 %s21, %s28
      %p154 = scmp.eq.s32.totalorder %s153, 0
      %s156 = sadd.s32 %s155, 1
      %s157 = scalar_select %p154, %s155, %s156
      %p160 = pneg %p154
      %p161 = scmp.eq.s32.totalorder %s13, 3
      %p162 = por %p160, %p161
      %p163 = scmp.ne.s32.totalorder %s155, %s158
      %p164 = scmp.eq.s32.totalorder %s13, 0
      %p165 = por %p163, %p164
      %p166 = scmp.ne.s32.totalorder %s155, %s158
      %p167 = scmp.eq.s32.totalorder %s18, 3
      %p168 = por %p166, %p167
      %p169 = scmp.ne.s32.totalorder %s158, %s159
      %p170 = scmp.eq.s32.totalorder %s18, 0
      %p171 = por %p169, %p170
      %p172 = scmp.ne.s32.totalorder %s158, %s159
      %p173 = scmp.eq.s32.totalorder %s19, 3
      %p174 = por %p172, %p173
      %p176 = scmp.ne.s32.totalorder %s159, %s175
      %p177 = scmp.eq.s32.totalorder %s19, 0
      %p178 = por %p176, %p177
      %s180 = sadd.s32 %s179, 1
      %p183 = scmp.eq.s32.totalorder %s13, 3
      %p184 = scmp.ne.s32.totalorder %s179, %s181
      %p185 = scmp.eq.s32.totalorder %s13, 0
      %p186 = por %p184, %p185
      %p187 = scmp.ne.s32.totalorder %s179, %s181
      %p188 = scmp.eq.s32.totalorder %s18, 3
      %p189 = por %p187, %p188
      %p190 = scmp.ne.s32.totalorder %s181, %s182
      %p191 = scmp.eq.s32.totalorder %s18, 0
      %p192 = por %p190, %p191
      %p193 = scmp.ne.s32.totalorder %s181, %s182
      %p194 = scmp.eq.s32.totalorder %s19, 3
      %p195 = por %p193, %p194
      %p197 = scmp.ne.s32.totalorder %s182, %s196
      %p198 = scmp.eq.s32.totalorder %s19, 0
      %p199 = por %p197, %p198
      %s200 = ssub.s32 %s20, %s32
      %p201 = scmp.eq.s32.totalorder %s200, 0
      %s203 = sadd.s32 %s202, 1
      %s204 = scalar_select %p201, %s202, %s203
      %p207 = pneg %p201
      %p208 = scmp.eq.s32.totalorder %s13, 3
      %p209 = por %p207, %p208
      %p210 = scmp.ne.s32.totalorder %s202, %s205
      %p211 = scmp.eq.s32.totalorder %s13, 0
      %p212 = por %p210, %p211
      %p213 = scmp.ne.s32.totalorder %s202, %s205
      %p214 = scmp.eq.s32.totalorder %s18, 3
      %p215 = por %p213, %p214
      %p216 = scmp.ne.s32.totalorder %s205, %s206
      %p217 = scmp.eq.s32.totalorder %s18, 0
      %p218 = por %p216, %p217
      %p219 = scmp.ne.s32.totalorder %s205, %s206
      %p220 = scmp.eq.s32.totalorder %s19, 3
      %p221 = por %p219, %p220
      %p223 = scmp.ne.s32.totalorder %s206, %s222
      %p224 = scmp.eq.s32.totalorder %s19, 0
      %p225 = por %p223, %p224
      %p226 = scmp.le.s32.totalorder 1, %s13
      %p227 = scmp.lt.s32.totalorder %s13, 5
      %p228 = pnand %p226, %p227
      %p229 = pneg %p228
      // Predicated region
      $region9: #{_layer_impl.7} parent=5 // pred_check
        _
      $region10: #{_layer_impl.7} parent=5 // pred_check_branch
        %231 = sbr.rel (%p228) target = $region12
      $region11: #{_layer_impl.7} parent=5 // pred_region
        %s232 = ssub.s32 %s13, 1
        // Predicated region
        $region13: #{_layer_impl.7} parent=11 // pred_check
          %p233 = pneg %p72
        $region14: #{_layer_impl.7} parent=11 // pred_check_branch
          %235 = sbr.rel (%p233) target = $region16
        $region15: #{_layer_impl.7} parent=11 // pred_region
          _
        $region16: #{_layer_impl.7} parent=11 // pred_fallthru
          _
        // Predicated region
        $region17: #{_layer_impl.7} parent=11 // pred_check
          %p236 = pneg %p93
        $region18: #{_layer_impl.7} parent=11 // pred_check_branch
          %238 = sbr.rel (%p236) target = $region20
        $region19: #{_layer_impl.7} parent=11 // pred_region
          _
        $region20: #{_layer_impl.7} parent=11 // pred_fallthru
          _
        // Predicated region
        $region21: #{_layer_impl.7} parent=11 // pred_check
          %p239 = pneg %p192
        $region22: #{_layer_impl.7} parent=11 // pred_check_branch
          %241 = sbr.rel (%p239) target = $region24
        $region23: #{_layer_impl.7} parent=11 // pred_region
          _
        $region24: #{_layer_impl.7} parent=11 // pred_fallthru
          _
      $region12: #{_layer_impl.7} parent=5 // pred_fallthru
        _
      %p242 = scmp.lt.s32.totalorder %s13, 4
      // Predicated region
      $region25: #{_layer_impl.7} parent=5 // pred_check
        %p243 = pneg %p242
      $region26: #{_layer_impl.7} parent=5 // pred_check_branch
        %245 = sbr.rel (%p243) target = $region28
      $region27: #{_layer_impl.7} parent=5 // pred_region
        // Predicated region
        $region29: #{_layer_impl.7} parent=27 // pred_check
          %p246 = pneg %p45
        $region30: #{_layer_impl.7} parent=27 // pred_check_branch
          %248 = sbr.rel (%p246) target = $region32
        $region31: #{_layer_impl.7} parent=27 // pred_region
          %s249 = smul.u32 8, %s20
          %p250 = scmp.lt.s32.totalorder %s249, 15
          %s251 = scalar_select %p250, %s249, 15
          %s252 = smul.addr %s251, 8
          %s253 = scalar_lea.vmem %s0, %s252
          %s254 = smul.u32 8, %s20
        $region32: #{_layer_impl.7} parent=27 // pred_fallthru
          _
        // Predicated region
        $region33: #{_layer_impl.7} parent=27 // pred_check
          %p255 = pneg %p113
        $region34: #{_layer_impl.7} parent=27 // pred_check_branch
          %257 = sbr.rel (%p255) target = $region36
        $region35: #{_layer_impl.7} parent=27 // pred_region
          %s258 = sand.u32 %s103, 1
          %s259 = sand.u32 %s103, 1
          %s260 = smul.addr %s259, 128
          %s261 = scalar_lea.vmem [#allocation4], %s260
          %s262 = smul.u32 2, %s21
          %s263 = smul.addr %s262, 4
          %s264 = scalar_lea.vmem %s3, %s263
          // Predicated region
          $region37: #{_layer_impl.7} parent=35 // pred_check
            _
          $region38: #{_layer_impl.7} parent=35 // pred_check_branch
            %266 = sbr.rel (0) target = $region40
          $region39: #{_layer_impl.7} parent=35 // pred_region
            // Predicated region
            $region41: #{_layer_impl.7} parent=39 // pred_check
              _
            $region42: #{_layer_impl.7} parent=39 // pred_check_branch
              %268 = sbr.rel (0) target = $region44
            $region43: #{_layer_impl.7} parent=39 // pred_region
              // Predicated region
              $region56: #{_layer_impl.7} parent=43 // pred_check
                _
              $region57: #{_layer_impl.7} parent=43 // pred_check_branch
                %313 = sbr.rel (0) target = $region59
              $region58: #{_layer_impl.7} parent=43 // pred_region
                loop: start=0, step=1, limit=1
                $region60: #{_layer_impl.7} parent=58 // loop_pre_header
                  _
                $region61: #{_layer_impl.7} parent=58 // loop_header
                  %s315 = sphi 0, %s319
                  %p316 = scmp.ge.s32.totalorder %s315, 1
                  %s320 = sphi %s264, %s264
                  %s321 = sphi %s261, %s261
                $region62: #{_layer_impl.7} parent=58 // loop_header_branch
                  %318 = sbr.rel (%p316) target = $region66
                $region63: #{_layer_impl.7} parent=58 // loop_body
                  %v322 = vld [vmem:[%s320] sm:$0xff]
                  %323 = vst [vmem:[%s321] sm:$0xff] %v322
                  %v324 = vld [vmem:[%s320 + $0x10] sm:$0xff]
                  %325 = vst [vmem:[%s321 + $0x8] sm:$0xff] %v324
                  %v326 = vld [vmem:[%s320 + $0x20] sm:$0xff]
                  %327 = vst [vmem:[%s321 + $0x10] sm:$0xff] %v326
                  %v328 = vld [vmem:[%s320 + $0x30] sm:$0xff]
                  %329 = vst [vmem:[%s321 + $0x18] sm:$0xff] %v328
                  %v330 = vld [vmem:[%s320 + $0x40] sm:$0xff]
                  %331 = vst [vmem:[%s321 + $0x20] sm:$0xff] %v330
                  %v332 = vld [vmem:[%s320 + $0x50] sm:$0xff]
                  %333 = vst [vmem:[%s321 + $0x28] sm:$0xff] %v332
                  %v334 = vld [vmem:[%s320 + $0x60] sm:$0xff]
                  %335 = vst [vmem:[%s321 + $0x30] sm:$0xff] %v334
                  %v336 = vld [vmem:[%s320 + $0x70] sm:$0xff]
                  %337 = vst [vmem:[%s321 + $0x38] sm:$0xff] %v336
                  %v338 = vld [vmem:[%s320 + $0x80] sm:$0xff]
                  %339 = vst [vmem:[%s321 + $0x40] sm:$0xff] %v338
                  %v340 = vld [vmem:[%s320 + $0x90] sm:$0xff]
                  %341 = vst [vmem:[%s321 + $0x48] sm:$0xff] %v340
                  %v342 = vld [vmem:[%s320 + $0xa0] sm:$0xff]
                  %343 = vst [vmem:[%s321 + $0x50] sm:$0xff] %v342
                  %v344 = vld [vmem:[%s320 + $0xb0] sm:$0xff]
                  %345 = vst [vmem:[%s321 + $0x58] sm:$0xff] %v344
                  %v346 = vld [vmem:[%s320 + $0xc0] sm:$0xff]
                  %347 = vst [vmem:[%s321 + $0x60] sm:$0xff] %v346
                  %v348 = vld [vmem:[%s320 + $0xd0] sm:$0xff]
                  %349 = vst [vmem:[%s321 + $0x68] sm:$0xff] %v348
                  %v350 = vld [vmem:[%s320 + $0xe0] sm:$0xff]
                  %351 = vst [vmem:[%s321 + $0x70] sm:$0xff] %v350
                  %v352 = vld [vmem:[%s320 + $0xf0] sm:$0xff]
                  %353 = vst [vmem:[%s321 + $0x78] sm:$0xff] %v352
                $region64: #{_layer_impl.7} parent=58 // loop_footer
                  %s319 = sadd.s32 1, %s315
                $region65: #{_layer_impl.7} parent=58 // loop_footer_branch
                  %314 = sbr.rel target = $region61
                $region66: #{_layer_impl.7} parent=58 // loop_exit
                  _
              $region59: #{_layer_impl.7} parent=43 // pred_fallthru
                _
              // Predicated region
              $region67: #{_layer_impl.7} parent=43 // pred_check
                _
              $region68: #{_layer_impl.7} parent=43 // pred_check_branch
                %355 = sbr.rel target = $region70
              $region69: #{_layer_impl.7} parent=43 // pred_region
                _
              $region70: #{_layer_impl.7} parent=43 // pred_fallthru
                _
            $region44: #{_layer_impl.7} parent=39 // pred_fallthru
              _
            // Predicated region
            $region45: #{_layer_impl.7} parent=39 // pred_check
              _
            $region46: #{_layer_impl.7} parent=39 // pred_check_branch
              %270 = sbr.rel target = $region48
            $region47: #{_layer_impl.7} parent=39 // pred_region
              loop: start=0, step=1, limit=1
              $region49: #{_layer_impl.7} parent=47 // loop_pre_header
                _
              $region50: #{_layer_impl.7} parent=47 // loop_header
                %s273 = sphi 0, %s277
                %p274 = scmp.ge.s32.totalorder %s273, 1
                %s278 = sphi %s264, %s264
                %s279 = sphi %s261, %s261
              $region51: #{_layer_impl.7} parent=47 // loop_header_branch
                %276 = sbr.rel (%p274) target = $region55
              $region52: #{_layer_impl.7} parent=47 // loop_body
                %v280 = vld [vmem:[%s278] sm:$0xff]
                %281 = vst [vmem:[%s279] sm:$0xff] %v280
                %v282 = vld [vmem:[%s278 + $0x10] sm:$0xff]
                %283 = vst [vmem:[%s279 + $0x8] sm:$0xff] %v282
                %v284 = vld [vmem:[%s278 + $0x20] sm:$0xff]
                %285 = vst [vmem:[%s279 + $0x10] sm:$0xff] %v284
                %v286 = vld [vmem:[%s278 + $0x30] sm:$0xff]
                %287 = vst [vmem:[%s279 + $0x18] sm:$0xff] %v286
                %v288 = vld [vmem:[%s278 + $0x40] sm:$0xff]
                %289 = vst [vmem:[%s279 + $0x20] sm:$0xff] %v288
                %v290 = vld [vmem:[%s278 + $0x50] sm:$0xff]
                %291 = vst [vmem:[%s279 + $0x28] sm:$0xff] %v290
                %v292 = vld [vmem:[%s278 + $0x60] sm:$0xff]
                %293 = vst [vmem:[%s279 + $0x30] sm:$0xff] %v292
                %v294 = vld [vmem:[%s278 + $0x70] sm:$0xff]
                %295 = vst [vmem:[%s279 + $0x38] sm:$0xff] %v294
                %v296 = vld [vmem:[%s278 + $0x80] sm:$0xff]
                %297 = vst [vmem:[%s279 + $0x40] sm:$0xff] %v296
                %v298 = vld [vmem:[%s278 + $0x90] sm:$0xff]
                %299 = vst [vmem:[%s279 + $0x48] sm:$0xff] %v298
                %v300 = vld [vmem:[%s278 + $0xa0] sm:$0xff]
                %301 = vst [vmem:[%s279 + $0x50] sm:$0xff] %v300
                %v302 = vld [vmem:[%s278 + $0xb0] sm:$0xff]
                %303 = vst [vmem:[%s279 + $0x58] sm:$0xff] %v302
                %v304 = vld [vmem:[%s278 + $0xc0] sm:$0xff]
                %305 = vst [vmem:[%s279 + $0x60] sm:$0xff] %v304
                %v306 = vld [vmem:[%s278 + $0xd0] sm:$0xff]
                %307 = vst [vmem:[%s279 + $0x68] sm:$0xff] %v306
                %v308 = vld [vmem:[%s278 + $0xe0] sm:$0xff]
                %309 = vst [vmem:[%s279 + $0x70] sm:$0xff] %v308
                %v310 = vld [vmem:[%s278 + $0xf0] sm:$0xff]
                %311 = vst [vmem:[%s279 + $0x78] sm:$0xff] %v310
              $region53: #{_layer_impl.7} parent=47 // loop_footer
                %s277 = sadd.s32 1, %s273
              $region54: #{_layer_impl.7} parent=47 // loop_footer_branch
                %272 = sbr.rel target = $region50
              $region55: #{_layer_impl.7} parent=47 // loop_exit
                _
            $region48: #{_layer_impl.7} parent=39 // pred_fallthru
              _
          $region40: #{_layer_impl.7} parent=35 // pred_fallthru
            _
          %356 = vnop
        $region36: #{_layer_impl.7} parent=27 // pred_fallthru
          _
        // Predicated region
        $region71: #{_layer_impl.7} parent=27 // pred_check
          %p357 = pneg %p139
        $region72: #{_layer_impl.7} parent=27 // pred_check_branch
          %359 = sbr.rel (%p357) target = $region74
        $region73: #{_layer_impl.7} parent=27 // pred_region
          %s360 = smul.u32 2, %s21
          %p361 = scmp.lt.s32.totalorder %s360, 3
          %s362 = scalar_select %p361, %s360, 3
          %s363 = scalar_lea.vmem %s4, %s362
          %s364 = smul.u32 2, %s21
        $region74: #{_layer_impl.7} parent=27 // pred_fallthru
          _
        // Predicated region
        $region75: #{_layer_impl.7} parent=27 // pred_check
          %p365 = pneg %p165
        $region76: #{_layer_impl.7} parent=27 // pred_check_branch
          %367 = sbr.rel (%p365) target = $region78
        $region77: #{_layer_impl.7} parent=27 // pred_region
          %s368 = smul.u32 32, %s21
          %p369 = scmp.lt.s32.totalorder %s368, 63
          %s370 = scalar_select %p369, %s368, 63
          %s371 = smul.addr %s370, 4
          %s372 = scalar_lea.vmem %s5, %s371
          %s373 = smul.u32 32, %s21
        $region78: #{_layer_impl.7} parent=27 // pred_fallthru
          _
      $region28: #{_layer_impl.7} parent=5 // pred_fallthru
        _
      %p374 = scmp.le.s32.totalorder 1, %s13
      %p375 = scmp.lt.s32.totalorder %s13, 5
      %p376 = pnand %p374, %p375
      %p377 = pneg %p376
      // Predicated region
      $region79: #{_layer_impl.7} parent=5 // pred_check
        _
      $region80: #{_layer_impl.7} parent=5 // pred_check_branch
        %379 = sbr.rel (%p376) target = $region82
      $region81: #{_layer_impl.7} parent=5 // pred_region
        %s380 = ssub.s32 %s13, 1
        %s381 = sand.u32 %s106, 1
        %s382 = sand.u32 %s106, 1
        %s383 = smul.addr %s382, 128
        %s384 = scalar_lea.vmem [#allocation4], %s383
        // Predicated region
        $region83: #{_layer_impl.7} parent=81 // pred_check
          %p385 = pneg %p119
        $region84: #{_layer_impl.7} parent=81 // pred_check_branch
          %387 = sbr.rel (%p385) target = $region86
        $region85: #{_layer_impl.7} parent=81 // pred_region
          _
        $region86: #{_layer_impl.7} parent=81 // pred_fallthru
          _
        %s388 = smul.u32 8, %s22
        %p389 = scmp.lt.s32.totalorder %s388, 15
        %s390 = scalar_select %p389, %s388, 15
        %s391 = smul.addr %s390, 8
        %s392 = scalar_lea.vmem %s0, %s391
        %p393 = pneg %p51
        %p394 = pneg %p48
        %p395 = pneg %p72
        %p396 = pneg %p69
        %p397 = pneg %p93
        %p398 = pneg %p90
        %s399 = sand.u32 %s106, 1
        %s400 = sand.u32 %s106, 1
        %s401 = smul.addr %s400, 128
        %s402 = scalar_lea.vmem [#allocation4], %s401
        %p403 = pneg %p119
        %p404 = pneg %p116
        %s405 = smul.u32 2, %s23
        %p406 = scmp.lt.s32.totalorder %s405, 3
        %s407 = scalar_select %p406, %s405, 3
        %s408 = scalar_lea.vmem %s4, %s407
        %p409 = pneg %p145
        %p410 = pneg %p142
        %s411 = smul.u32 32, %s23
        %p412 = scmp.lt.s32.totalorder %s411, 63
        %s413 = scalar_select %p412, %s411, 63
        %s414 = smul.addr %s413, 4
        %s415 = scalar_lea.vmem %s5, %s414
        %p416 = pneg %p171
        %p417 = pneg %p168
        %p418 = pneg %p192
        %p419 = pneg %p189
        %p420 = pneg %p218
        %p421 = pneg %p215
        %s422 = smul.u32 8, %s22
        %p423 = scmp.lt.s32.totalorder %s422, 15
        %s424 = scalar_select %p423, %s422, 15
        %s425 = smul.addr %s424, 8
        %s426 = scalar_lea.vmem %s7, %s425
        %s427 = smul.u32 8, %s22
        %p428 = scmp.lt.s32.totalorder %s427, 15
        %s429 = scalar_select %p428, %s427, 15
        %s430 = smul.addr %s429, 8
        %s431 = scalar_lea.vmem %s0, %s430
        %s432 = smul.u32 8, %s22
        %s433 = smul.u32 2, %s23
        %s434 = smul.u32 2, %s23
        %p435 = scmp.lt.s32.totalorder %s434, 3
        %s436 = scalar_select %p435, %s434, 3
        %s437 = scalar_lea.vmem %s4, %s436
        %s438 = smul.u32 2, %s23
        %s439 = smul.u32 32, %s23
        %p440 = scmp.lt.s32.totalorder %s439, 63
        %s441 = scalar_select %p440, %s439, 63
        %s442 = smul.addr %s441, 4
        %s443 = scalar_lea.vmem %s5, %s442
        %s444 = smul.u32 32, %s23
        %s445 = smul.u32 8, %s22
        %p446 = scmp.lt.s32.totalorder %s445, 15
        %s447 = scalar_select %p446, %s445, 15
        %s448 = smul.addr %s447, 8
        %s449 = scalar_lea.vmem %s7, %s448
        %s450 = smul.u32 8, %s22
        %p452 = scmp.eq.s32.totalorder %s23, 0
        // Predicated region
        $region87: #{_layer_impl.7} parent=81 // pred_check
          %p453 = pneg %p452
        $region88: #{_layer_impl.7} parent=81 // pred_check_branch
          %455 = sbr.rel (%p453) target = $region90
        $region89: #{_layer_impl.7} parent=81 // pred_region
          %v456 = vld [vmem:[%s431] sm:$0xff]
          %v457 = vld [vmem:[%s431 + $0x8] sm:$0xff]
          %v458 = vld [vmem:[%s431 + $0x10] sm:$0xff]
          %v459 = vld [vmem:[%s431 + $0x18] sm:$0xff]
          %v460 = vld [vmem:[%s431 + $0x20] sm:$0xff]
          %v461 = vld [vmem:[%s431 + $0x28] sm:$0xff]
          %v462 = vld [vmem:[%s431 + $0x30] sm:$0xff]
          %v463 = vld [vmem:[%s431 + $0x38] sm:$0xff]
          %v464 = vld [vmem:[%s1] sm:$0x1]
          %v465 = vld [vmem:[%s2] sm:$0x1]
          %466 = vadd.xlane.f32.xlu0 %v456
          %v467 = vpop.xlane.xlu0 %466
          %468 = vadd.xlane.f32.xlu0 %v457
          %v469 = vpop.xlane.xlu0 %468
          %470 = vadd.xlane.f32.xlu0 %v458
          %v471 = vpop.xlane.xlu0 %470
          %472 = vadd.xlane.f32.xlu0 %v459
          %v473 = vpop.xlane.xlu0 %472
          %474 = vadd.xlane.f32.xlu0 %v460
          %v475 = vpop.xlane.xlu0 %474
          %476 = vadd.xlane.f32.xlu0 %v461
          %v477 = vpop.xlane.xlu0 %476
          %478 = vadd.xlane.f32.xlu0 %v462
          %v479 = vpop.xlane.xlu0 %478
          %480 = vadd.xlane.f32.xlu0 %v463
          %v481 = vpop.xlane.xlu0 %480
          %v482 = vrcp.pop 128.0
          %v483 = vmul.f32 %v467, %v482
          %v484 = vmul.f32 %v469, %v482
          %v485 = vmul.f32 %v471, %v482
          %v486 = vmul.f32 %v473, %v482
          %v487 = vmul.f32 %v475, %v482
          %v488 = vmul.f32 %v477, %v482
          %v489 = vmul.f32 %v479, %v482
          %v490 = vmul.f32 %v481, %v482
          %v491 = vsub.f32 %v456, %v483
          %v492 = vsub.f32 %v457, %v484
          %v493 = vsub.f32 %v458, %v485
          %v494 = vsub.f32 %v459, %v486
          %v495 = vsub.f32 %v460, %v487
          %v496 = vsub.f32 %v461, %v488
          %v497 = vsub.f32 %v462, %v489
          %v498 = vsub.f32 %v463, %v490
          %v499 = vmul.f32 %v491, %v491
          %v500 = vmul.f32 %v492, %v492
          %v501 = vmul.f32 %v493, %v493
          %v502 = vmul.f32 %v494, %v494
          %v503 = vmul.f32 %v495, %v495
          %v504 = vmul.f32 %v496, %v496
          %v505 = vmul.f32 %v497, %v497
          %v506 = vmul.f32 %v498, %v498
          %507 = vadd.xlane.f32.xlu0 %v499
          %v508 = vpop.xlane.xlu0 %507
          %509 = vadd.xlane.f32.xlu0 %v500
          %v510 = vpop.xlane.xlu0 %509
          %511 = vadd.xlane.f32.xlu0 %v501
          %v512 = vpop.xlane.xlu0 %511
          %513 = vadd.xlane.f32.xlu0 %v502
          %v514 = vpop.xlane.xlu0 %513
          %515 = vadd.xlane.f32.xlu0 %v503
          %v516 = vpop.xlane.xlu0 %515
          %517 = vadd.xlane.f32.xlu0 %v504
          %v518 = vpop.xlane.xlu0 %517
          %519 = vadd.xlane.f32.xlu0 %v505
          %v520 = vpop.xlane.xlu0 %519
          %521 = vadd.xlane.f32.xlu0 %v506
          %v522 = vpop.xlane.xlu0 %521
          %v523 = vmul.f32 %v508, %v482
          %v524 = vmul.f32 %v510, %v482
          %v525 = vmul.f32 %v512, %v482
          %v526 = vmul.f32 %v514, %v482
          %v527 = vmul.f32 %v516, %v482
          %v528 = vmul.f32 %v518, %v482
          %v529 = vmul.f32 %v520, %v482
          %v530 = vmul.f32 %v522, %v482
          %v531 = vadd.f32 %v523, 1e-05
          %v532 = vadd.f32 %v524, 1e-05
          %v533 = vadd.f32 %v525, 1e-05
          %v534 = vadd.f32 %v526, 1e-05
          %v535 = vadd.f32 %v527, 1e-05
          %v536 = vadd.f32 %v528, 1e-05
          %v537 = vadd.f32 %v529, 1e-05
          %v538 = vadd.f32 %v530, 1e-05
          %v539 = vrsqrt.pop %v531
          %v540 = vrsqrt.pop %v532
          %v541 = vrsqrt.pop %v533
          %v542 = vrsqrt.pop %v534
          %v543 = vrsqrt.pop %v535
          %v544 = vrsqrt.pop %v536
          %v545 = vrsqrt.pop %v537
          %v546 = vrsqrt.pop %v538
          %v547 = vmul.f32 %v491, %v539
          %v548 = vmul.f32 %v492, %v540
          %v549 = vmul.f32 %v493, %v541
          %v550 = vmul.f32 %v494, %v542
          %v551 = vmul.f32 %v495, %v543
          %v552 = vmul.f32 %v496, %v544
          %v553 = vmul.f32 %v497, %v545
          %v554 = vmul.f32 %v498, %v546
          %v556 = vlaneseq
          %v557 = vshrl.u32 %v556, 7
          %v558 = vsub.s32 0, %v557
          %v559 = vrot.slane %v464, %v558
          %v561 = vmul.f32 %v547, %v559
          %v562 = vmul.f32 %v548, %v559
          %v563 = vmul.f32 %v549, %v559
          %v564 = vmul.f32 %v550, %v559
          %v565 = vmul.f32 %v551, %v559
          %v566 = vmul.f32 %v552, %v559
          %v567 = vmul.f32 %v553, %v559
          %v568 = vmul.f32 %v554, %v559
          %v570 = vlaneseq
          %v571 = vshrl.u32 %v570, 7
          %v572 = vsub.s32 0, %v571
          %v573 = vrot.slane %v465, %v572
          %v575 = vadd.f32 %v561, %v573
          %v576 = vadd.f32 %v562, %v573
          %v577 = vadd.f32 %v563, %v573
          %v578 = vadd.f32 %v564, %v573
          %v579 = vadd.f32 %v565, %v573
          %v580 = vadd.f32 %v566, %v573
          %v581 = vadd.f32 %v567, %v573
          %v582 = vadd.f32 %v568, %v573
          %v583 = vpack.c.bf16 %v576, %v575
          %v584 = vpack.c.bf16 %v578, %v577
          %v585 = vpack.c.bf16 %v580, %v579
          %v586 = vpack.c.bf16 %v582, %v581
          %587 = vst [vmem:[#allocation2] sm:$0xff] %v583
          %588 = vst [vmem:[#allocation2 + $0x8] sm:$0xff] %v584
          %589 = vst [vmem:[#allocation2 + $0x10] sm:$0xff] %v585
          %590 = vst [vmem:[#allocation2 + $0x18] sm:$0xff] %v586
          %591 = vst [vmem:[#allocation3] sm:$0xff] 0.0
          %592 = vst [vmem:[#allocation3 + $0x8] sm:$0xff] 0.0
          %593 = vst [vmem:[#allocation3 + $0x10] sm:$0xff] 0.0
          %594 = vst [vmem:[#allocation3 + $0x18] sm:$0xff] 0.0
          %595 = vst [vmem:[#allocation3 + $0x20] sm:$0xff] 0.0
          %596 = vst [vmem:[#allocation3 + $0x28] sm:$0xff] 0.0
          %597 = vst [vmem:[#allocation3 + $0x30] sm:$0xff] 0.0
          %598 = vst [vmem:[#allocation3 + $0x38] sm:$0xff] 0.0
        $region90: #{_layer_impl.7} parent=81 // pred_fallthru
          _
        %v599 = vld [vmem:[#allocation2] sm:$0xff]
        %v600 = vld [vmem:[#allocation2 + $0x8] sm:$0xff]
        %v601 = vld [vmem:[#allocation2 + $0x10] sm:$0xff]
        %v602 = vld [vmem:[#allocation2 + $0x18] sm:$0xff]
        %v603 = vld [vmem:[%s384] sm:$0xff]
        %v604 = vld [vmem:[%s384 + $0x8] sm:$0xff]
        %v605 = vld [vmem:[%s384 + $0x10] sm:$0xff]
        %v606 = vld [vmem:[%s384 + $0x18] sm:$0xff]
        %v607 = vld [vmem:[%s384 + $0x20] sm:$0xff]
        %v608 = vld [vmem:[%s384 + $0x28] sm:$0xff]
        %v609 = vld [vmem:[%s384 + $0x30] sm:$0xff]
        %v610 = vld [vmem:[%s384 + $0x38] sm:$0xff]
        %v611 = vld [vmem:[%s384 + $0x40] sm:$0xff]
        %v612 = vld [vmem:[%s384 + $0x48] sm:$0xff]
        %v613 = vld [vmem:[%s384 + $0x50] sm:$0xff]
        %v614 = vld [vmem:[%s384 + $0x58] sm:$0xff]
        %v615 = vld [vmem:[%s384 + $0x60] sm:$0xff]
        %v616 = vld [vmem:[%s384 + $0x68] sm:$0xff]
        %v617 = vld [vmem:[%s384 + $0x70] sm:$0xff]
        %v618 = vld [vmem:[%s384 + $0x78] sm:$0xff]
        %v619 = vld [vmem:[%s437] sm:$0x3]
        %v621 = vlaneseq
        %v622 = vshrl.u32 %v621, 7
        %v623 = vsub.s32 0, %v622
        %v624 = vrot.slane %v619, %v623
        %v625 = vlaneseq
        %v626 = vshrl.u32 %v625, 7
        %v627 = vsub.s32 1, %v626
        %v628 = vrot.slane %v619, %v627
        %v647 = vunpack.c.l.b16 %v603
        %v648 = vunpack.c.h.b16 %v603
        %v649 = vunpack.c.l.b16 %v604
        %v650 = vunpack.c.h.b16 %v604
        %v651 = vunpack.c.l.b16 %v605
        %v652 = vunpack.c.h.b16 %v605
        %v653 = vunpack.c.l.b16 %v606
        %v654 = vunpack.c.h.b16 %v606
        %v655 = vunpack.c.l.b16 %v607
        %v656 = vunpack.c.h.b16 %v607
        %v657 = vunpack.c.l.b16 %v608
        %v658 = vunpack.c.h.b16 %v608
        %v659 = vunpack.c.l.b16 %v609
        %v660 = vunpack.c.h.b16 %v609
        %v661 = vunpack.c.l.b16 %v610
        %v662 = vunpack.c.h.b16 %v610
        %v663 = vunpack.c.l.b16 %v611
        %v664 = vunpack.c.h.b16 %v611
        %v665 = vunpack.c.l.b16 %v612
        %v666 = vunpack.c.h.b16 %v612
        %v667 = vunpack.c.l.b16 %v613
        %v668 = vunpack.c.h.b16 %v613
        %v669 = vunpack.c.l.b16 %v614
        %v670 = vunpack.c.h.b16 %v614
        %v671 = vunpack.c.l.b16 %v615
        %v672 = vunpack.c.h.b16 %v615
        %v673 = vunpack.c.l.b16 %v616
        %v674 = vunpack.c.h.b16 %v616
        %v675 = vunpack.c.l.b16 %v617
        %v676 = vunpack.c.h.b16 %v617
        %v677 = vunpack.c.l.b16 %v618
        %v678 = vunpack.c.h.b16 %v618
        %v679 = vpack.c.b16 %v649, %v647
        %v680 = vpack.c.b16 %v650, %v648
        %v681 = vpack.c.b16 %v653, %v651
        %v682 = vpack.c.b16 %v654, %v652
        %v683 = vpack.c.b16 %v657, %v655
        %v684 = vpack.c.b16 %v658, %v656
        %v685 = vpack.c.b16 %v661, %v659
        %v686 = vpack.c.b16 %v662, %v660
        %v687 = vpack.c.b16 %v665, %v663
        %v688 = vpack.c.b16 %v666, %v664
        %v689 = vpack.c.b16 %v669, %v667
        %v690 = vpack.c.b16 %v670, %v668
        %v691 = vpack.c.b16 %v673, %v671
        %v692 = vpack.c.b16 %v674, %v672
        %v693 = vpack.c.b16 %v677, %v675
        %v694 = vpack.c.b16 %v678, %v676
        %711 = vmatprep.subr.bf16.mxu0 %v680
        %712 = vmatpush1.bf16.msra.mxu0 %v679
        %713 = vmatprep.subr.bf16.mxu0 %v682
        %714 = vmatpush1.bf16.msra.mxu0 %v681
        %715 = vmatprep.subr.bf16.mxu0 %v684
        %716 = vmatpush1.bf16.msra.mxu0 %v683
        %717 = vmatprep.subr.bf16.mxu0 %v686
        %718 = vmatpush1.bf16.msra.mxu0 %v685
        %719 = vmatprep.subr.bf16.mxu0 %v688
        %720 = vmatpush1.bf16.msra.mxu0 %v687
        %721 = vmatprep.subr.bf16.mxu0 %v690
        %722 = vmatpush1.bf16.msra.mxu0 %v689
        %723 = vmatprep.subr.bf16.mxu0 %v692
        %724 = vmatpush1.bf16.msra.mxu0 %v691
        %725 = vmatprep.subr.bf16.mxu0 %v694
        %726 = vmatpush1.bf16.msra.mxu0 %v693
        %727 = vmatprep.subr.bf16.mxu0 0
        %728 = vmatpush1.bf16.msra.mxu0 0
        %729 = vmatprep.subr.bf16.mxu0 0
        %730 = vmatpush1.bf16.msra.mxu0 0
        %731 = vmatprep.subr.bf16.mxu0 0
        %732 = vmatpush1.bf16.msra.mxu0 0
        %733 = vmatprep.subr.bf16.mxu0 0
        %734 = vmatpush1.bf16.msra.mxu0 0
        %735 = vmatprep.subr.bf16.mxu0 0
        %736 = vmatpush1.bf16.msra.mxu0 0
        %737 = vmatprep.subr.bf16.mxu0 0
        %738 = vmatpush1.bf16.msra.mxu0 0
        %739 = vmatprep.subr.bf16.mxu0 0
        %740 = vmatpush1.bf16.msra.mxu0 0
        %741 = vmatprep.subr.bf16.mxu0 0
        %742 = vmatpush1.bf16.msra.mxu0 0
        %743 = vmatprep.mubr.bf16.mxu0 0
        %744 = vmatmul.mubr.bf16.gmra.mrb[0].mxu0 %v599
        %v745 = vpop.f32.mrb[0].mxu0
        %v746 = vadd.f32 %v624, %v745
        %v747 = vpop.f32.mrb[0].mxu0
        %v748 = vadd.f32 %v628, %v747
        %v749 = vpop.f32.mrb[0].mxu0
        %v750 = vadd.f32 %v624, %v749
        %v751 = vpop.f32.mrb[0].mxu0
        %v752 = vadd.f32 %v628, %v751
        %753 = vmatprep.mubr.bf16.mxu0 0
        %754 = vmatmul.mubr.bf16.gmra.mrb[0].mxu0 %v600
        %v755 = vpop.f32.mrb[0].mxu0
        %v756 = vadd.f32 %v624, %v755
        %v757 = vpop.f32.mrb[0].mxu0
        %v758 = vadd.f32 %v628, %v757
        %v759 = vpop.f32.mrb[0].mxu0
        %v760 = vadd.f32 %v624, %v759
        %v761 = vpop.f32.mrb[0].mxu0
        %v762 = vadd.f32 %v628, %v761
        %763 = vmatprep.mubr.bf16.mxu0 0
        %764 = vmatmul.mubr.bf16.gmra.mrb[0].mxu0 %v601
        %v765 = vpop.f32.mrb[0].mxu0
        %v766 = vadd.f32 %v624, %v765
        %v767 = vpop.f32.mrb[0].mxu0
        %v768 = vadd.f32 %v628, %v767
        %v769 = vpop.f32.mrb[0].mxu0
        %v770 = vadd.f32 %v624, %v769
        %v771 = vpop.f32.mrb[0].mxu0
        %v772 = vadd.f32 %v628, %v771
        %773 = vmatprep.mubr.bf16.mxu0 0
        %774 = vmatmul.mubr.bf16.gmra.mrb[0].mxu0 %v602
        %v775 = vpop.f32.mrb[0].mxu0
        %v776 = vadd.f32 %v624, %v775
        %v777 = vpop.f32.mrb[0].mxu0
        %v778 = vadd.f32 %v628, %v777
        %v779 = vpop.f32.mrb[0].mxu0
        %v780 = vadd.f32 %v624, %v779
        %v781 = vpop.f32.mrb[0].mxu0
        %v782 = vadd.f32 %v628, %v781
        %783 = vdwg.mxu0
        %v784 = vmax.f32 %v746, 0.0
        %v785 = vmax.f32 %v748, 0.0
        %v786 = vmax.f32 %v750, 0.0
        %v787 = vmax.f32 %v752, 0.0
        %v788 = vmax.f32 %v756, 0.0
        %v789 = vmax.f32 %v758, 0.0
        %v790 = vmax.f32 %v760, 0.0
        %v791 = vmax.f32 %v762, 0.0
        %v792 = vmax.f32 %v766, 0.0
        %v793 = vmax.f32 %v768, 0.0
        %v794 = vmax.f32 %v770, 0.0
        %v795 = vmax.f32 %v772, 0.0
        %v796 = vmax.f32 %v776, 0.0
        %v797 = vmax.f32 %v778, 0.0
        %v798 = vmax.f32 %v780, 0.0
        %v799 = vmax.f32 %v782, 0.0
        %v800 = vld [vmem:[#allocation3] sm:$0xff]
        %v801 = vld [vmem:[#allocation3 + $0x8] sm:$0xff]
        %v802 = vld [vmem:[#allocation3 + $0x10] sm:$0xff]
        %v803 = vld [vmem:[#allocation3 + $0x18] sm:$0xff]
        %v804 = vld [vmem:[#allocation3 + $0x20] sm:$0xff]
        %v805 = vld [vmem:[#allocation3 + $0x28] sm:$0xff]
        %v806 = vld [vmem:[#allocation3 + $0x30] sm:$0xff]
        %v807 = vld [vmem:[#allocation3 + $0x38] sm:$0xff]
        %v808 = vpack.c.bf16 %v786, %v784
        %v809 = vpack.c.bf16 %v787, %v785
        %v810 = vpack.c.bf16 %v790, %v788
        %v811 = vpack.c.bf16 %v791, %v789
        %v812 = vpack.c.bf16 %v794, %v792
        %v813 = vpack.c.bf16 %v795, %v793
        %v814 = vpack.c.bf16 %v798, %v796
        %v815 = vpack.c.bf16 %v799, %v797
        %v816 = vld [vmem:[%s443] sm:$0xf]
        %v817 = vld [vmem:[%s443 + $0x4] sm:$0xf]
        %v818 = vld [vmem:[%s443 + $0x8] sm:$0xf]
        %v819 = vld [vmem:[%s443 + $0xc] sm:$0xf]
        %v820 = vld [vmem:[%s443 + $0x10] sm:$0xf]
        %v821 = vld [vmem:[%s443 + $0x14] sm:$0xf]
        %v822 = vld [vmem:[%s443 + $0x18] sm:$0xf]
        %v823 = vld [vmem:[%s443 + $0x1c] sm:$0xf]
        %v824 = vld [vmem:[%s443 + $0x20] sm:$0xf]
        %v825 = vld [vmem:[%s443 + $0x24] sm:$0xf]
        %v826 = vld [vmem:[%s443 + $0x28] sm:$0xf]
        %v827 = vld [vmem:[%s443 + $0x2c] sm:$0xf]
        %v828 = vld [vmem:[%s443 + $0x30] sm:$0xf]
        %v829 = vld [vmem:[%s443 + $0x34] sm:$0xf]
        %v830 = vld [vmem:[%s443 + $0x38] sm:$0xf]
        %v831 = vld [vmem:[%s443 + $0x3c] sm:$0xf]
        %v832 = vld [vmem:[%s443 + $0x40] sm:$0xf]
        %v833 = vld [vmem:[%s443 + $0x44] sm:$0xf]
        %v834 = vld [vmem:[%s443 + $0x48] sm:$0xf]
        %v835 = vld [vmem:[%s443 + $0x4c] sm:$0xf]
        %v836 = vld [vmem:[%s443 + $0x50] sm:$0xf]
        %v837 = vld [vmem:[%s443 + $0x54] sm:$0xf]
        %v838 = vld [vmem:[%s443 + $0x58] sm:$0xf]
        %v839 = vld [vmem:[%s443 + $0x5c] sm:$0xf]
        %v840 = vld [vmem:[%s443 + $0x60] sm:$0xf]
        %v841 = vld [vmem:[%s443 + $0x64] sm:$0xf]
        %v842 = vld [vmem:[%s443 + $0x68] sm:$0xf]
        %v843 = vld [vmem:[%s443 + $0x6c] sm:$0xf]
        %v844 = vld [vmem:[%s443 + $0x70] sm:$0xf]
        %v845 = vld [vmem:[%s443 + $0x74] sm:$0xf]
        %v846 = vld [vmem:[%s443 + $0x78] sm:$0xf]
        %v847 = vld [vmem:[%s443 + $0x7c] sm:$0xf]
        %v880 = vunpack.c.l.b16 %v816
        %v881 = vunpack.c.l.b16 %v817
        %v882 = vunpack.c.l.b16 %v818
        %v883 = vunpack.c.l.b16 %v819
        %v884 = vunpack.c.l.b16 %v820
        %v885 = vunpack.c.l.b16 %v821
        %v886 = vunpack.c.l.b16 %v822
        %v887 = vunpack.c.l.b16 %v823
        %v888 = vunpack.c.l.b16 %v824
        %v889 = vunpack.c.l.b16 %v825
        %v890 = vunpack.c.l.b16 %v826
        %v891 = vunpack.c.l.b16 %v827
        %v892 = vunpack.c.l.b16 %v828
        %v893 = vunpack.c.l.b16 %v829
        %v894 = vunpack.c.l.b16 %v830
        %v895 = vunpack.c.l.b16 %v831
        %v896 = vunpack.c.l.b16 %v832
        %v897 = vunpack.c.l.b16 %v833
        %v898 = vunpack.c.l.b16 %v834
        %v899 = vunpack.c.l.b16 %v835
        %v900 = vunpack.c.l.b16 %v836
        %v901 = vunpack.c.l.b16 %v837
        %v902 = vunpack.c.l.b16 %v838
        %v903 = vunpack.c.l.b16 %v839
        %v904 = vunpack.c.l.b16 %v840
        %v905 = vunpack.c.l.b16 %v841
        %v906 = vunpack.c.l.b16 %v842
        %v907 = vunpack.c.l.b16 %v843
        %v908 = vunpack.c.l.b16 %v844
        %v909 = vunpack.c.l.b16 %v845
        %v910 = vunpack.c.l.b16 %v846
        %v911 = vunpack.c.l.b16 %v847
        %v912 = vpack.c.b16 %v881, %v880
        %v913 = vpack.c.b16 %v883, %v882
        %v914 = vpack.c.b16 %v885, %v884
        %v915 = vpack.c.b16 %v887, %v886
        %v916 = vpack.c.b16 %v889, %v888
        %v917 = vpack.c.b16 %v891, %v890
        %v918 = vpack.c.b16 %v893, %v892
        %v919 = vpack.c.b16 %v895, %v894
        %v920 = vpack.c.b16 %v897, %v896
        %v921 = vpack.c.b16 %v899, %v898
        %v922 = vpack.c.b16 %v901, %v900
        %v923 = vpack.c.b16 %v903, %v902
        %v924 = vpack.c.b16 %v905, %v904
        %v925 = vpack.c.b16 %v907, %v906
        %v926 = vpack.c.b16 %v909, %v908
        %v927 = vpack.c.b16 %v911, %v910
        %944 = vmatprep.subr.bf16.mxu0 0
        %945 = vmatpush1.bf16.msra.mxu0 %v912
        %946 = vmatprep.subr.bf16.mxu0 0
        %947 = vmatpush1.bf16.msra.mxu0 %v913
        %948 = vmatprep.subr.bf16.mxu0 0
        %949 = vmatpush1.bf16.msra.mxu0 %v914
        %950 = vmatprep.subr.bf16.mxu0 0
        %951 = vmatpush1.bf16.msra.mxu0 %v915
        %952 = vmatprep.subr.bf16.mxu0 0
        %953 = vmatpush1.bf16.msra.mxu0 %v916
        %954 = vmatprep.subr.bf16.mxu0 0
        %955 = vmatpush1.bf16.msra.mxu0 %v917
        %956 = vmatprep.subr.bf16.mxu0 0
        %957 = vmatpush1.bf16.msra.mxu0 %v918
        %958 = vmatprep.subr.bf16.mxu0 0
        %959 = vmatpush1.bf16.msra.mxu0 %v919
        %960 = vmatprep.subr.bf16.mxu0 0
        %961 = vmatpush1.bf16.msra.mxu0 %v920
        %962 = vmatprep.subr.bf16.mxu0 0
        %963 = vmatpush1.bf16.msra.mxu0 %v921
        %964 = vmatprep.subr.bf16.mxu0 0
        %965 = vmatpush1.bf16.msra.mxu0 %v922
        %966 = vmatprep.subr.bf16.mxu0 0
        %967 = vmatpush1.bf16.msra.mxu0 %v923
        %968 = vmatprep.subr.bf16.mxu0 0
        %969 = vmatpush1.bf16.msra.mxu0 %v924
        %970 = vmatprep.subr.bf16.mxu0 0
        %971 = vmatpush1.bf16.msra.mxu0 %v925
        %972 = vmatprep.subr.bf16.mxu0 0
        %973 = vmatpush1.bf16.msra.mxu0 %v926
        %974 = vmatprep.subr.bf16.mxu0 0
        %975 = vmatpush1.bf16.msra.mxu0 %v927
        %976 = vmatprep.mubr.bf16.mxu0 %v809
        %977 = vmatmul.mubr.bf16.gmra.mrb[0].mxu0 %v808
        %v978 = vpop.f32.mrb[0].mxu0
        %v979 = vadd.f32 0.0, %v978
        %v980 = vpop.f32.mrb[0].mxu0
        %v981 = vpop.f32.mrb[0].mxu0
        %v982 = vadd.f32 0.0, %v981
        %v983 = vpop.f32.mrb[0].mxu0
        %984 = vmatprep.mubr.bf16.mxu0 %v811
        %985 = vmatmul.mubr.bf16.gmra.mrb[0].mxu0 %v810
        %v986 = vpop.f32.mrb[0].mxu0
        %v987 = vadd.f32 0.0, %v986
        %v988 = vpop.f32.mrb[0].mxu0
        %v989 = vpop.f32.mrb[0].mxu0
        %v990 = vadd.f32 0.0, %v989
        %v991 = vpop.f32.mrb[0].mxu0
        %992 = vmatprep.mubr.bf16.mxu0 %v813
        %993 = vmatmul.mubr.bf16.gmra.mrb[0].mxu0 %v812
        %v994 = vpop.f32.mrb[0].mxu0
        %v995 = vadd.f32 0.0, %v994
        %v996 = vpop.f32.mrb[0].mxu0
        %v997 = vpop.f32.mrb[0].mxu0
        %v998 = vadd.f32 0.0, %v997
        %v999 = vpop.f32.mrb[0].mxu0
        %1000 = vmatprep.mubr.bf16.mxu0 %v815
        %1001 = vmatmul.mubr.bf16.gmra.mrb[0].mxu0 %v814
        %v1002 = vpop.f32.mrb[0].mxu0
        %v1003 = vadd.f32 0.0, %v1002
        %v1004 = vpop.f32.mrb[0].mxu0
        %v1005 = vpop.f32.mrb[0].mxu0
        %v1006 = vadd.f32 0.0, %v1005
        %v1007 = vpop.f32.mrb[0].mxu0
        %1008 = vdwg.mxu0
        %v1009 = vadd.f32 %v800, %v979
        %v1010 = vadd.f32 %v801, %v982
        %v1011 = vadd.f32 %v802, %v987
        %v1012 = vadd.f32 %v803, %v990
        %v1013 = vadd.f32 %v804, %v995
        %v1014 = vadd.f32 %v805, %v998
        %v1015 = vadd.f32 %v806, %v1003
        %v1016 = vadd.f32 %v807, %v1006
        %1017 = vst [vmem:[#allocation3] sm:$0xff] %v1009
        %1018 = vst [vmem:[#allocation3 + $0x8] sm:$0xff] %v1010
        %1019 = vst [vmem:[#allocation3 + $0x10] sm:$0xff] %v1011
        %1020 = vst [vmem:[#allocation3 + $0x18] sm:$0xff] %v1012
        %1021 = vst [vmem:[#allocation3 + $0x20] sm:$0xff] %v1013
        %1022 = vst [vmem:[#allocation3 + $0x28] sm:$0xff] %v1014
        %1023 = vst [vmem:[#allocation3 + $0x30] sm:$0xff] %v1015
        %1024 = vst [vmem:[#allocation3 + $0x38] sm:$0xff] %v1016
        %p1025 = scmp.eq.s32.totalorder %s23, 1
        // Predicated region
        $region91: #{_layer_impl.7} parent=81 // pred_check
          %p1026 = pneg %p1025
        $region92: #{_layer_impl.7} parent=81 // pred_check_branch
          %1028 = sbr.rel (%p1026) target = $region94
        $region93: #{_layer_impl.7} parent=81 // pred_region
          %v1029 = vld [vmem:[%s431] sm:$0xff]
          %v1030 = vld [vmem:[%s431 + $0x8] sm:$0xff]
          %v1031 = vld [vmem:[%s431 + $0x10] sm:$0xff]
          %v1032 = vld [vmem:[%s431 + $0x18] sm:$0xff]
          %v1033 = vld [vmem:[%s431 + $0x20] sm:$0xff]
          %v1034 = vld [vmem:[%s431 + $0x28] sm:$0xff]
          %v1035 = vld [vmem:[%s431 + $0x30] sm:$0xff]
          %v1036 = vld [vmem:[%s431 + $0x38] sm:$0xff]
          %v1037 = vld [vmem:[#allocation3] sm:$0xff]
          %v1038 = vld [vmem:[#allocation3 + $0x8] sm:$0xff]
          %v1039 = vld [vmem:[#allocation3 + $0x10] sm:$0xff]
          %v1040 = vld [vmem:[#allocation3 + $0x18] sm:$0xff]
          %v1041 = vld [vmem:[#allocation3 + $0x20] sm:$0xff]
          %v1042 = vld [vmem:[#allocation3 + $0x28] sm:$0xff]
          %v1043 = vld [vmem:[#allocation3 + $0x30] sm:$0xff]
          %v1044 = vld [vmem:[#allocation3 + $0x38] sm:$0xff]
          %v1045 = vadd.f32 %v1029, %v1037
          %v1046 = vadd.f32 %v1030, %v1038
          %v1047 = vadd.f32 %v1031, %v1039
          %v1048 = vadd.f32 %v1032, %v1040
          %v1049 = vadd.f32 %v1033, %v1041
          %v1050 = vadd.f32 %v1034, %v1042
          %v1051 = vadd.f32 %v1035, %v1043
          %v1052 = vadd.f32 %v1036, %v1044
          %v1053 = vld [vmem:[%s6] sm:$0x1]
          %v1055 = vlaneseq
          %v1056 = vshrl.u32 %v1055, 7
          %v1057 = vsub.s32 0, %v1056
          %v1058 = vrot.slane %v1053, %v1057
          %v1060 = vadd.f32 %v1045, %v1058
          %v1061 = vadd.f32 %v1046, %v1058
          %v1062 = vadd.f32 %v1047, %v1058
          %v1063 = vadd.f32 %v1048, %v1058
          %v1064 = vadd.f32 %v1049, %v1058
          %v1065 = vadd.f32 %v1050, %v1058
          %v1066 = vadd.f32 %v1051, %v1058
          %v1067 = vadd.f32 %v1052, %v1058
          %1068 = vst [vmem:[%s449] sm:$0xff] %v1060
          %1069 = vst [vmem:[%s449 + $0x8] sm:$0xff] %v1061
          %1070 = vst [vmem:[%s449 + $0x10] sm:$0xff] %v1062
          %1071 = vst [vmem:[%s449 + $0x18] sm:$0xff] %v1063
          %1072 = vst [vmem:[%s449 + $0x20] sm:$0xff] %v1064
          %1073 = vst [vmem:[%s449 + $0x28] sm:$0xff] %v1065
          %1074 = vst [vmem:[%s449 + $0x30] sm:$0xff] %v1066
          %1075 = vst [vmem:[%s449 + $0x38] sm:$0xff] %v1067
        $region94: #{_layer_impl.7} parent=81 // pred_fallthru
          _
        %s1076 = smul.u32 8, %s22
        %p1077 = scmp.lt.s32.totalorder %s1076, 15
        %s1078 = scalar_select %p1077, %s1076, 15
        %s1079 = smul.addr %s1078, 8
        %s1080 = scalar_lea.vmem %s7, %s1079
        // Predicated region
        $region95: #{_layer_impl.7} parent=81 // pred_check
          %p1081 = pneg %p215
        $region96: #{_layer_impl.7} parent=81 // pred_check_branch
          %1083 = sbr.rel (%p1081) target = $region98
        $region97: #{_layer_impl.7} parent=81 // pred_region
          %s1084 = smul.u32 8, %s22
        $region98: #{_layer_impl.7} parent=81 // pred_fallthru
          _
      $region82: #{_layer_impl.7} parent=5 // pred_fallthru
        _
      %p1085 = scmp.le.s32.totalorder 2, %s13
      // Predicated region
      $region99: #{_layer_impl.7} parent=5 // pred_check
        %p1086 = pneg %p1085
      $region100: #{_layer_impl.7} parent=5 // pred_check_branch
        %1088 = sbr.rel (%p1086) target = $region102
      $region101: #{_layer_impl.7} parent=5 // pred_region
        %s1089 = ssub.s32 %s13, 2
        // Predicated region
        $region103: #{_layer_impl.7} parent=101 // pred_check
          %p1090 = pneg %p221
        $region104: #{_layer_impl.7} parent=101 // pred_check_branch
          %1092 = sbr.rel (%p1090) target = $region106
        $region105: #{_layer_impl.7} parent=101 // pred_region
          %s1093 = smul.u32 8, %s24
          %p1094 = scmp.lt.s32.totalorder %s1093, 15
          %s1095 = scalar_select %p1094, %s1093, 15
          %s1096 = smul.addr %s1095, 8
          %s1097 = scalar_lea.vmem %s7, %s1096
        $region106: #{_layer_impl.7} parent=101 // pred_fallthru
          _
      $region102: #{_layer_impl.7} parent=5 // pred_fallthru
        _
    $region6: #{_layer_impl.7} parent=1 // loop_footer
      %s17 = sadd.s32 1, %s13
    $region7: #{_layer_impl.7} parent=1 // loop_footer_branch
      %12 = sbr.rel target = $region3
    $region8: #{_layer_impl.7} parent=1 // loop_exit
      _

</llo_original>
